<compile_context>
chip_gen: v7x
topology: tpu7x:2x2x1
jax: 0.10.0
libtpu: 0.0.40
codegen_flags: <defaults>
</compile_context>

<pallas_src>
import functools

import jax
import jax.numpy as jnp
import numpy as np
from jax import lax
from jax.experimental import pallas as pl
from jax.experimental.pallas import tpu as pltpu


def _round_up(x, m):
    return (x + m - 1) // m * m


def _inr_kernel(coords_ref, zb_ref, fx_ref, fy_ref, w_enc_ref,
                w_hid_ref, b_hid_ref, w_out_ref, b_out_ref,
                o_ref, x_ref, *, num_layers, compute_dtype):
    ct = coords_ref[0]                         # (2, tile_n) f32
    cx = ct[0:1, :]                            # (1, tile_n)
    cy = ct[1:2, :]                            # (1, tile_n)
    # Fourier projection coords @ freqs.T as a VPU broadcast-FMA in f32
    # (a K=2 MXU matmul would waste almost the whole contraction depth;
    #  f32 keeps the VPU/EUP path valid on v5e).
    p = fx_ref[...] * cx + fy_ref[...] * cy                     # (F_pad, tile_n)
    # F_pad is a multiple of 8 -> the sublane concat is aligned (no relayout).
    enc = jnp.concatenate([jnp.sin(p), jnp.cos(p)], axis=0)     # (2F_pad, tile_n)
    enc = enc.astype(compute_dtype)

    # fc_in: single fused matmul against [W_sin; W_cos]^T plus the hoisted
    # per-batch bias z_bias = z @ W_z + b_in (computed once in the wrapper).
    # Bias add in f32, single cast to compute_dtype on store (bf16 scratch).
    x_ref[...] = (
        jnp.dot(w_enc_ref[...], enc, preferred_element_type=jnp.float32)
        + zb_ref[0]).astype(compute_dtype)                       # (H_pad, tile_n)

    # hidden_layers: plain Linear stack (the module has NO activation here).
    def layer(l):
        x_ref[...] = (
            jnp.dot(w_hid_ref[l], x_ref[...],
                    preferred_element_type=jnp.float32)
            + b_hid_ref[l]).astype(compute_dtype)

    if num_layers <= 8:
        # Small stacks: static unroll (full LLO scheduler visibility).
        for l in range(num_layers):
            layer(l)
    else:
        # Deep stacks: rolled loop with dynamic first-axis weight indexing to
        # bound instruction-stream size / vreg pressure.
        def body(l, carry):
            layer(l)
            return carry
        lax.fori_loop(0, num_layers, body, 0)

    # fc_out -> lane-dense (C, tile_n) output tile.
    y = (jnp.dot(w_out_ref[...], x_ref[...],
                 preferred_element_type=jnp.float32)
         + b_out_ref[...])
    o_ref[0] = y.astype(o_ref.dtype)


def inr_decoder_forward(coords, z, params, *, output_dim, num_layers,
                        tile_n=None, compute_dtype=jnp.bfloat16,
                        vmem_budget_bytes=48 * 2**20):
    B, N, two = coords.shape
    assert two == 2 and N == output_dim * output_dim
    freqs = params["freqs"]            # (F, 2)
    w_in = params["w_in"]              # (2F + L, H), rows ordered [sin|cos|z]
    b_in = params["b_in"]              # (H,)
    w_hid = params["w_hid"]            # (num_layers, H, H)
    b_hid = params["b_hid"]            # (num_layers, H)
    w_out = params["w_out"]            # (H, C)
    b_out = params["b_out"]            # (C,)
    F = freqs.shape[0]
    H = w_in.shape[1]
    C = w_out.shape[1]
    L = z.shape[-1]
    assert w_in.shape[0] == 2 * F + L

    H_pad = _round_up(H, 128)          # zero-padding -> mathematically exact
    F_pad = _round_up(max(F, 1), 8)    # aligned sublane concat / K packing
    pad_h = H_pad - H
    pad_f = F_pad - F
    cbytes = jnp.dtype(compute_dtype).itemsize

    # ---- VMEM resident-set model (conservative: assume double-buffering) ----
    def resident_bytes(t):
        weights = ((H_pad * 2 * F_pad + num_layers * H_pad * H_pad
                    + C * H_pad) * cbytes
                   + (num_layers * H_pad + C + 2 * F_pad) * 4)
        per_step = (2 * t + H_pad + C * t) * 4     # coords / z_bias / out tiles
        scratch = H_pad * t * cbytes               # bf16 activation scratch
        return 2 * weights + 2 * per_step + scratch

    # ---- tile selection: lane-dense, 128-aligned, largest that fits budget --
    if tile_n is None:
        tile_n = N                                        # tiny-input fallback
        for t in (2048, 1024, 512, 256, 128):
            if N % t == 0 and resident_bytes(t) <= vmem_budget_bytes:
                tile_n = t
                break
        # Guarantee >= 2 parallel grid steps (megacore / v7x second TC).
        if B == 1 and N // tile_n < 2 and N % 256 == 0:
            tile_n = N // 2
    assert N % tile_n == 0
    assert tile_n == N or tile_n % 128 == 0, "tile_n must be 128-aligned or == N"

    vmem_limit = int(min(128 * 2**20,
                         max(32 * 2**20, resident_bytes(tile_n) + 4 * 2**20)))

    # ---- parameter prep (pure layout / hoisting glue, runs once under XLA) --
    # Hoisted z term: per-batch bias  z_bias = z @ W_z + b_in  -> (B, H_pad, 1).
    w_z = w_in[2 * F:]                                          # (L, H)
    z_bias = z.astype(jnp.float32) @ w_z + b_in                 # (B, H)
    z_bias = jnp.pad(z_bias, ((0, 0), (0, pad_h)))[:, :, None]  # (B, H_pad, 1)

    # Fused fc_in weight for [sin; cos], transposed + padded: (H_pad, 2F_pad).
    w_sin = jnp.pad(w_in[:F].T, ((0, pad_h), (0, pad_f)))
    w_cos = jnp.pad(w_in[F:2 * F].T, ((0, pad_h), (0, pad_f)))
    w_enc_t = jnp.concatenate([w_sin, w_cos], axis=1).astype(compute_dtype)

    # Hidden stack, transposed + padded: (num_layers, H_pad, H_pad), bf16.
    w_hid_t = jnp.pad(jnp.transpose(w_hid, (0, 2, 1)),
                      ((0, 0), (0, pad_h), (0, pad_h))).astype(compute_dtype)
    b_hid_t = jnp.pad(b_hid, ((0, 0), (0, pad_h)))[:, :, None]  # f32

    # Output layer, transposed + padded: (C, H_pad) bf16 and (C, 1) f32.
    w_out_t = jnp.pad(w_out.T, ((0, 0), (0, pad_h))).astype(compute_dtype)
    b_out_t = b_out[:, None].astype(jnp.float32)

    # Lane-dense coords (B, 2, N); Fourier freqs split per coordinate,
    # zero-padded to F_pad (exact: padded weight columns are zero).
    coords_t = jnp.transpose(coords, (0, 2, 1))
    freqs_pad = jnp.pad(freqs.astype(jnp.float32), ((0, pad_f), (0, 0)))
    fx = freqs_pad[:, 0:1]
    fy = freqs_pad[:, 1:2]

    # Advisory cost estimate so XLA can overlap the wrapper glue with the kernel.
    flops = 2 * B * N * (H_pad * 2 * F_pad + num_layers * H_pad * H_pad
                         + C * H_pad)
    bytes_accessed = (B * N * 2 * 4 + B * H_pad * 4 + B * C * N * 4
                      + (H_pad * 2 * F_pad + num_layers * H_pad * H_pad
                         + C * H_pad) * cbytes
                      + (num_layers * H_pad + C + 2 * F_pad) * 4)
    cost = pl.CostEstimate(flops=int(flops),
                           transcendentals=int(2 * B * N * F_pad),
                           bytes_accessed=int(bytes_accessed))

    kern = functools.partial(_inr_kernel, num_layers=num_layers,
                             compute_dtype=compute_dtype)

    def run(single_buffer_weights):
        def inv_spec(shape):
            # Grid-invariant operand: constant index map, fetched once.
            zeros = (0,) * len(shape)
            idx = lambda b, n, _z=zeros: _z
            if single_buffer_weights:
                # Single VMEM buffer is enough (never re-fetched) -> halves the
                # resident weight footprint (matters on v7x's 64 MiB VMEM).
                return pl.BlockSpec(shape, idx,
                                    pipeline_mode=pl.Buffered(buffer_count=1))
            return pl.BlockSpec(shape, idx)

        return pl.pallas_call(
            kern,
            out_shape=jax.ShapeDtypeStruct((B, C, N), coords.dtype),
            grid_spec=pltpu.PrefetchScalarGridSpec(
                num_scalar_prefetch=0,
                grid=(B, N // tile_n),
                in_specs=[
                    pl.BlockSpec((1, 2, tile_n), lambda b, n: (b, 0, n)),  # coords^T
                    pl.BlockSpec((1, H_pad, 1), lambda b, n: (b, 0, 0)),   # z bias
                    inv_spec(fx.shape), inv_spec(fy.shape),
                    inv_spec(w_enc_t.shape),
                    inv_spec(w_hid_t.shape), inv_spec(b_hid_t.shape),
                    inv_spec(w_out_t.shape), inv_spec(b_out_t.shape),
                ],
                out_specs=pl.BlockSpec((1, C, tile_n), lambda b, n: (b, 0, n)),
                scratch_shapes=[pltpu.VMEM((H_pad, tile_n), compute_dtype)],
            ),
            compiler_params=pltpu.CompilerParams(
                dimension_semantics=("parallel", "parallel"),
                vmem_limit_bytes=vmem_limit),
            cost_estimate=cost,
        )(coords_t, z_bias, fx, fy, w_enc_t, w_hid_t, b_hid_t, w_out_t, b_out_t)

    try:
        out = run(single_buffer_weights=True)
    except Exception:
        # pipeline_mode=pl.Buffered not supported by this JAX/Mosaic build on a
        # top-level pallas_call: fall back to default double-buffered specs
        # (identical math, larger weight footprint).
        out = run(single_buffer_weights=False)

    # Lane-dense (B, C, N) is already NCHW up to a pure reshape (no transpose).
    return out.reshape(B, C, output_dim, output_dim)


def reference_forward(coords, z, params, *, output_dim, num_layers):
    """Pure-JAX f32 reference mirroring the PyTorch forward."""
    B, N, _ = coords.shape
    p = coords @ params["freqs"].T
    enc = jnp.concatenate([jnp.sin(p), jnp.cos(p)], axis=-1)
    zz = jnp.broadcast_to(z[:, None, :], (B, N, z.shape[-1]))
    x = jnp.concatenate([enc, zz], axis=-1) @ params["w_in"] + params["b_in"]
    for l in range(num_layers):
        x = x @ params["w_hid"][l] + params["b_hid"][l]
    x = x @ params["w_out"] + params["b_out"]
    C = x.shape[-1]
    x = x.reshape(B, output_dim, output_dim, C)
    return jnp.transpose(x, (0, 3, 1, 2))


def init_params(key, *, latent_dim, hidden_dim, num_layers, fourier_features,
                out_channels):
    F, H, L, C = fourier_features, hidden_dim, latent_dim, out_channels
    in_dim = L + 2 * F
    ks = jax.random.split(key, 4 + 2 * num_layers)

    def lin_w(k, fan_in, fan_out):
        bound = 1.0 / np.sqrt(fan_in)
        return jax.random.uniform(k, (fan_in, fan_out), jnp.float32, -bound, bound)

    def lin_b(k, fan_in, fan_out):
        bound = 1.0 / np.sqrt(fan_in)
        return jax.random.uniform(k, (fan_out,), jnp.float32, -bound, bound)

    return {
        "freqs": jax.random.normal(ks[0], (F, 2), jnp.float32) * (2.0 * np.pi),
        # Row layout of w_in matches the forward concat order: [sin | cos | z].
        "w_in": lin_w(ks[1], in_dim, H),
        "b_in": lin_b(ks[2], in_dim, H),
        "w_hid": jnp.stack([lin_w(ks[3 + 2 * l], H, H) for l in range(num_layers)]),
        "b_hid": jnp.stack([lin_b(ks[4 + 2 * l], H, H) for l in range(num_layers)]),
        "w_out": lin_w(ks[3 + 2 * num_layers], H, C),
        "b_out": lin_b(ks[3 + 2 * num_layers], H, C),
    }


if __name__ == "__main__":
    # Small, forward-consistent shapes: N must equal output_dim**2.
    B = 2
    latent_dim = 16
    output_dim = 8
    out_channels = 1
    hidden_dim = 32
    num_layers = 4
    fourier_features = 8
    N = output_dim * output_dim

    key = jax.random.PRNGKey(0)
    k_params, k_coords, k_z = jax.random.split(key, 3)

    params = init_params(k_params, latent_dim=latent_dim, hidden_dim=hidden_dim,
                         num_layers=num_layers, fourier_features=fourier_features,
                         out_channels=out_channels)
    coords = jax.random.uniform(k_coords, (B, N, 2), jnp.float32)
    z = jax.random.normal(k_z, (B, latent_dim), jnp.float32)

    out = inr_decoder_forward(coords, z, params,
                              output_dim=output_dim, num_layers=num_layers)
    out = jax.block_until_ready(out)

    ref = reference_forward(coords, z, params,
                            output_dim=output_dim, num_layers=num_layers)
    assert out.shape == (B, out_channels, output_dim, output_dim), out.shape
    # bf16 matmul inputs with f32 accumulation -> slightly relaxed tolerance.
    np.testing.assert_allclose(np.asarray(out), np.asarray(ref),
                               rtol=2e-2, atol=2e-2)
    print("KERNEL_OK")
</pallas_src>

<mosaic_0001>
module attributes {stable_mosaic.version = 11 : i64} {
  func.func @_inr_kernel(%arg0: i32, %arg1: i32, %arg2: memref<1x2x64xf32, #tpu.memory_space<vmem>>, %arg3: memref<1x128x1xf32, #tpu.memory_space<vmem>>, %arg4: memref<8x1xf32, #tpu.memory_space<vmem>>, %arg5: memref<8x1xf32, #tpu.memory_space<vmem>>, %arg6: memref<128x16xbf16, #tpu.memory_space<vmem>>, %arg7: memref<4x128x128xbf16, #tpu.memory_space<vmem>>, %arg8: memref<4x128x1xf32, #tpu.memory_space<vmem>>, %arg9: memref<1x128xbf16, #tpu.memory_space<vmem>>, %arg10: memref<1x1xf32, #tpu.memory_space<vmem>>, %arg11: memref<1x1x64xf32, #tpu.memory_space<vmem>>, %arg12: memref<128x64xbf16, #tpu.memory_space<vmem>>) attributes {dimension_semantics = [#tpu.dimension_semantics<parallel>, #tpu.dimension_semantics<parallel>], iteration_bounds = array<i64: 2, 1>, scalar_prefetch = 0 : i64, scratch_operands = 1 : i64, tpu.core_type = #tpu.core_type<tc>, window_params = [{transform_indices = @transform_0, window_bounds = array<i64: 1, 2, 64>}, {transform_indices = @transform_1, window_bounds = array<i64: 1, 128, 1>}, {pipeline_mode = #tpu.pipeline_mode<synchronous>, transform_indices = @transform_2, window_bounds = array<i64: 8, 1>}, {pipeline_mode = #tpu.pipeline_mode<synchronous>, transform_indices = @transform_3, window_bounds = array<i64: 8, 1>}, {pipeline_mode = #tpu.pipeline_mode<synchronous>, transform_indices = @transform_4, window_bounds = array<i64: 128, 16>}, {pipeline_mode = #tpu.pipeline_mode<synchronous>, transform_indices = @transform_5, window_bounds = array<i64: 4, 128, 128>}, {pipeline_mode = #tpu.pipeline_mode<synchronous>, transform_indices = @transform_6, window_bounds = array<i64: 4, 128, 1>}, {pipeline_mode = #tpu.pipeline_mode<synchronous>, transform_indices = @transform_7, window_bounds = array<i64: 1, 128>}, {pipeline_mode = #tpu.pipeline_mode<synchronous>, transform_indices = @transform_8, window_bounds = array<i64: 1, 1>}, {transform_indices = @transform_9, window_bounds = array<i64: 1, 1, 64>}]} {
    %c0 = arith.constant 0 : index
    %c0_0 = arith.constant 0 : index
    %c0_1 = arith.constant 0 : index
    %0 = vector.load %arg2[%c0, %c0_0, %c0_1] : memref<1x2x64xf32, #tpu.memory_space<vmem>>, vector<1x2x64xf32>
    %1 = vector.shape_cast %0 : vector<1x2x64xf32> to vector<2x64xf32>
    %2 = vector.extract_strided_slice %1 {offsets = [0, 0], sizes = [1, 64], strides = [1, 1]} : vector<2x64xf32> to vector<1x64xf32>
    %3 = vector.extract_strided_slice %1 {offsets = [1, 0], sizes = [1, 64], strides = [1, 1]} : vector<2x64xf32> to vector<1x64xf32>
    %c0_2 = arith.constant 0 : index
    %c0_3 = arith.constant 0 : index
    %4 = vector.load %arg4[%c0_2, %c0_3] : memref<8x1xf32, #tpu.memory_space<vmem>>, vector<8x1xf32>
    %5 = vector.broadcast %4 : vector<8x1xf32> to vector<8x64xf32>
    %6 = vector.broadcast %2 : vector<1x64xf32> to vector<8x64xf32>
    %7 = arith.mulf %5, %6 : vector<8x64xf32>
    %c0_4 = arith.constant 0 : index
    %c0_5 = arith.constant 0 : index
    %8 = vector.load %arg5[%c0_4, %c0_5] : memref<8x1xf32, #tpu.memory_space<vmem>>, vector<8x1xf32>
    %9 = vector.broadcast %8 : vector<8x1xf32> to vector<8x64xf32>
    %10 = vector.broadcast %3 : vector<1x64xf32> to vector<8x64xf32>
    %11 = arith.mulf %9, %10 : vector<8x64xf32>
    %12 = arith.addf %7, %11 : vector<8x64xf32>
    %13 = math.sin %12 : vector<8x64xf32>
    %14 = math.cos %12 : vector<8x64xf32>
    %15 = tpu.concatenate %13, %14 in 0 : vector<8x64xf32>, vector<8x64xf32> -> vector<16x64xf32>
    %16 = arith.truncf %15 : vector<16x64xf32> to vector<16x64xbf16>
    %c0_6 = arith.constant 0 : index
    %c0_7 = arith.constant 0 : index
    %17 = vector.load %arg6[%c0_6, %c0_7] : memref<128x16xbf16, #tpu.memory_space<vmem>>, vector<128x16xbf16>
    %cst = arith.constant dense<0.000000e+00> : vector<128x64xf32>
    %18 = tpu.matmul %17, %16, %cst {dimension_numbers = #tpu.dot_dimension_numbers<[1], [0], [0], [1], [0, 0, 1, 1], [], []>} : vector<128x16xbf16>, vector<16x64xbf16>, vector<128x64xf32> -> vector<128x64xf32>
    %c0_8 = arith.constant 0 : index
    %c0_9 = arith.constant 0 : index
    %c0_10 = arith.constant 0 : index
    %19 = vector.load %arg3[%c0_8, %c0_9, %c0_10] : memref<1x128x1xf32, #tpu.memory_space<vmem>>, vector<1x128x1xf32>
    %20 = vector.shape_cast %19 : vector<1x128x1xf32> to vector<128x1xf32>
    %21 = vector.broadcast %20 : vector<128x1xf32> to vector<128x64xf32>
    %22 = arith.addf %18, %21 : vector<128x64xf32>
    %23 = arith.truncf %22 : vector<128x64xf32> to vector<128x64xbf16>
    %c0_11 = arith.constant 0 : index
    %c0_12 = arith.constant 0 : index
    %24 = vector.load %arg12[%c0_11, %c0_12] : memref<128x64xbf16, #tpu.memory_space<vmem>>, vector<128x64xbf16>
    tpu.vector_store %arg12[%c0_11, %c0_12], %23 {strides = array<i32>} : memref<128x64xbf16, #tpu.memory_space<vmem>>, vector<128x64xbf16>,
    %c0_13 = arith.constant 0 : index
    %c0_14 = arith.constant 0 : index
    %c0_15 = arith.constant 0 : index
    %25 = vector.load %arg7[%c0_13, %c0_14, %c0_15] : memref<4x128x128xbf16, #tpu.memory_space<vmem>>, vector<1x128x128xbf16>
    %26 = vector.shape_cast %25 : vector<1x128x128xbf16> to vector<128x128xbf16>
    %c0_16 = arith.constant 0 : index
    %c0_17 = arith.constant 0 : index
    %27 = vector.load %arg12[%c0_16, %c0_17] : memref<128x64xbf16, #tpu.memory_space<vmem>>, vector<128x64xbf16>
    %cst_18 = arith.constant dense<0.000000e+00> : vector<128x64xf32>
    %28 = tpu.matmul %26, %27, %cst_18 {dimension_numbers = #tpu.dot_dimension_numbers<[1], [0], [0], [1], [0, 0, 1, 1], [], []>} : vector<128x128xbf16>, vector<128x64xbf16>, vector<128x64xf32> -> vector<128x64xf32>
    %c0_19 = arith.constant 0 : index
    %c0_20 = arith.constant 0 : index
    %c0_21 = arith.constant 0 : index
    %29 = vector.load %arg8[%c0_19, %c0_20, %c0_21] : memref<4x128x1xf32, #tpu.memory_space<vmem>>, vector<1x128x1xf32>
    %30 = vector.shape_cast %29 : vector<1x128x1xf32> to vector<128x1xf32>
    %31 = vector.broadcast %30 : vector<128x1xf32> to vector<128x64xf32>
    %32 = arith.addf %28, %31 : vector<128x64xf32>
    %33 = arith.truncf %32 : vector<128x64xf32> to vector<128x64xbf16>
    %c0_22 = arith.constant 0 : index
    %c0_23 = arith.constant 0 : index
    %34 = vector.load %arg12[%c0_22, %c0_23] : memref<128x64xbf16, #tpu.memory_space<vmem>>, vector<128x64xbf16>
    tpu.vector_store %arg12[%c0_22, %c0_23], %33 {strides = array<i32>} : memref<128x64xbf16, #tpu.memory_space<vmem>>, vector<128x64xbf16>,
    %c1 = arith.constant 1 : index
    %c0_24 = arith.constant 0 : index
    %c0_25 = arith.constant 0 : index
    %35 = vector.load %arg7[%c1, %c0_24, %c0_25] : memref<4x128x128xbf16, #tpu.memory_space<vmem>>, vector<1x128x128xbf16>
    %36 = vector.shape_cast %35 : vector<1x128x128xbf16> to vector<128x128xbf16>
    %c0_26 = arith.constant 0 : index
    %c0_27 = arith.constant 0 : index
    %37 = vector.load %arg12[%c0_26, %c0_27] : memref<128x64xbf16, #tpu.memory_space<vmem>>, vector<128x64xbf16>
    %cst_28 = arith.constant dense<0.000000e+00> : vector<128x64xf32>
    %38 = tpu.matmul %36, %37, %cst_28 {dimension_numbers = #tpu.dot_dimension_numbers<[1], [0], [0], [1], [0, 0, 1, 1], [], []>} : vector<128x128xbf16>, vector<128x64xbf16>, vector<128x64xf32> -> vector<128x64xf32>
    %c1_29 = arith.constant 1 : index
    %c0_30 = arith.constant 0 : index
    %c0_31 = arith.constant 0 : index
    %39 = vector.load %arg8[%c1_29, %c0_30, %c0_31] : memref<4x128x1xf32, #tpu.memory_space<vmem>>, vector<1x128x1xf32>
    %40 = vector.shape_cast %39 : vector<1x128x1xf32> to vector<128x1xf32>
    %41 = vector.broadcast %40 : vector<128x1xf32> to vector<128x64xf32>
    %42 = arith.addf %38, %41 : vector<128x64xf32>
    %43 = arith.truncf %42 : vector<128x64xf32> to vector<128x64xbf16>
    %c0_32 = arith.constant 0 : index
    %c0_33 = arith.constant 0 : index
    %44 = vector.load %arg12[%c0_32, %c0_33] : memref<128x64xbf16, #tpu.memory_space<vmem>>, vector<128x64xbf16>
    tpu.vector_store %arg12[%c0_32, %c0_33], %43 {strides = array<i32>} : memref<128x64xbf16, #tpu.memory_space<vmem>>, vector<128x64xbf16>,
    %c2 = arith.constant 2 : index
    %c0_34 = arith.constant 0 : index
    %c0_35 = arith.constant 0 : index
    %45 = vector.load %arg7[%c2, %c0_34, %c0_35] : memref<4x128x128xbf16, #tpu.memory_space<vmem>>, vector<1x128x128xbf16>
    %46 = vector.shape_cast %45 : vector<1x128x128xbf16> to vector<128x128xbf16>
    %c0_36 = arith.constant 0 : index
    %c0_37 = arith.constant 0 : index
    %47 = vector.load %arg12[%c0_36, %c0_37] : memref<128x64xbf16, #tpu.memory_space<vmem>>, vector<128x64xbf16>
    %cst_38 = arith.constant dense<0.000000e+00> : vector<128x64xf32>
    %48 = tpu.matmul %46, %47, %cst_38 {dimension_numbers = #tpu.dot_dimension_numbers<[1], [0], [0], [1], [0, 0, 1, 1], [], []>} : vector<128x128xbf16>, vector<128x64xbf16>, vector<128x64xf32> -> vector<128x64xf32>
    %c2_39 = arith.constant 2 : index
    %c0_40 = arith.constant 0 : index
    %c0_41 = arith.constant 0 : index
    %49 = vector.load %arg8[%c2_39, %c0_40, %c0_41] : memref<4x128x1xf32, #tpu.memory_space<vmem>>, vector<1x128x1xf32>
    %50 = vector.shape_cast %49 : vector<1x128x1xf32> to vector<128x1xf32>
    %51 = vector.broadcast %50 : vector<128x1xf32> to vector<128x64xf32>
    %52 = arith.addf %48, %51 : vector<128x64xf32>
    %53 = arith.truncf %52 : vector<128x64xf32> to vector<128x64xbf16>
    %c0_42 = arith.constant 0 : index
    %c0_43 = arith.constant 0 : index
    %54 = vector.load %arg12[%c0_42, %c0_43] : memref<128x64xbf16, #tpu.memory_space<vmem>>, vector<128x64xbf16>
    tpu.vector_store %arg12[%c0_42, %c0_43], %53 {strides = array<i32>} : memref<128x64xbf16, #tpu.memory_space<vmem>>, vector<128x64xbf16>,
    %c3 = arith.constant 3 : index
    %c0_44 = arith.constant 0 : index
    %c0_45 = arith.constant 0 : index
    %55 = vector.load %arg7[%c3, %c0_44, %c0_45] : memref<4x128x128xbf16, #tpu.memory_space<vmem>>, vector<1x128x128xbf16>
    %56 = vector.shape_cast %55 : vector<1x128x128xbf16> to vector<128x128xbf16>
    %c0_46 = arith.constant 0 : index
    %c0_47 = arith.constant 0 : index
    %57 = vector.load %arg12[%c0_46, %c0_47] : memref<128x64xbf16, #tpu.memory_space<vmem>>, vector<128x64xbf16>
    %cst_48 = arith.constant dense<0.000000e+00> : vector<128x64xf32>
    %58 = tpu.matmul %56, %57, %cst_48 {dimension_numbers = #tpu.dot_dimension_numbers<[1], [0], [0], [1], [0, 0, 1, 1], [], []>} : vector<128x128xbf16>, vector<128x64xbf16>, vector<128x64xf32> -> vector<128x64xf32>
    %c3_49 = arith.constant 3 : index
    %c0_50 = arith.constant 0 : index
    %c0_51 = arith.constant 0 : index
    %59 = vector.load %arg8[%c3_49, %c0_50, %c0_51] : memref<4x128x1xf32, #tpu.memory_space<vmem>>, vector<1x128x1xf32>
    %60 = vector.shape_cast %59 : vector<1x128x1xf32> to vector<128x1xf32>
    %61 = vector.broadcast %60 : vector<128x1xf32> to vector<128x64xf32>
    %62 = arith.addf %58, %61 : vector<128x64xf32>
    %63 = arith.truncf %62 : vector<128x64xf32> to vector<128x64xbf16>
    %c0_52 = arith.constant 0 : index
    %c0_53 = arith.constant 0 : index
    %64 = vector.load %arg12[%c0_52, %c0_53] : memref<128x64xbf16, #tpu.memory_space<vmem>>, vector<128x64xbf16>
    tpu.vector_store %arg12[%c0_52, %c0_53], %63 {strides = array<i32>} : memref<128x64xbf16, #tpu.memory_space<vmem>>, vector<128x64xbf16>,
    %c0_54 = arith.constant 0 : index
    %c0_55 = arith.constant 0 : index
    %65 = vector.load %arg9[%c0_54, %c0_55] : memref<1x128xbf16, #tpu.memory_space<vmem>>, vector<1x128xbf16>
    %c0_56 = arith.constant 0 : index
    %c0_57 = arith.constant 0 : index
    %66 = vector.load %arg12[%c0_56, %c0_57] : memref<128x64xbf16, #tpu.memory_space<vmem>>, vector<128x64xbf16>
    %cst_58 = arith.constant dense<0.000000e+00> : vector<1x64xf32>
    %67 = tpu.matmul %65, %66, %cst_58 {dimension_numbers = #tpu.dot_dimension_numbers<[1], [0], [0], [1], [0, 0, 1, 1], [], []>} : vector<1x128xbf16>, vector<128x64xbf16>, vector<1x64xf32> -> vector<1x64xf32>
    %c0_59 = arith.constant 0 : index
    %c0_60 = arith.constant 0 : index
    %68 = vector.load %arg10[%c0_59, %c0_60] : memref<1x1xf32, #tpu.memory_space<vmem>>, vector<1x1xf32>
    %69 = vector.broadcast %68 : vector<1x1xf32> to vector<1x64xf32>
    %70 = arith.addf %67, %69 : vector<1x64xf32>
    %c0_61 = arith.constant 0 : index
    %c0_62 = arith.constant 0 : index
    %c0_63 = arith.constant 0 : index
    %71 = vector.load %arg11[%c0_61, %c0_62, %c0_63] : memref<1x1x64xf32, #tpu.memory_space<vmem>>, vector<1x1x64xf32>
    %72 = vector.shape_cast %71 : vector<1x1x64xf32> to vector<1x64xf32>
    %73 = vector.shape_cast %70 : vector<1x64xf32> to vector<1x1x64xf32>
    tpu.vector_store %arg11[%c0_61, %c0_62, %c0_63], %73 {strides = array<i32>} : memref<1x1x64xf32, #tpu.memory_space<vmem>>, vector<1x1x64xf32>,
    return
  }
  func.func @transform_0(%arg0: i32, %arg1: i32) -> (i32, i32, i32) {
    %c0_i32 = arith.constant 0 : i32
    %c0_i32_0 = arith.constant 0 : i32
    return %arg0, %c0_i32, %arg1 : i32, i32, i32
  }
  func.func @transform_1(%arg0: i32, %arg1: i32) -> (i32, i32, i32) {
    %c0_i32 = arith.constant 0 : i32
    %c0_i32_0 = arith.constant 0 : i32
    %c0_i32_1 = arith.constant 0 : i32
    return %arg0, %c0_i32, %c0_i32_0 : i32, i32, i32
  }
  func.func @transform_2(%arg0: i32, %arg1: i32) -> (i32, i32) {
    %c0_i32 = arith.constant 0 : i32
    %c0_i32_0 = arith.constant 0 : i32
    %c0_i32_1 = arith.constant 0 : i32
    return %c0_i32, %c0_i32_0 : i32, i32
  }
  func.func @transform_3(%arg0: i32, %arg1: i32) -> (i32, i32) {
    %c0_i32 = arith.constant 0 : i32
    %c0_i32_0 = arith.constant 0 : i32
    %c0_i32_1 = arith.constant 0 : i32
    return %c0_i32, %c0_i32_0 : i32, i32
  }
  func.func @transform_4(%arg0: i32, %arg1: i32) -> (i32, i32) {
    %c0_i32 = arith.constant 0 : i32
    %c0_i32_0 = arith.constant 0 : i32
    %c0_i32_1 = arith.constant 0 : i32
    return %c0_i32, %c0_i32_0 : i32, i32
  }
  func.func @transform_5(%arg0: i32, %arg1: i32) -> (i32, i32, i32) {
    %c0_i32 = arith.constant 0 : i32
    %c0_i32_0 = arith.constant 0 : i32
    %c0_i32_1 = arith.constant 0 : i32
    %c0_i32_2 = arith.constant 0 : i32
    return %c0_i32, %c0_i32_0, %c0_i32_1 : i32, i32, i32
  }
  func.func @transform_6(%arg0: i32, %arg1: i32) -> (i32, i32, i32) {
    %c0_i32 = arith.constant 0 : i32
    %c0_i32_0 = arith.constant 0 : i32
    %c0_i32_1 = arith.constant 0 : i32
    %c0_i32_2 = arith.constant 0 : i32
    return %c0_i32, %c0_i32_0, %c0_i32_1 : i32, i32, i32
  }
  func.func @transform_7(%arg0: i32, %arg1: i32) -> (i32, i32) {
    %c0_i32 = arith.constant 0 : i32
    %c0_i32_0 = arith.constant 0 : i32
    %c0_i32_1 = arith.constant 0 : i32
    return %c0_i32, %c0_i32_0 : i32, i32
  }
  func.func @transform_8(%arg0: i32, %arg1: i32) -> (i32, i32) {
    %c0_i32 = arith.constant 0 : i32
    %c0_i32_0 = arith.constant 0 : i32
    %c0_i32_1 = arith.constant 0 : i32
    return %c0_i32, %c0_i32_0 : i32, i32
  }
  func.func @transform_9(%arg0: i32, %arg1: i32) -> (i32, i32, i32) {
    %c0_i32 = arith.constant 0 : i32
    %c0_i32_0 = arith.constant 0 : i32
    return %arg0, %c0_i32, %arg1 : i32, i32, i32
  }
}

module attributes {stable_mosaic.version = 11 : i64} {
  func.func @_inr_kernel(%arg0: i32, %arg1: i32, %arg2: memref<1x2x64xf32, #tpu.memory_space<vmem>>, %arg3: memref<1x128x1xf32, #tpu.memory_space<vmem>>, %arg4: memref<8x1xf32, #tpu.memory_space<vmem>>, %arg5: memref<8x1xf32, #tpu.memory_space<vmem>>, %arg6: memref<128x16xbf16, #tpu.memory_space<vmem>>, %arg7: memref<4x128x128xbf16, #tpu.memory_space<vmem>>, %arg8: memref<4x128x1xf32, #tpu.memory_space<vmem>>, %arg9: memref<1x128xbf16, #tpu.memory_space<vmem>>, %arg10: memref<1x1xf32, #tpu.memory_space<vmem>>, %arg11: memref<1x1x64xf32, #tpu.memory_space<vmem>>, %arg12: memref<128x64xbf16, #tpu.memory_space<vmem>>) attributes {dimension_semantics = [#tpu.dimension_semantics<parallel>, #tpu.dimension_semantics<parallel>], iteration_bounds = array<i64: 2, 1>, scalar_prefetch = 0 : i64, scratch_operands = 1 : i64, tpu.core_type = #tpu.core_type<tc>, window_params = [{transform_indices = @transform_0, window_bounds = array<i64: 1, 2, 64>}, {transform_indices = @transform_1, window_bounds = array<i64: 1, 128, 1>}, {pipeline_mode = #tpu.pipeline_mode<synchronous>, transform_indices = @transform_2, window_bounds = array<i64: 8, 1>}, {pipeline_mode = #tpu.pipeline_mode<synchronous>, transform_indices = @transform_3, window_bounds = array<i64: 8, 1>}, {pipeline_mode = #tpu.pipeline_mode<synchronous>, transform_indices = @transform_4, window_bounds = array<i64: 128, 16>}, {pipeline_mode = #tpu.pipeline_mode<synchronous>, transform_indices = @transform_5, window_bounds = array<i64: 4, 128, 128>}, {pipeline_mode = #tpu.pipeline_mode<synchronous>, transform_indices = @transform_6, window_bounds = array<i64: 4, 128, 1>}, {pipeline_mode = #tpu.pipeline_mode<synchronous>, transform_indices = @transform_7, window_bounds = array<i64: 1, 128>}, {pipeline_mode = #tpu.pipeline_mode<synchronous>, transform_indices = @transform_8, window_bounds = array<i64: 1, 1>}, {transform_indices = @transform_9, window_bounds = array<i64: 1, 1, 64>}]} {
    %c0 = arith.constant 0 : index
    %c0_0 = arith.constant 0 : index
    %c0_1 = arith.constant 0 : index
    %0 = vector.load %arg2[%c0, %c0_0, %c0_1] : memref<1x2x64xf32, #tpu.memory_space<vmem>>, vector<1x2x64xf32>
    %1 = vector.shape_cast %0 : vector<1x2x64xf32> to vector<2x64xf32>
    %2 = vector.extract_strided_slice %1 {offsets = [0, 0], sizes = [1, 64], strides = [1, 1]} : vector<2x64xf32> to vector<1x64xf32>
    %3 = vector.extract_strided_slice %1 {offsets = [1, 0], sizes = [1, 64], strides = [1, 1]} : vector<2x64xf32> to vector<1x64xf32>
    %c0_2 = arith.constant 0 : index
    %c0_3 = arith.constant 0 : index
    %4 = vector.load %arg4[%c0_2, %c0_3] : memref<8x1xf32, #tpu.memory_space<vmem>>, vector<8x1xf32>
    %5 = vector.broadcast %4 : vector<8x1xf32> to vector<8x64xf32>
    %6 = vector.broadcast %2 : vector<1x64xf32> to vector<8x64xf32>
    %7 = arith.mulf %5, %6 : vector<8x64xf32>
    %c0_4 = arith.constant 0 : index
    %c0_5 = arith.constant 0 : index
    %8 = vector.load %arg5[%c0_4, %c0_5] : memref<8x1xf32, #tpu.memory_space<vmem>>, vector<8x1xf32>
    %9 = vector.broadcast %8 : vector<8x1xf32> to vector<8x64xf32>
    %10 = vector.broadcast %3 : vector<1x64xf32> to vector<8x64xf32>
    %11 = arith.mulf %9, %10 : vector<8x64xf32>
    %12 = arith.addf %7, %11 : vector<8x64xf32>
    %13 = math.sin %12 : vector<8x64xf32>
    %14 = math.cos %12 : vector<8x64xf32>
    %15 = tpu.concatenate %13, %14 in 0 : vector<8x64xf32>, vector<8x64xf32> -> vector<16x64xf32>
    %16 = arith.truncf %15 : vector<16x64xf32> to vector<16x64xbf16>
    %c0_6 = arith.constant 0 : index
    %c0_7 = arith.constant 0 : index
    %17 = vector.load %arg6[%c0_6, %c0_7] : memref<128x16xbf16, #tpu.memory_space<vmem>>, vector<128x16xbf16>
    %cst = arith.constant dense<0.000000e+00> : vector<128x64xf32>
    %18 = tpu.matmul %17, %16, %cst {dimension_numbers = #tpu.dot_dimension_numbers<[1], [0], [0], [1], [0, 0, 1, 1], [], []>} : vector<128x16xbf16>, vector<16x64xbf16>, vector<128x64xf32> -> vector<128x64xf32>
    %c0_8 = arith.constant 0 : index
    %c0_9 = arith.constant 0 : index
    %c0_10 = arith.constant 0 : index
    %19 = vector.load %arg3[%c0_8, %c0_9, %c0_10] : memref<1x128x1xf32, #tpu.memory_space<vmem>>, vector<1x128x1xf32>
    %20 = vector.shape_cast %19 : vector<1x128x1xf32> to vector<128x1xf32>
    %21 = vector.broadcast %20 : vector<128x1xf32> to vector<128x64xf32>
    %22 = arith.addf %18, %21 : vector<128x64xf32>
    %23 = arith.truncf %22 : vector<128x64xf32> to vector<128x64xbf16>
    %c0_11 = arith.constant 0 : index
    %c0_12 = arith.constant 0 : index
    %24 = vector.load %arg12[%c0_11, %c0_12] : memref<128x64xbf16, #tpu.memory_space<vmem>>, vector<128x64xbf16>
    tpu.vector_store %arg12[%c0_11, %c0_12], %23 {strides = array<i32>} : memref<128x64xbf16, #tpu.memory_space<vmem>>, vector<128x64xbf16>,
    %c0_13 = arith.constant 0 : index
    %c0_14 = arith.constant 0 : index
    %c0_15 = arith.constant 0 : index
    %25 = vector.load %arg7[%c0_13, %c0_14, %c0_15] : memref<4x128x128xbf16, #tpu.memory_space<vmem>>, vector<1x128x128xbf16>
    %26 = vector.shape_cast %25 : vector<1x128x128xbf16> to vector<128x128xbf16>
    %c0_16 = arith.constant 0 : index
    %c0_17 = arith.constant 0 : index
    %27 = vector.load %arg12[%c0_16, %c0_17] : memref<128x64xbf16, #tpu.memory_space<vmem>>, vector<128x64xbf16>
    %cst_18 = arith.constant dense<0.000000e+00> : vector<128x64xf32>
    %28 = tpu.matmul %26, %27, %cst_18 {dimension_numbers = #tpu.dot_dimension_numbers<[1], [0], [0], [1], [0, 0, 1, 1], [], []>} : vector<128x128xbf16>, vector<128x64xbf16>, vector<128x64xf32> -> vector<128x64xf32>
    %c0_19 = arith.constant 0 : index
    %c0_20 = arith.constant 0 : index
    %c0_21 = arith.constant 0 : index
    %29 = vector.load %arg8[%c0_19, %c0_20, %c0_21] : memref<4x128x1xf32, #tpu.memory_space<vmem>>, vector<1x128x1xf32>
    %30 = vector.shape_cast %29 : vector<1x128x1xf32> to vector<128x1xf32>
    %31 = vector.broadcast %30 : vector<128x1xf32> to vector<128x64xf32>
    %32 = arith.addf %28, %31 : vector<128x64xf32>
    %33 = arith.truncf %32 : vector<128x64xf32> to vector<128x64xbf16>
    %c0_22 = arith.constant 0 : index
    %c0_23 = arith.constant 0 : index
    %34 = vector.load %arg12[%c0_22, %c0_23] : memref<128x64xbf16, #tpu.memory_space<vmem>>, vector<128x64xbf16>
    tpu.vector_store %arg12[%c0_22, %c0_23], %33 {strides = array<i32>} : memref<128x64xbf16, #tpu.memory_space<vmem>>, vector<128x64xbf16>,
    %c1 = arith.constant 1 : index
    %c0_24 = arith.constant 0 : index
    %c0_25 = arith.constant 0 : index
    %35 = vector.load %arg7[%c1, %c0_24, %c0_25] : memref<4x128x128xbf16, #tpu.memory_space<vmem>>, vector<1x128x128xbf16>
    %36 = vector.shape_cast %35 : vector<1x128x128xbf16> to vector<128x128xbf16>
    %c0_26 = arith.constant 0 : index
    %c0_27 = arith.constant 0 : index
    %37 = vector.load %arg12[%c0_26, %c0_27] : memref<128x64xbf16, #tpu.memory_space<vmem>>, vector<128x64xbf16>
    %cst_28 = arith.constant dense<0.000000e+00> : vector<128x64xf32>
    %38 = tpu.matmul %36, %37, %cst_28 {dimension_numbers = #tpu.dot_dimension_numbers<[1], [0], [0], [1], [0, 0, 1, 1], [], []>} : vector<128x128xbf16>, vector<128x64xbf16>, vector<128x64xf32> -> vector<128x64xf32>
    %c1_29 = arith.constant 1 : index
    %c0_30 = arith.constant 0 : index
    %c0_31 = arith.constant 0 : index
    %39 = vector.load %arg8[%c1_29, %c0_30, %c0_31] : memref<4x128x1xf32, #tpu.memory_space<vmem>>, vector<1x128x1xf32>
    %40 = vector.shape_cast %39 : vector<1x128x1xf32> to vector<128x1xf32>
    %41 = vector.broadcast %40 : vector<128x1xf32> to vector<128x64xf32>
    %42 = arith.addf %38, %41 : vector<128x64xf32>
    %43 = arith.truncf %42 : vector<128x64xf32> to vector<128x64xbf16>
    %c0_32 = arith.constant 0 : index
    %c0_33 = arith.constant 0 : index
    %44 = vector.load %arg12[%c0_32, %c0_33] : memref<128x64xbf16, #tpu.memory_space<vmem>>, vector<128x64xbf16>
    tpu.vector_store %arg12[%c0_32, %c0_33], %43 {strides = array<i32>} : memref<128x64xbf16, #tpu.memory_space<vmem>>, vector<128x64xbf16>,
    %c2 = arith.constant 2 : index
    %c0_34 = arith.constant 0 : index
    %c0_35 = arith.constant 0 : index
    %45 = vector.load %arg7[%c2, %c0_34, %c0_35] : memref<4x128x128xbf16, #tpu.memory_space<vmem>>, vector<1x128x128xbf16>
    %46 = vector.shape_cast %45 : vector<1x128x128xbf16> to vector<128x128xbf16>
    %c0_36 = arith.constant 0 : index
    %c0_37 = arith.constant 0 : index
    %47 = vector.load %arg12[%c0_36, %c0_37] : memref<128x64xbf16, #tpu.memory_space<vmem>>, vector<128x64xbf16>
    %cst_38 = arith.constant dense<0.000000e+00> : vector<128x64xf32>
    %48 = tpu.matmul %46, %47, %cst_38 {dimension_numbers = #tpu.dot_dimension_numbers<[1], [0], [0], [1], [0, 0, 1, 1], [], []>} : vector<128x128xbf16>, vector<128x64xbf16>, vector<128x64xf32> -> vector<128x64xf32>
    %c2_39 = arith.constant 2 : index
    %c0_40 = arith.constant 0 : index
    %c0_41 = arith.constant 0 : index
    %49 = vector.load %arg8[%c2_39, %c0_40, %c0_41] : memref<4x128x1xf32, #tpu.memory_space<vmem>>, vector<1x128x1xf32>
    %50 = vector.shape_cast %49 : vector<1x128x1xf32> to vector<128x1xf32>
    %51 = vector.broadcast %50 : vector<128x1xf32> to vector<128x64xf32>
    %52 = arith.addf %48, %51 : vector<128x64xf32>
    %53 = arith.truncf %52 : vector<128x64xf32> to vector<128x64xbf16>
    %c0_42 = arith.constant 0 : index
    %c0_43 = arith.constant 0 : index
    %54 = vector.load %arg12[%c0_42, %c0_43] : memref<128x64xbf16, #tpu.memory_space<vmem>>, vector<128x64xbf16>
    tpu.vector_store %arg12[%c0_42, %c0_43], %53 {strides = array<i32>} : memref<128x64xbf16, #tpu.memory_space<vmem>>, vector<128x64xbf16>,
    %c3 = arith.constant 3 : index
    %c0_44 = arith.constant 0 : index
    %c0_45 = arith.constant 0 : index
    %55 = vector.load %arg7[%c3, %c0_44, %c0_45] : memref<4x128x128xbf16, #tpu.memory_space<vmem>>, vector<1x128x128xbf16>
    %56 = vector.shape_cast %55 : vector<1x128x128xbf16> to vector<128x128xbf16>
    %c0_46 = arith.constant 0 : index
    %c0_47 = arith.constant 0 : index
    %57 = vector.load %arg12[%c0_46, %c0_47] : memref<128x64xbf16, #tpu.memory_space<vmem>>, vector<128x64xbf16>
    %cst_48 = arith.constant dense<0.000000e+00> : vector<128x64xf32>
    %58 = tpu.matmul %56, %57, %cst_48 {dimension_numbers = #tpu.dot_dimension_numbers<[1], [0], [0], [1], [0, 0, 1, 1], [], []>} : vector<128x128xbf16>, vector<128x64xbf16>, vector<128x64xf32> -> vector<128x64xf32>
    %c3_49 = arith.constant 3 : index
    %c0_50 = arith.constant 0 : index
    %c0_51 = arith.constant 0 : index
    %59 = vector.load %arg8[%c3_49, %c0_50, %c0_51] : memref<4x128x1xf32, #tpu.memory_space<vmem>>, vector<1x128x1xf32>
    %60 = vector.shape_cast %59 : vector<1x128x1xf32> to vector<128x1xf32>
    %61 = vector.broadcast %60 : vector<128x1xf32> to vector<128x64xf32>
    %62 = arith.addf %58, %61 : vector<128x64xf32>
    %63 = arith.truncf %62 : vector<128x64xf32> to vector<128x64xbf16>
    %c0_52 = arith.constant 0 : index
    %c0_53 = arith.constant 0 : index
    %64 = vector.load %arg12[%c0_52, %c0_53] : memref<128x64xbf16, #tpu.memory_space<vmem>>, vector<128x64xbf16>
    tpu.vector_store %arg12[%c0_52, %c0_53], %63 {strides = array<i32>} : memref<128x64xbf16, #tpu.memory_space<vmem>>, vector<128x64xbf16>,
    %c0_54 = arith.constant 0 : index
    %c0_55 = arith.constant 0 : index
    %65 = vector.load %arg9[%c0_54, %c0_55] : memref<1x128xbf16, #tpu.memory_space<vmem>>, vector<1x128xbf16>
    %c0_56 = arith.constant 0 : index
    %c0_57 = arith.constant 0 : index
    %66 = vector.load %arg12[%c0_56, %c0_57] : memref<128x64xbf16, #tpu.memory_space<vmem>>, vector<128x64xbf16>
    %cst_58 = arith.constant dense<0.000000e+00> : vector<1x64xf32>
    %67 = tpu.matmul %65, %66, %cst_58 {dimension_numbers = #tpu.dot_dimension_numbers<[1], [0], [0], [1], [0, 0, 1, 1], [], []>} : vector<1x128xbf16>, vector<128x64xbf16>, vector<1x64xf32> -> vector<1x64xf32>
    %c0_59 = arith.constant 0 : index
    %c0_60 = arith.constant 0 : index
    %68 = vector.load %arg10[%c0_59, %c0_60] : memref<1x1xf32, #tpu.memory_space<vmem>>, vector<1x1xf32>
    %69 = vector.broadcast %68 : vector<1x1xf32> to vector<1x64xf32>
    %70 = arith.addf %67, %69 : vector<1x64xf32>
    %c0_61 = arith.constant 0 : index
    %c0_62 = arith.constant 0 : index
    %c0_63 = arith.constant 0 : index
    %71 = vector.load %arg11[%c0_61, %c0_62, %c0_63] : memref<1x1x64xf32, #tpu.memory_space<vmem>>, vector<1x1x64xf32>
    %72 = vector.shape_cast %71 : vector<1x1x64xf32> to vector<1x64xf32>
    %73 = vector.shape_cast %70 : vector<1x64xf32> to vector<1x1x64xf32>
    tpu.vector_store %arg11[%c0_61, %c0_62, %c0_63], %73 {strides = array<i32>} : memref<1x1x64xf32, #tpu.memory_space<vmem>>, vector<1x1x64xf32>,
    return
  }
  func.func @transform_0(%arg0: i32, %arg1: i32) -> (i32, i32, i32) {
    %c0_i32 = arith.constant 0 : i32
    %c0_i32_0 = arith.constant 0 : i32
    return %arg0, %c0_i32, %arg1 : i32, i32, i32
  }
  func.func @transform_1(%arg0: i32, %arg1: i32) -> (i32, i32, i32) {
    %c0_i32 = arith.constant 0 : i32
    %c0_i32_0 = arith.constant 0 : i32
    %c0_i32_1 = arith.constant 0 : i32
    return %arg0, %c0_i32, %c0_i32_0 : i32, i32, i32
  }
  func.func @transform_2(%arg0: i32, %arg1: i32) -> (i32, i32) {
    %c0_i32 = arith.constant 0 : i32
    %c0_i32_0 = arith.constant 0 : i32
    %c0_i32_1 = arith.constant 0 : i32
    return %c0_i32, %c0_i32_0 : i32, i32
  }
  func.func @transform_3(%arg0: i32, %arg1: i32) -> (i32, i32) {
    %c0_i32 = arith.constant 0 : i32
    %c0_i32_0 = arith.constant 0 : i32
    %c0_i32_1 = arith.constant 0 : i32
    return %c0_i32, %c0_i32_0 : i32, i32
  }
  func.func @transform_4(%arg0: i32, %arg1: i32) -> (i32, i32) {
    %c0_i32 = arith.constant 0 : i32
    %c0_i32_0 = arith.constant 0 : i32
    %c0_i32_1 = arith.constant 0 : i32
    return %c0_i32, %c0_i32_0 : i32, i32
  }
  func.func @transform_5(%arg0: i32, %arg1: i32) -> (i32, i32, i32) {
    %c0_i32 = arith.constant 0 : i32
    %c0_i32_0 = arith.constant 0 : i32
    %c0_i32_1 = arith.constant 0 : i32
    %c0_i32_2 = arith.constant 0 : i32
    return %c0_i32, %c0_i32_0, %c0_i32_1 : i32, i32, i32
  }
  func.func @transform_6(%arg0: i32, %arg1: i32) -> (i32, i32, i32) {
    %c0_i32 = arith.constant 0 : i32
    %c0_i32_0 = arith.constant 0 : i32
    %c0_i32_1 = arith.constant 0 : i32
    %c0_i32_2 = arith.constant 0 : i32
    return %c0_i32, %c0_i32_0, %c0_i32_1 : i32, i32, i32
  }
  func.func @transform_7(%arg0: i32, %arg1: i32) -> (i32, i32) {
    %c0_i32 = arith.constant 0 : i32
    %c0_i32_0 = arith.constant 0 : i32
    %c0_i32_1 = arith.constant 0 : i32
    return %c0_i32, %c0_i32_0 : i32, i32
  }
  func.func @transform_8(%arg0: i32, %arg1: i32) -> (i32, i32) {
    %c0_i32 = arith.constant 0 : i32
    %c0_i32_0 = arith.constant 0 : i32
    %c0_i32_1 = arith.constant 0 : i32
    return %c0_i32, %c0_i32_0 : i32, i32
  }
  func.func @transform_9(%arg0: i32, %arg1: i32) -> (i32, i32, i32) {
    %c0_i32 = arith.constant 0 : i32
    %c0_i32_0 = arith.constant 0 : i32
    return %arg0, %c0_i32, %arg1 : i32, i32, i32
  }
}

</mosaic_0001>

<llo_original>
// kernel: tpu_custom_call.1
$region0: #{tpu_custom_call.1}
  #allocation0 [shape = 'u32[]', space=smem, size = 0x4, offset = 0x4, fixed_abs, tag = 'smem constant byte address 0x4 - core index']
  #allocation1 [shape = 'u32[144,128]{1,0:T(1,128)}', space=vmem, size = 0x12000, scoped, tag = 'internal scratch']
  #allocation2 [shape = 'bf16[128,64]{1,0:T(16,128)(2,1)}', space=vmem, size = 0x8000, scoped, tag = 'scratch operand']
  #allocation3 [shape = 'f32[1,1]{1,0:T(1,128)S(1)}', space=vmem, size = 0x200, scoped, tag = 'scoped memory for tpu_custom_call.1']
  %s0 = inlined_call_operand.vmem [shape: f32[2,2,64], index: 0, kind: input, shape index: {}]
  %s1 = inlined_call_operand.vmem [shape: f32[2,128,1], index: 1, kind: input, shape index: {}]
  %s2 = inlined_call_operand.vmem [shape: f32[8,1], index: 2, kind: input, shape index: {}]
  %s3 = inlined_call_operand.vmem [shape: f32[8,1], index: 3, kind: input, shape index: {}]
  %s4 = inlined_call_operand.vmem [shape: bf16[128,16], index: 4, kind: input, shape index: {}]
  %s5 = inlined_call_operand.vmem [shape: bf16[4,128,128], index: 5, kind: input, shape index: {}]
  %s6 = inlined_call_operand.vmem [shape: f32[4,128,1], index: 6, kind: input, shape index: {}]
  %s7 = inlined_call_operand.vmem [shape: bf16[1,128], index: 7, kind: input, shape index: {}]
  %s8 = inlined_call_operand.<no memory space> [shape: f32[1,1], index: 8, kind: input, shape index: {}]
  %s9 = inlined_call_operand.hbm [shape: f32[2,1,64], index: 9, kind: output, shape index: {}]
  %s10 = sld [smem:[#allocation0]]
  $region69: #{tpu_custom_call.1} parent=0
    _
  %s12 = ssub.s32 1, %s10
  %s13 = scalar_select 0, %s12, %s10
  %v14 = vstv %s8
  %15 = vst [vmem:[#allocation3] sm:$0x1] %v14
  $region1: #{tpu_custom_call.1} parent=0
    #allocation4 [shape = 'u8[1024]{0}', space=vmem, size = 0x400, scoped, tag = 'output window, operand 0']
    #allocation5 [shape = 's32[2]{0}', space=sflag, size = 0x8, scoped, tag = 'scoped memory for tpu_custom_call.1']
    %16 = vsyncpa [#allocation5], 0
    %s17 = scalar_lea.sflag [#allocation5], 1
    %18 = vsyncpa %s17, 0
    loop: start=0, step=1, limit=4
    $region2: #{tpu_custom_call.1} parent=1 // loop_pre_header
      _
    $region3: #{tpu_custom_call.1} parent=1 // loop_header
      %s20 = sphi 0, %s24
      %p21 = scmp.ge.s32.totalorder %s20, 4
      %s27 = sphi 0, %s39
      %s28 = sphi 0, %s35
      %s29 = sphi 0, %s27
      %s30 = sphi 0, %s28
      %s31 = sphi 0, %s29
      %s32 = sphi 0, %s30
      %s44 = sphi 0, %s46
      %s47 = sphi 0, %s44
      %s48 = sphi 0, %s47
      %s64 = sphi 0, %s48
      %s70 = sphi 0, %s72
      %s73 = sphi 0, %s70
      %s74 = sphi 0, %s73
      %s90 = sphi 0, %s74
      %s94 = sphi 0, %s94
      %s96 = sphi 0, %s94
      %s97 = sphi 0, %s96
      %s111 = sphi 0, %s97
      %s115 = sphi 0, %s115
      %s117 = sphi 0, %s115
      %s118 = sphi 0, %s117
      %s132 = sphi 0, %s118
      %s136 = sphi 0, %s136
      %s138 = sphi 0, %s136
      %s139 = sphi 0, %s138
      %s153 = sphi 0, %s139
      %s157 = sphi 0, %s157
      %s159 = sphi 0, %s157
      %s160 = sphi 0, %s159
      %s174 = sphi 0, %s160
      %s178 = sphi 0, %s178
      %s180 = sphi 0, %s178
      %s181 = sphi 0, %s180
      %s195 = sphi 0, %s181
      %s199 = sphi 0, %s199
      %s201 = sphi 0, %s199
      %s202 = sphi 0, %s201
      %s216 = sphi 0, %s202
      %s220 = sphi 0, %s220
      %s222 = sphi 0, %s220
      %s223 = sphi 0, %s222
      %s237 = sphi 0, %s223
      %s245 = sphi 0, %s247
      %s248 = sphi 0, %s245
      %s249 = sphi 0, %s248
      %s265 = sphi 0, %s249
    $region4: #{tpu_custom_call.1} parent=1 // loop_header_branch
      %23 = sbr.rel (%p21) target = $region8
    $region5: #{tpu_custom_call.1} parent=1 // loop_body
      %s25 = ssub.s32 %s20, 1
      %s26 = ssub.s32 %s20, 2
      %s33 = sadd.s32 1, %s28
      %p34 = scmp.ge.s32.totalorder %s33, 1
      %s35 = scalar_select %p34, 0, %s33
      %s36 = sadd.s32 1, %s27
      %s37 = scalar_select %p34, %s36, %s27
      %p38 = scmp.ge.s32.totalorder %s37, 2
      %s39 = scalar_select %p38, 0, %s37
      %s40 = ssub.s32 %s27, %s39
      %s41 = ssub.s32 %s28, %s35
      %s42 = sor.u32 %s40, %s41
      %p43 = scmp.eq.s32.totalorder %s42, 0
      %s45 = sadd.s32 %s44, 1
      %s46 = scalar_select %p43, %s44, %s45
      %p49 = pneg %p43
      %p50 = scmp.eq.s32.totalorder %s20, 1
      %p51 = por %p49, %p50
      %p52 = scmp.ne.s32.totalorder %s44, %s47
      %p53 = scmp.eq.s32.totalorder %s20, 0
      %p54 = por %p52, %p53
      %p55 = scmp.ne.s32.totalorder %s44, %s47
      %p56 = scmp.eq.s32.totalorder %s25, 1
      %p57 = por %p55, %p56
      %p58 = scmp.ne.s32.totalorder %s47, %s48
      %p59 = scmp.eq.s32.totalorder %s25, 0
      %p60 = por %p58, %p59
      %p61 = scmp.ne.s32.totalorder %s47, %s48
      %p62 = scmp.eq.s32.totalorder %s26, 1
      %p63 = por %p61, %p62
      %p65 = scmp.ne.s32.totalorder %s48, %s64
      %p66 = scmp.eq.s32.totalorder %s26, 0
      %p67 = por %p65, %p66
      %s68 = ssub.s32 %s27, %s39
      %p69 = scmp.eq.s32.totalorder %s68, 0
      %s71 = sadd.s32 %s70, 1
      %s72 = scalar_select %p69, %s70, %s71
      %p75 = pneg %p69
      %p76 = scmp.eq.s32.totalorder %s20, 1
      %p77 = por %p75, %p76
      %p78 = scmp.ne.s32.totalorder %s70, %s73
      %p79 = scmp.eq.s32.totalorder %s20, 0
      %p80 = por %p78, %p79
      %p81 = scmp.ne.s32.totalorder %s70, %s73
      %p82 = scmp.eq.s32.totalorder %s25, 1
      %p83 = por %p81, %p82
      %p84 = scmp.ne.s32.totalorder %s73, %s74
      %p85 = scmp.eq.s32.totalorder %s25, 0
      %p86 = por %p84, %p85
      %p87 = scmp.ne.s32.totalorder %s73, %s74
      %p88 = scmp.eq.s32.totalorder %s26, 1
      %p89 = por %p87, %p88
      %p91 = scmp.ne.s32.totalorder %s74, %s90
      %p92 = scmp.eq.s32.totalorder %s26, 0
      %p93 = por %p91, %p92
      %s95 = sadd.s32 %s94, 1
      %p98 = scmp.eq.s32.totalorder %s20, 1
      %p99 = scmp.ne.s32.totalorder %s94, %s96
      %p100 = scmp.eq.s32.totalorder %s20, 0
      %p101 = por %p99, %p100
      %p102 = scmp.ne.s32.totalorder %s94, %s96
      %p103 = scmp.eq.s32.totalorder %s25, 1
      %p104 = por %p102, %p103
      %p105 = scmp.ne.s32.totalorder %s96, %s97
      %p106 = scmp.eq.s32.totalorder %s25, 0
      %p107 = por %p105, %p106
      %p108 = scmp.ne.s32.totalorder %s96, %s97
      %p109 = scmp.eq.s32.totalorder %s26, 1
      %p110 = por %p108, %p109
      %p112 = scmp.ne.s32.totalorder %s97, %s111
      %p113 = scmp.eq.s32.totalorder %s26, 0
      %p114 = por %p112, %p113
      %s116 = sadd.s32 %s115, 1
      %p119 = scmp.eq.s32.totalorder %s20, 1
      %p120 = scmp.ne.s32.totalorder %s115, %s117
      %p121 = scmp.eq.s32.totalorder %s20, 0
      %p122 = por %p120, %p121
      %p123 = scmp.ne.s32.totalorder %s115, %s117
      %p124 = scmp.eq.s32.totalorder %s25, 1
      %p125 = por %p123, %p124
      %p126 = scmp.ne.s32.totalorder %s117, %s118
      %p127 = scmp.eq.s32.totalorder %s25, 0
      %p128 = por %p126, %p127
      %p129 = scmp.ne.s32.totalorder %s117, %s118
      %p130 = scmp.eq.s32.totalorder %s26, 1
      %p131 = por %p129, %p130
      %p133 = scmp.ne.s32.totalorder %s118, %s132
      %p134 = scmp.eq.s32.totalorder %s26, 0
      %p135 = por %p133, %p134
      %s137 = sadd.s32 %s136, 1
      %p140 = scmp.eq.s32.totalorder %s20, 1
      %p141 = scmp.ne.s32.totalorder %s136, %s138
      %p142 = scmp.eq.s32.totalorder %s20, 0
      %p143 = por %p141, %p142
      %p144 = scmp.ne.s32.totalorder %s136, %s138
      %p145 = scmp.eq.s32.totalorder %s25, 1
      %p146 = por %p144, %p145
      %p147 = scmp.ne.s32.totalorder %s138, %s139
      %p148 = scmp.eq.s32.totalorder %s25, 0
      %p149 = por %p147, %p148
      %p150 = scmp.ne.s32.totalorder %s138, %s139
      %p151 = scmp.eq.s32.totalorder %s26, 1
      %p152 = por %p150, %p151
      %p154 = scmp.ne.s32.totalorder %s139, %s153
      %p155 = scmp.eq.s32.totalorder %s26, 0
      %p156 = por %p154, %p155
      %s158 = sadd.s32 %s157, 1
      %p161 = scmp.eq.s32.totalorder %s20, 1
      %p162 = scmp.ne.s32.totalorder %s157, %s159
      %p163 = scmp.eq.s32.totalorder %s20, 0
      %p164 = por %p162, %p163
      %p165 = scmp.ne.s32.totalorder %s157, %s159
      %p166 = scmp.eq.s32.totalorder %s25, 1
      %p167 = por %p165, %p166
      %p168 = scmp.ne.s32.totalorder %s159, %s160
      %p169 = scmp.eq.s32.totalorder %s25, 0
      %p170 = por %p168, %p169
      %p171 = scmp.ne.s32.totalorder %s159, %s160
      %p172 = scmp.eq.s32.totalorder %s26, 1
      %p173 = por %p171, %p172
      %p175 = scmp.ne.s32.totalorder %s160, %s174
      %p176 = scmp.eq.s32.totalorder %s26, 0
      %p177 = por %p175, %p176
      %s179 = sadd.s32 %s178, 1
      %p182 = scmp.eq.s32.totalorder %s20, 1
      %p183 = scmp.ne.s32.totalorder %s178, %s180
      %p184 = scmp.eq.s32.totalorder %s20, 0
      %p185 = por %p183, %p184
      %p186 = scmp.ne.s32.totalorder %s178, %s180
      %p187 = scmp.eq.s32.totalorder %s25, 1
      %p188 = por %p186, %p187
      %p189 = scmp.ne.s32.totalorder %s180, %s181
      %p190 = scmp.eq.s32.totalorder %s25, 0
      %p191 = por %p189, %p190
      %p192 = scmp.ne.s32.totalorder %s180, %s181
      %p193 = scmp.eq.s32.totalorder %s26, 1
      %p194 = por %p192, %p193
      %p196 = scmp.ne.s32.totalorder %s181, %s195
      %p197 = scmp.eq.s32.totalorder %s26, 0
      %p198 = por %p196, %p197
      %s200 = sadd.s32 %s199, 1
      %p203 = scmp.eq.s32.totalorder %s20, 1
      %p204 = scmp.ne.s32.totalorder %s199, %s201
      %p205 = scmp.eq.s32.totalorder %s20, 0
      %p206 = por %p204, %p205
      %p207 = scmp.ne.s32.totalorder %s199, %s201
      %p208 = scmp.eq.s32.totalorder %s25, 1
      %p209 = por %p207, %p208
      %p210 = scmp.ne.s32.totalorder %s201, %s202
      %p211 = scmp.eq.s32.totalorder %s25, 0
      %p212 = por %p210, %p211
      %p213 = scmp.ne.s32.totalorder %s201, %s202
      %p214 = scmp.eq.s32.totalorder %s26, 1
      %p215 = por %p213, %p214
      %p217 = scmp.ne.s32.totalorder %s202, %s216
      %p218 = scmp.eq.s32.totalorder %s26, 0
      %p219 = por %p217, %p218
      %s221 = sadd.s32 %s220, 1
      %p224 = scmp.eq.s32.totalorder %s20, 1
      %p225 = scmp.ne.s32.totalorder %s220, %s222
      %p226 = scmp.eq.s32.totalorder %s20, 0
      %p227 = por %p225, %p226
      %p228 = scmp.ne.s32.totalorder %s220, %s222
      %p229 = scmp.eq.s32.totalorder %s25, 1
      %p230 = por %p228, %p229
      %p231 = scmp.ne.s32.totalorder %s222, %s223
      %p232 = scmp.eq.s32.totalorder %s25, 0
      %p233 = por %p231, %p232
      %p234 = scmp.ne.s32.totalorder %s222, %s223
      %p235 = scmp.eq.s32.totalorder %s26, 1
      %p236 = por %p234, %p235
      %p238 = scmp.ne.s32.totalorder %s223, %s237
      %p239 = scmp.eq.s32.totalorder %s26, 0
      %p240 = por %p238, %p239
      %s241 = ssub.s32 %s27, %s39
      %s242 = ssub.s32 %s28, %s35
      %s243 = sor.u32 %s241, %s242
      %p244 = scmp.eq.s32.totalorder %s243, 0
      %s246 = sadd.s32 %s245, 1
      %s247 = scalar_select %p244, %s245, %s246
      %p250 = pneg %p244
      %p251 = scmp.eq.s32.totalorder %s20, 1
      %p252 = por %p250, %p251
      %p253 = scmp.ne.s32.totalorder %s245, %s248
      %p254 = scmp.eq.s32.totalorder %s20, 0
      %p255 = por %p253, %p254
      %p256 = scmp.ne.s32.totalorder %s245, %s248
      %p257 = scmp.eq.s32.totalorder %s25, 1
      %p258 = por %p256, %p257
      %p259 = scmp.ne.s32.totalorder %s248, %s249
      %p260 = scmp.eq.s32.totalorder %s25, 0
      %p261 = por %p259, %p260
      %p262 = scmp.ne.s32.totalorder %s248, %s249
      %p263 = scmp.eq.s32.totalorder %s26, 1
      %p264 = por %p262, %p263
      %p266 = scmp.ne.s32.totalorder %s249, %s265
      %p267 = scmp.eq.s32.totalorder %s26, 0
      %p268 = por %p266, %p267
      %p269 = scmp.le.s32.totalorder 1, %s20
      %p270 = scmp.lt.s32.totalorder %s20, 3
      %p271 = pnand %p269, %p270
      %p272 = pneg %p271
      // Predicated region
      $region9: #{tpu_custom_call.1} parent=5 // pred_check
        _
      $region10: #{tpu_custom_call.1} parent=5 // pred_check_branch
        %274 = sbr.rel (%p271) target = $region12
      $region11: #{tpu_custom_call.1} parent=5 // pred_region
        %s275 = ssub.s32 %s20, 1
        // Predicated region
        $region13: #{tpu_custom_call.1} parent=11 // pred_check
          %p276 = pneg %p107
        $region14: #{tpu_custom_call.1} parent=11 // pred_check_branch
          %278 = sbr.rel (%p276) target = $region16
        $region15: #{tpu_custom_call.1} parent=11 // pred_region
          _
        $region16: #{tpu_custom_call.1} parent=11 // pred_fallthru
          _
        // Predicated region
        $region17: #{tpu_custom_call.1} parent=11 // pred_check
          %p279 = pneg %p128
        $region18: #{tpu_custom_call.1} parent=11 // pred_check_branch
          %281 = sbr.rel (%p279) target = $region20
        $region19: #{tpu_custom_call.1} parent=11 // pred_region
          _
        $region20: #{tpu_custom_call.1} parent=11 // pred_fallthru
          _
        // Predicated region
        $region21: #{tpu_custom_call.1} parent=11 // pred_check
          %p282 = pneg %p149
        $region22: #{tpu_custom_call.1} parent=11 // pred_check_branch
          %284 = sbr.rel (%p282) target = $region24
        $region23: #{tpu_custom_call.1} parent=11 // pred_region
          _
        $region24: #{tpu_custom_call.1} parent=11 // pred_fallthru
          _
        // Predicated region
        $region25: #{tpu_custom_call.1} parent=11 // pred_check
          %p285 = pneg %p170
        $region26: #{tpu_custom_call.1} parent=11 // pred_check_branch
          %287 = sbr.rel (%p285) target = $region28
        $region27: #{tpu_custom_call.1} parent=11 // pred_region
          _
        $region28: #{tpu_custom_call.1} parent=11 // pred_fallthru
          _
        // Predicated region
        $region29: #{tpu_custom_call.1} parent=11 // pred_check
          %p288 = pneg %p191
        $region30: #{tpu_custom_call.1} parent=11 // pred_check_branch
          %290 = sbr.rel (%p288) target = $region32
        $region31: #{tpu_custom_call.1} parent=11 // pred_region
          _
        $region32: #{tpu_custom_call.1} parent=11 // pred_fallthru
          _
        // Predicated region
        $region33: #{tpu_custom_call.1} parent=11 // pred_check
          %p291 = pneg %p212
        $region34: #{tpu_custom_call.1} parent=11 // pred_check_branch
          %293 = sbr.rel (%p291) target = $region36
        $region35: #{tpu_custom_call.1} parent=11 // pred_region
          _
        $region36: #{tpu_custom_call.1} parent=11 // pred_fallthru
          _
        // Predicated region
        $region37: #{tpu_custom_call.1} parent=11 // pred_check
          %p294 = pneg %p233
        $region38: #{tpu_custom_call.1} parent=11 // pred_check_branch
          %296 = sbr.rel (%p294) target = $region40
        $region39: #{tpu_custom_call.1} parent=11 // pred_region
          _
        $region40: #{tpu_custom_call.1} parent=11 // pred_fallthru
          _
      $region12: #{tpu_custom_call.1} parent=5 // pred_fallthru
        _
      %p297 = scmp.lt.s32.totalorder %s20, 2
      // Predicated region
      $region41: #{tpu_custom_call.1} parent=5 // pred_check
        %p298 = pneg %p297
      $region42: #{tpu_custom_call.1} parent=5 // pred_check_branch
        %300 = sbr.rel (%p298) target = $region44
      $region43: #{tpu_custom_call.1} parent=5 // pred_region
        // Predicated region
        $region45: #{tpu_custom_call.1} parent=43 // pred_check
          %p301 = pneg %p54
        $region46: #{tpu_custom_call.1} parent=43 // pred_check_branch
          %303 = sbr.rel (%p301) target = $region48
        $region47: #{tpu_custom_call.1} parent=43 // pred_region
          %p304 = scmp.lt.s32.totalorder %s27, 1
          %s305 = scalar_select %p304, %s27, 1
          %p306 = scmp.lt.s32.totalorder %s28, 0
          %s307 = scalar_select %p306, %s28, 0
          %s308 = sadd.s32 %s307, %s305
          %s309 = smul.addr %s308, 2
          %s310 = scalar_lea.vmem %s0, %s309
        $region48: #{tpu_custom_call.1} parent=43 // pred_fallthru
          _
        // Predicated region
        $region49: #{tpu_custom_call.1} parent=43 // pred_check
          %p311 = pneg %p80
        $region50: #{tpu_custom_call.1} parent=43 // pred_check_branch
          %313 = sbr.rel (%p311) target = $region52
        $region51: #{tpu_custom_call.1} parent=43 // pred_region
          %p314 = scmp.lt.s32.totalorder %s27, 1
          %s315 = scalar_select %p314, %s27, 1
          %s316 = smul.addr %s315, 16
          %s317 = smul.addr %s316, 8
          %s318 = scalar_lea.vmem %s1, %s317
        $region52: #{tpu_custom_call.1} parent=43 // pred_fallthru
          _
      $region44: #{tpu_custom_call.1} parent=5 // pred_fallthru
        _
      %p319 = scmp.le.s32.totalorder 1, %s20
      %p320 = scmp.lt.s32.totalorder %s20, 3
      %p321 = pnand %p319, %p320
      %p322 = pneg %p321
      // Predicated region
      $region53: #{tpu_custom_call.1} parent=5 // pred_check
        _
      $region54: #{tpu_custom_call.1} parent=5 // pred_check_branch
        %324 = sbr.rel (%p321) target = $region56
      $region55: #{tpu_custom_call.1} parent=5 // pred_region
        %s325 = ssub.s32 %s20, 1
        %p326 = scmp.lt.s32.totalorder %s29, 1
        %s327 = scalar_select %p326, %s29, 1
        %p328 = scmp.lt.s32.totalorder %s30, 0
        %s329 = scalar_select %p328, %s30, 0
        %s330 = sadd.s32 %s329, %s327
        %s331 = smul.addr %s330, 2
        %s332 = scalar_lea.vmem %s0, %s331
        %p333 = pneg %p60
        %p334 = pneg %p57
        %p335 = scmp.lt.s32.totalorder %s29, 1
        %s336 = scalar_select %p335, %s29, 1
        %s337 = smul.addr %s336, 16
        %s338 = smul.addr %s337, 8
        %s339 = scalar_lea.vmem %s1, %s338
        %p340 = pneg %p86
        %p341 = pneg %p83
        %p342 = pneg %p107
        %p343 = pneg %p104
        %p344 = pneg %p128
        %p345 = pneg %p125
        %p346 = pneg %p149
        %p347 = pneg %p146
        %p348 = pneg %p170
        %p349 = pneg %p167
        %p350 = pneg %p191
        %p351 = pneg %p188
        %p352 = pneg %p212
        %p353 = pneg %p209
        %p354 = pneg %p233
        %p355 = pneg %p230
        %p356 = pneg %p261
        %p357 = pneg %p258
        %s358 = sand.u32 %s248, 1
        %s359 = scalar_lea.sflag [#allocation5], %s358
        %s360 = sand.u32 %s248, 1
        %s361 = scalar_lea.vmem [#allocation4], %s360
        %p362 = scmp.lt.s32.totalorder %s29, 1
        %s363 = scalar_select %p362, %s29, 1
        %p364 = scmp.lt.s32.totalorder %s30, 0
        %s365 = scalar_select %p364, %s30, 0
        %s366 = sadd.s32 %s365, %s363
        %s367 = smul.addr %s366, 2
        %s368 = scalar_lea.vmem %s0, %s367
        %p369 = scmp.lt.s32.totalorder %s29, 1
        %s370 = scalar_select %p369, %s29, 1
        %s371 = smul.addr %s370, 16
        %s372 = smul.addr %s371, 8
        %s373 = scalar_lea.vmem %s1, %s372
        %v375 = vld [vmem:[%s368] sm:$0x3]
        %v376 = vld [vmem:[%s2] sm:$0xff]
        %378 = vset.pattern.permute.xlu0 0
        %379 = vperm.xlu0 %378, %v376
        %v380 = vpop.permute.xlu0 %379
        %v382 = vlaneseq
        %v383 = vshrl.u32 %v382, 7
        %v384 = vsub.s32 0, %v383
        %v385 = vrot.slane %v375, %v384
        %v386 = vmul.f32 %v380, %v385
        %v387 = vld [vmem:[%s3] sm:$0xff]
        %389 = vset.pattern.permute.xlu0 0
        %390 = vperm.xlu0 %389, %v387
        %v391 = vpop.permute.xlu0 %390
        %v393 = vlaneseq
        %v394 = vshrl.u32 %v393, 7
        %v395 = vsub.s32 1, %v394
        %v396 = vrot.slane %v375, %v395
        %v397 = vmul.f32 %v391, %v396
        %v398 = vadd.f32 %v386, %v397
        %v399 = vand.u32 2147483647, %v398
        %vm400 = vcmp.le.f32.partialorder %v399, 0.7853982
        %vm401 = vcmp.lt.s32.totalorder %v398, 0
        %v402 = vand.u32 %v398, 2139095040
        %v403 = vshrl.u32 %v402, 23
        %v404 = vsub.s32 %v403, 127
        %v405 = vand.u32 2147483647, %v398
        %v406 = vand.u32 %v405, 8388607
        %v407 = vor.u32 %v406, 8388608
        %v408 = vsub.s32 0, %v407
        %v409 = vadd.s32 %v404, 1
        %vm410 = vcmp.gt.s32.totalorder %v409, 0
        %v411 = vsel %vm410, %v409, 0
        %v412 = vshrl.u32 %v411, 5
        %v413 = vand.u32 %v411, 31
        %v414 = vsub.s32 32, %v413
        %v415 = vshrl.u32 683565275, %v414
        %v416 = vshll.u32 683565275, %v413
        %v417 = vshrl.u32 2475754826, %v414
        %v418 = vor.u32 %v416, %v417
        %v419 = vshll.u32 2475754826, %v413
        %v420 = vshrl.u32 2131351028, %v414
        %v421 = vor.u32 %v419, %v420
        %v422 = vshll.u32 2131351028, %v413
        %v423 = vshrl.u32 2102212464, %v414
        %v424 = vor.u32 %v422, %v423
        %v425 = vshll.u32 2102212464, %v413
        %v426 = vshrl.u32 920167782, %v414
        %v427 = vor.u32 %v425, %v426
        %v428 = vshll.u32 920167782, %v413
        %v429 = vshrl.u32 1326507024, %v414
        %v430 = vor.u32 %v428, %v429
        %vm431 = vcmp.lt.s32.totalorder %v412, 1
        %vm432 = vcmp.lt.s32.totalorder %v412, 2
        %vm433 = vcmp.lt.s32.totalorder %v412, 3
        %vm434 = vcmp.lt.s32.totalorder %v412, 4
        %v435 = vsel %vm431, %v415, %v418
        %v436 = vsel %vm434, %v424, 2102212464
        %v437 = vsel %vm433, %v421, %v436
        %v438 = vsel %vm432, %v435, %v437
        %v439 = vsel %vm431, %v418, %v421
        %v440 = vsel %vm434, %v427, 920167782
        %v441 = vsel %vm433, %v424, %v440
        %v442 = vsel %vm432, %v439, %v441
        %v443 = vsel %vm431, %v421, %v424
        %v444 = vsel %vm434, %v430, 1326507024
        %v445 = vsel %vm433, %v427, %v444
        %v446 = vsel %vm432, %v443, %v445
        %v447 = vshll.u32 %v407, 8
        %v448 = vmul.u32.u64.compose %v447, %v446
        %v449 = vextract.low.u32 %v448
        %v450 = vextract.high.u32 %v448
        %v451 = vmul.u32.u64.compose %v447, %v442
        %v452 = vextract.low.u32 %v451
        %v453 = vextract.high.u32 %v451
        %v454 = vmul.u32 %v447, %v438
        %v455 = vadd.s32 %v450, %v452
        %vm456 = vc.u32 %v450, %v452
        %v457 = vadd.s32 %v453, 1
        %v458 = vsel %vm456, %v457, %v453
        %v459 = vadd.s32 %v454, %v458
        %v460 = vadd.s32 %v459, 536870912
        %v461 = vshrl.u32 %v460, 30
        %v462 = vshll.u32 %v461, 30
        %v463 = vsub.s32 %v459, %v462
        %vm464 = vcmp.lt.s32.totalorder %v463, 0
        %v465 = vsub.s32 0, %v463
        %v466 = vsel %vm464, %v465, %v463
        %v467 = vclz %v466
        %v468 = vsub.s32 %v467, 2
        %vm469 = vcmp.gt.s32.totalorder 0, %v468
        %v470 = vsel %vm469, 0, %v468
        %v471 = vsub.s32 32, %v470
        %v472 = vshll.u32 %v463, %v470
        %v473 = vshrl.u32 %v455, %v471
        %v474 = vor.u32 %v472, %v473
        %v475 = vsub.s32 4294967266, %v470
        %v476 = vadd.s32 %v475, 127
        %v477 = vshll.u32 %v476, 23
        %v478 = vor.u32 4788187, %v477
        %v479 = vand.u32 2147483647, %v478
        %v481 = vcvt.s32.f32 %v474
        %v482 = vmul.f32 %v481, %v479
        %v483 = vxor.u32 %v482, 2147483648
        %v484 = vsel %vm401, %v483, %v482
        %v485 = vsub.s32 4, %v461
        %v486 = vsel %vm401, %v485, %v461
        %v487 = vsel %vm400, %v398, %v484
        %v488 = vsel %vm400, 0, %v486
        %v489 = vcosq.f32.pop %v487
        %v490 = vsinq.f32.pop %v487
        %vm491 = vweird.f32 %v398
        %v492 = vadd.s32 %v488, 3
        %v493 = vand.u32 %v492, 3
        %vm494 = vcmp.lt.s32.totalorder %v493, 2
        %vm495 = vcmp.eq.s32.totalorder %v493, 0
        %v496 = vxor.u32 %v490, 2147483648
        %v497 = vsel %vm495, %v489, %v496
        %vm498 = vcmp.eq.s32.totalorder %v493, 2
        %v499 = vxor.u32 %v489, 2147483648
        %v500 = vsel %vm498, %v499, %v490
        %v501 = vsel %vm494, %v497, %v500
        %v502 = vsel %vm491, nan, %v501
        %v503 = vand.u32 2147483647, %v398
        %vm504 = vcmp.le.f32.partialorder %v503, 0.7853982
        %vm505 = vcmp.lt.s32.totalorder %v398, 0
        %v506 = vand.u32 %v398, 2139095040
        %v507 = vshrl.u32 %v506, 23
        %v508 = vsub.s32 %v507, 127
        %v509 = vand.u32 2147483647, %v398
        %v510 = vand.u32 %v509, 8388607
        %v511 = vor.u32 %v510, 8388608
        %v512 = vsub.s32 0, %v511
        %v513 = vadd.s32 %v508, 1
        %vm514 = vcmp.gt.s32.totalorder %v513, 0
        %v515 = vsel %vm514, %v513, 0
        %v516 = vshrl.u32 %v515, 5
        %v517 = vand.u32 %v515, 31
        %v518 = vsub.s32 32, %v517
        %v519 = vshrl.u32 683565275, %v518
        %v520 = vshll.u32 683565275, %v517
        %v521 = vshrl.u32 2475754826, %v518
        %v522 = vor.u32 %v520, %v521
        %v523 = vshll.u32 2475754826, %v517
        %v524 = vshrl.u32 2131351028, %v518
        %v525 = vor.u32 %v523, %v524
        %v526 = vshll.u32 2131351028, %v517
        %v527 = vshrl.u32 2102212464, %v518
        %v528 = vor.u32 %v526, %v527
        %v529 = vshll.u32 2102212464, %v517
        %v530 = vshrl.u32 920167782, %v518
        %v531 = vor.u32 %v529, %v530
        %v532 = vshll.u32 920167782, %v517
        %v533 = vshrl.u32 1326507024, %v518
        %v534 = vor.u32 %v532, %v533
        %vm535 = vcmp.lt.s32.totalorder %v516, 1
        %vm536 = vcmp.lt.s32.totalorder %v516, 2
        %vm537 = vcmp.lt.s32.totalorder %v516, 3
        %vm538 = vcmp.lt.s32.totalorder %v516, 4
        %v539 = vsel %vm535, %v519, %v522
        %v540 = vsel %vm538, %v528, 2102212464
        %v541 = vsel %vm537, %v525, %v540
        %v542 = vsel %vm536, %v539, %v541
        %v543 = vsel %vm535, %v522, %v525
        %v544 = vsel %vm538, %v531, 920167782
        %v545 = vsel %vm537, %v528, %v544
        %v546 = vsel %vm536, %v543, %v545
        %v547 = vsel %vm535, %v525, %v528
        %v548 = vsel %vm538, %v534, 1326507024
        %v549 = vsel %vm537, %v531, %v548
        %v550 = vsel %vm536, %v547, %v549
        %v551 = vshll.u32 %v511, 8
        %v552 = vmul.u32.u64.compose %v551, %v550
        %v553 = vextract.low.u32 %v552
        %v554 = vextract.high.u32 %v552
        %v555 = vmul.u32.u64.compose %v551, %v546
        %v556 = vextract.low.u32 %v555
        %v557 = vextract.high.u32 %v555
        %v558 = vmul.u32 %v551, %v542
        %v559 = vadd.s32 %v554, %v556
        %vm560 = vc.u32 %v554, %v556
        %v561 = vadd.s32 %v557, 1
        %v562 = vsel %vm560, %v561, %v557
        %v563 = vadd.s32 %v558, %v562
        %v564 = vadd.s32 %v563, 536870912
        %v565 = vshrl.u32 %v564, 30
        %v566 = vshll.u32 %v565, 30
        %v567 = vsub.s32 %v563, %v566
        %vm568 = vcmp.lt.s32.totalorder %v567, 0
        %v569 = vsub.s32 0, %v567
        %v570 = vsel %vm568, %v569, %v567
        %v571 = vclz %v570
        %v572 = vsub.s32 %v571, 2
        %vm573 = vcmp.gt.s32.totalorder 0, %v572
        %v574 = vsel %vm573, 0, %v572
        %v575 = vsub.s32 32, %v574
        %v576 = vshll.u32 %v567, %v574
        %v577 = vshrl.u32 %v559, %v575
        %v578 = vor.u32 %v576, %v577
        %v579 = vsub.s32 4294967266, %v574
        %v580 = vadd.s32 %v579, 127
        %v581 = vshll.u32 %v580, 23
        %v582 = vor.u32 4788187, %v581
        %v583 = vand.u32 2147483647, %v582
        %v585 = vcvt.s32.f32 %v578
        %v586 = vmul.f32 %v585, %v583
        %v587 = vxor.u32 %v586, 2147483648
        %v588 = vsel %vm505, %v587, %v586
        %v589 = vsub.s32 4, %v565
        %v590 = vsel %vm505, %v589, %v565
        %v591 = vsel %vm504, %v398, %v588
        %v592 = vsel %vm504, 0, %v590
        %v593 = vcosq.f32.pop %v591
        %v594 = vsinq.f32.pop %v591
        %vm595 = vweird.f32 %v398
        %v596 = vand.u32 %v592, 3
        %vm597 = vcmp.lt.s32.totalorder %v596, 2
        %vm598 = vcmp.eq.s32.totalorder %v596, 0
        %v599 = vxor.u32 %v594, 2147483648
        %v600 = vsel %vm598, %v593, %v599
        %vm601 = vcmp.eq.s32.totalorder %v596, 2
        %v602 = vxor.u32 %v593, 2147483648
        %v603 = vsel %vm601, %v602, %v594
        %v604 = vsel %vm597, %v600, %v603
        %v605 = vsel %vm595, nan, %v604
        %v606 = vpack.c.bf16 %v605, %v502
        %v607 = vld [vmem:[%s4] sm:$0xf]
        %v608 = vld [vmem:[%s4 + $0x4] sm:$0xf]
        %v609 = vld [vmem:[%s4 + $0x8] sm:$0xf]
        %v610 = vld [vmem:[%s4 + $0xc] sm:$0xf]
        %v611 = vld [vmem:[%s4 + $0x10] sm:$0xf]
        %v612 = vld [vmem:[%s4 + $0x14] sm:$0xf]
        %v613 = vld [vmem:[%s4 + $0x18] sm:$0xf]
        %v614 = vld [vmem:[%s4 + $0x1c] sm:$0xf]
        %v615 = vld [vmem:[%s4 + $0x20] sm:$0xf]
        %v616 = vld [vmem:[%s4 + $0x24] sm:$0xf]
        %v617 = vld [vmem:[%s4 + $0x28] sm:$0xf]
        %v618 = vld [vmem:[%s4 + $0x2c] sm:$0xf]
        %v619 = vld [vmem:[%s4 + $0x30] sm:$0xf]
        %v620 = vld [vmem:[%s4 + $0x34] sm:$0xf]
        %v621 = vld [vmem:[%s4 + $0x38] sm:$0xf]
        %v622 = vld [vmem:[%s4 + $0x3c] sm:$0xf]
        %v623 = vld [vmem:[%s373] sm:$0xff]
        %v624 = vld [vmem:[%s373 + $0x8] sm:$0xff]
        %v625 = vld [vmem:[%s373 + $0x10] sm:$0xff]
        %v626 = vld [vmem:[%s373 + $0x18] sm:$0xff]
        %v627 = vld [vmem:[%s373 + $0x20] sm:$0xff]
        %v628 = vld [vmem:[%s373 + $0x28] sm:$0xff]
        %v629 = vld [vmem:[%s373 + $0x30] sm:$0xff]
        %v630 = vld [vmem:[%s373 + $0x38] sm:$0xff]
        %v631 = vld [vmem:[%s373 + $0x40] sm:$0xff]
        %v632 = vld [vmem:[%s373 + $0x48] sm:$0xff]
        %v633 = vld [vmem:[%s373 + $0x50] sm:$0xff]
        %v634 = vld [vmem:[%s373 + $0x58] sm:$0xff]
        %v635 = vld [vmem:[%s373 + $0x60] sm:$0xff]
        %v636 = vld [vmem:[%s373 + $0x68] sm:$0xff]
        %v637 = vld [vmem:[%s373 + $0x70] sm:$0xff]
        %v638 = vld [vmem:[%s373 + $0x78] sm:$0xff]
        %640 = vset.pattern.permute.xlu0 0
        %641 = vperm.xlu0 %640, %v623
        %v642 = vpop.permute.xlu0 %641
        %645 = vset.pattern.permute.xlu0 0
        %646 = vperm.xlu0 %645, %v624
        %v647 = vpop.permute.xlu0 %646
        %650 = vset.pattern.permute.xlu0 0
        %651 = vperm.xlu0 %650, %v625
        %v652 = vpop.permute.xlu0 %651
        %655 = vset.pattern.permute.xlu0 0
        %656 = vperm.xlu0 %655, %v626
        %v657 = vpop.permute.xlu0 %656
        %660 = vset.pattern.permute.xlu0 0
        %661 = vperm.xlu0 %660, %v627
        %v662 = vpop.permute.xlu0 %661
        %665 = vset.pattern.permute.xlu0 0
        %666 = vperm.xlu0 %665, %v628
        %v667 = vpop.permute.xlu0 %666
        %670 = vset.pattern.permute.xlu0 0
        %671 = vperm.xlu0 %670, %v629
        %v672 = vpop.permute.xlu0 %671
        %675 = vset.pattern.permute.xlu0 0
        %676 = vperm.xlu0 %675, %v630
        %v677 = vpop.permute.xlu0 %676
        %680 = vset.pattern.permute.xlu0 0
        %681 = vperm.xlu0 %680, %v631
        %v682 = vpop.permute.xlu0 %681
        %685 = vset.pattern.permute.xlu0 0
        %686 = vperm.xlu0 %685, %v632
        %v687 = vpop.permute.xlu0 %686
        %690 = vset.pattern.permute.xlu0 0
        %691 = vperm.xlu0 %690, %v633
        %v692 = vpop.permute.xlu0 %691
        %695 = vset.pattern.permute.xlu0 0
        %696 = vperm.xlu0 %695, %v634
        %v697 = vpop.permute.xlu0 %696
        %700 = vset.pattern.permute.xlu0 0
        %701 = vperm.xlu0 %700, %v635
        %v702 = vpop.permute.xlu0 %701
        %705 = vset.pattern.permute.xlu0 0
        %706 = vperm.xlu0 %705, %v636
        %v707 = vpop.permute.xlu0 %706
        %710 = vset.pattern.permute.xlu0 0
        %711 = vperm.xlu0 %710, %v637
        %v712 = vpop.permute.xlu0 %711
        %715 = vset.pattern.permute.xlu0 0
        %716 = vperm.xlu0 %715, %v638
        %v717 = vpop.permute.xlu0 %716
        %v735 = vunpack.c.l.b16 %v607
        %v736 = vunpack.c.l.b16 %v608
        %v737 = vunpack.c.l.b16 %v609
        %v738 = vunpack.c.l.b16 %v610
        %v739 = vunpack.c.l.b16 %v611
        %v740 = vunpack.c.l.b16 %v612
        %v741 = vunpack.c.l.b16 %v613
        %v742 = vunpack.c.l.b16 %v614
        %v743 = vunpack.c.l.b16 %v615
        %v744 = vunpack.c.l.b16 %v616
        %v745 = vunpack.c.l.b16 %v617
        %v746 = vunpack.c.l.b16 %v618
        %v747 = vunpack.c.l.b16 %v619
        %v748 = vunpack.c.l.b16 %v620
        %v749 = vunpack.c.l.b16 %v621
        %v750 = vunpack.c.l.b16 %v622
        %v751 = vpack.c.b16 %v736, %v735
        %v752 = vpack.c.b16 %v738, %v737
        %v753 = vpack.c.b16 %v740, %v739
        %v754 = vpack.c.b16 %v742, %v741
        %v755 = vpack.c.b16 %v744, %v743
        %v756 = vpack.c.b16 %v746, %v745
        %v757 = vpack.c.b16 %v748, %v747
        %v758 = vpack.c.b16 %v750, %v749
        %vm759 = vcmask 130048
        %v761 = vsel %vm759, %v751, 0
        %v764 = vsel %vm759, %v752, 0
        %v767 = vsel %vm759, %v753, 0
        %v770 = vsel %vm759, %v754, 0
        %v773 = vsel %vm759, %v755, 0
        %v776 = vsel %vm759, %v756, 0
        %v779 = vsel %vm759, %v757, 0
        %v782 = vsel %vm759, %v758, 0
        %784 = vmatprep.subr.bf16.mxu0 0
        %785 = vmatpush1.bf16.msra.mxu0 %v606
        %786 = vmatprep.subr.bf16.mxu0 0
        %787 = vmatpush1.bf16.msra.mxu0 0
        %788 = vmatprep.subr.bf16.mxu0 0
        %789 = vmatpush1.bf16.msra.mxu0 0
        %790 = vmatprep.subr.bf16.mxu0 0
        %791 = vmatpush1.bf16.msra.mxu0 0
        %792 = vmatprep.subr.bf16.mxu0 0
        %793 = vmatpush1.bf16.msra.mxu0 0
        %794 = vmatprep.subr.bf16.mxu0 0
        %795 = vmatpush1.bf16.msra.mxu0 0
        %796 = vmatprep.subr.bf16.mxu0 0
        %797 = vmatpush1.bf16.msra.mxu0 0
        %798 = vmatprep.subr.bf16.mxu0 0
        %799 = vmatpush1.bf16.msra.mxu0 0
        %800 = vmatprep.subr.bf16.mxu0 0
        %801 = vmatpush1.bf16.msra.mxu0 0
        %802 = vmatprep.subr.bf16.mxu0 0
        %803 = vmatpush1.bf16.msra.mxu0 0
        %804 = vmatprep.subr.bf16.mxu0 0
        %805 = vmatpush1.bf16.msra.mxu0 0
        %806 = vmatprep.subr.bf16.mxu0 0
        %807 = vmatpush1.bf16.msra.mxu0 0
        %808 = vmatprep.subr.bf16.mxu0 0
        %809 = vmatpush1.bf16.msra.mxu0 0
        %810 = vmatprep.subr.bf16.mxu0 0
        %811 = vmatpush1.bf16.msra.mxu0 0
        %812 = vmatprep.subr.bf16.mxu0 0
        %813 = vmatpush1.bf16.msra.mxu0 0
        %814 = vmatprep.subr.bf16.mxu0 0
        %815 = vmatpush1.bf16.msra.mxu0 0
        %816 = vmatprep.mubr.bf16.mxu0 0
        %817 = vmatmul.mubr.bf16.gmra.mrb[0].mxu0 %v761
        %v818 = vpop.f32.mrb[0].mxu0
        %v819 = vadd.f32 %v642, %v818
        %v820 = vpop.f32.mrb[0].mxu0
        %v821 = vpop.f32.mrb[0].mxu0
        %v822 = vadd.f32 %v647, %v821
        %v823 = vpop.f32.mrb[0].mxu0
        %824 = vmatprep.mubr.bf16.mxu0 0
        %825 = vmatmul.mubr.bf16.gmra.mrb[0].mxu0 %v764
        %v826 = vpop.f32.mrb[0].mxu0
        %v827 = vadd.f32 %v652, %v826
        %v828 = vpop.f32.mrb[0].mxu0
        %v829 = vpop.f32.mrb[0].mxu0
        %v830 = vadd.f32 %v657, %v829
        %v831 = vpop.f32.mrb[0].mxu0
        %832 = vmatprep.mubr.bf16.mxu0 0
        %833 = vmatmul.mubr.bf16.gmra.mrb[0].mxu0 %v767
        %v834 = vpop.f32.mrb[0].mxu0
        %v835 = vadd.f32 %v662, %v834
        %v836 = vpop.f32.mrb[0].mxu0
        %v837 = vpop.f32.mrb[0].mxu0
        %v838 = vadd.f32 %v667, %v837
        %v839 = vpop.f32.mrb[0].mxu0
        %840 = vmatprep.mubr.bf16.mxu0 0
        %841 = vmatmul.mubr.bf16.gmra.mrb[0].mxu0 %v770
        %v842 = vpop.f32.mrb[0].mxu0
        %v843 = vadd.f32 %v672, %v842
        %v844 = vpop.f32.mrb[0].mxu0
        %v845 = vpop.f32.mrb[0].mxu0
        %v846 = vadd.f32 %v677, %v845
        %v847 = vpop.f32.mrb[0].mxu0
        %848 = vmatprep.mubr.bf16.mxu0 0
        %849 = vmatmul.mubr.bf16.gmra.mrb[0].mxu0 %v773
        %v850 = vpop.f32.mrb[0].mxu0
        %v851 = vadd.f32 %v682, %v850
        %v852 = vpop.f32.mrb[0].mxu0
        %v853 = vpop.f32.mrb[0].mxu0
        %v854 = vadd.f32 %v687, %v853
        %v855 = vpop.f32.mrb[0].mxu0
        %856 = vmatprep.mubr.bf16.mxu0 0
        %857 = vmatmul.mubr.bf16.gmra.mrb[0].mxu0 %v776
        %v858 = vpop.f32.mrb[0].mxu0
        %v859 = vadd.f32 %v692, %v858
        %v860 = vpop.f32.mrb[0].mxu0
        %v861 = vpop.f32.mrb[0].mxu0
        %v862 = vadd.f32 %v697, %v861
        %v863 = vpop.f32.mrb[0].mxu0
        %864 = vmatprep.mubr.bf16.mxu0 0
        %865 = vmatmul.mubr.bf16.gmra.mrb[0].mxu0 %v779
        %v866 = vpop.f32.mrb[0].mxu0
        %v867 = vadd.f32 %v702, %v866
        %v868 = vpop.f32.mrb[0].mxu0
        %v869 = vpop.f32.mrb[0].mxu0
        %v870 = vadd.f32 %v707, %v869
        %v871 = vpop.f32.mrb[0].mxu0
        %872 = vmatprep.mubr.bf16.mxu0 0
        %873 = vmatmul.mubr.bf16.gmra.mrb[0].mxu0 %v782
        %v874 = vpop.f32.mrb[0].mxu0
        %v875 = vadd.f32 %v712, %v874
        %v876 = vpop.f32.mrb[0].mxu0
        %v877 = vpop.f32.mrb[0].mxu0
        %v878 = vadd.f32 %v717, %v877
        %v879 = vpop.f32.mrb[0].mxu0
        %880 = vdwg.mxu0
        %v881 = vpack.c.bf16 %v822, %v819
        %v882 = vpack.c.bf16 %v830, %v827
        %v883 = vpack.c.bf16 %v838, %v835
        %v884 = vpack.c.bf16 %v846, %v843
        %v885 = vpack.c.bf16 %v854, %v851
        %v886 = vpack.c.bf16 %v862, %v859
        %v887 = vpack.c.bf16 %v870, %v867
        %v888 = vpack.c.bf16 %v878, %v875
        %vm889 = vcmask 523264
        %890 = vst.msk [vmem:[#allocation2] sm:$0xff] %vm889, %v881
        %891 = vst.msk [vmem:[#allocation2 + $0x8] sm:$0xff] %vm889, %v882
        %892 = vst.msk [vmem:[#allocation2 + $0x10] sm:$0xff] %vm889, %v883
        %893 = vst.msk [vmem:[#allocation2 + $0x18] sm:$0xff] %vm889, %v884
        %894 = vst.msk [vmem:[#allocation2 + $0x20] sm:$0xff] %vm889, %v885
        %895 = vst.msk [vmem:[#allocation2 + $0x28] sm:$0xff] %vm889, %v886
        %896 = vst.msk [vmem:[#allocation2 + $0x30] sm:$0xff] %vm889, %v887
        %897 = vst.msk [vmem:[#allocation2 + $0x38] sm:$0xff] %vm889, %v888
        %v898 = vld [vmem:[%s5] sm:$0xf]
        %v899 = vld [vmem:[%s5 + $0x4] sm:$0xf]
        %v900 = vld [vmem:[%s5 + $0x8] sm:$0xf]
        %v901 = vld [vmem:[%s5 + $0xc] sm:$0xf]
        %v902 = vld [vmem:[%s5 + $0x10] sm:$0xf]
        %v903 = vld [vmem:[%s5 + $0x14] sm:$0xf]
        %v904 = vld [vmem:[%s5 + $0x18] sm:$0xf]
        %v905 = vld [vmem:[%s5 + $0x1c] sm:$0xf]
        %v906 = vld [vmem:[%s5 + $0x20] sm:$0xf]
        %v907 = vld [vmem:[%s5 + $0x24] sm:$0xf]
        %v908 = vld [vmem:[%s5 + $0x28] sm:$0xf]
        %v909 = vld [vmem:[%s5 + $0x2c] sm:$0xf]
        %v910 = vld [vmem:[%s5 + $0x30] sm:$0xf]
        %v911 = vld [vmem:[%s5 + $0x34] sm:$0xf]
        %v912 = vld [vmem:[%s5 + $0x38] sm:$0xf]
        %v913 = vld [vmem:[%s5 + $0x3c] sm:$0xf]
        %v914 = vld [vmem:[#allocation2] sm:$0xff]
        %v915 = vld [vmem:[#allocation2 + $0x8] sm:$0xff]
        %v916 = vld [vmem:[#allocation2 + $0x10] sm:$0xff]
        %v917 = vld [vmem:[#allocation2 + $0x18] sm:$0xff]
        %v918 = vld [vmem:[#allocation2 + $0x20] sm:$0xff]
        %v919 = vld [vmem:[#allocation2 + $0x28] sm:$0xff]
        %v920 = vld [vmem:[#allocation2 + $0x30] sm:$0xff]
        %v921 = vld [vmem:[#allocation2 + $0x38] sm:$0xff]
        %v922 = vld [vmem:[%s6] sm:$0xff]
        %v923 = vld [vmem:[%s6 + $0x8] sm:$0xff]
        %v924 = vld [vmem:[%s6 + $0x10] sm:$0xff]
        %v925 = vld [vmem:[%s6 + $0x18] sm:$0xff]
        %v926 = vld [vmem:[%s6 + $0x20] sm:$0xff]
        %v927 = vld [vmem:[%s6 + $0x28] sm:$0xff]
        %v928 = vld [vmem:[%s6 + $0x30] sm:$0xff]
        %v929 = vld [vmem:[%s6 + $0x38] sm:$0xff]
        %v930 = vld [vmem:[%s6 + $0x40] sm:$0xff]
        %v931 = vld [vmem:[%s6 + $0x48] sm:$0xff]
        %v932 = vld [vmem:[%s6 + $0x50] sm:$0xff]
        %v933 = vld [vmem:[%s6 + $0x58] sm:$0xff]
        %v934 = vld [vmem:[%s6 + $0x60] sm:$0xff]
        %v935 = vld [vmem:[%s6 + $0x68] sm:$0xff]
        %v936 = vld [vmem:[%s6 + $0x70] sm:$0xff]
        %v937 = vld [vmem:[%s6 + $0x78] sm:$0xff]
        %939 = vset.pattern.permute.xlu0 0
        %940 = vperm.xlu0 %939, %v922
        %v941 = vpop.permute.xlu0 %940
        %944 = vset.pattern.permute.xlu0 0
        %945 = vperm.xlu0 %944, %v923
        %v946 = vpop.permute.xlu0 %945
        %949 = vset.pattern.permute.xlu0 0
        %950 = vperm.xlu0 %949, %v924
        %v951 = vpop.permute.xlu0 %950
        %954 = vset.pattern.permute.xlu0 0
        %955 = vperm.xlu0 %954, %v925
        %v956 = vpop.permute.xlu0 %955
        %959 = vset.pattern.permute.xlu0 0
        %960 = vperm.xlu0 %959, %v926
        %v961 = vpop.permute.xlu0 %960
        %964 = vset.pattern.permute.xlu0 0
        %965 = vperm.xlu0 %964, %v927
        %v966 = vpop.permute.xlu0 %965
        %969 = vset.pattern.permute.xlu0 0
        %970 = vperm.xlu0 %969, %v928
        %v971 = vpop.permute.xlu0 %970
        %974 = vset.pattern.permute.xlu0 0
        %975 = vperm.xlu0 %974, %v929
        %v976 = vpop.permute.xlu0 %975
        %979 = vset.pattern.permute.xlu0 0
        %980 = vperm.xlu0 %979, %v930
        %v981 = vpop.permute.xlu0 %980
        %984 = vset.pattern.permute.xlu0 0
        %985 = vperm.xlu0 %984, %v931
        %v986 = vpop.permute.xlu0 %985
        %989 = vset.pattern.permute.xlu0 0
        %990 = vperm.xlu0 %989, %v932
        %v991 = vpop.permute.xlu0 %990
        %994 = vset.pattern.permute.xlu0 0
        %995 = vperm.xlu0 %994, %v933
        %v996 = vpop.permute.xlu0 %995
        %999 = vset.pattern.permute.xlu0 0
        %1000 = vperm.xlu0 %999, %v934
        %v1001 = vpop.permute.xlu0 %1000
        %1004 = vset.pattern.permute.xlu0 0
        %1005 = vperm.xlu0 %1004, %v935
        %v1006 = vpop.permute.xlu0 %1005
        %1009 = vset.pattern.permute.xlu0 0
        %1010 = vperm.xlu0 %1009, %v936
        %v1011 = vpop.permute.xlu0 %1010
        %1014 = vset.pattern.permute.xlu0 0
        %1015 = vperm.xlu0 %1014, %v937
        %v1016 = vpop.permute.xlu0 %1015
        %v1034 = vunpack.c.l.b16 %v898
        %v1035 = vunpack.c.l.b16 %v899
        %v1036 = vunpack.c.l.b16 %v900
        %v1037 = vunpack.c.l.b16 %v901
        %v1038 = vunpack.c.l.b16 %v902
        %v1039 = vunpack.c.l.b16 %v903
        %v1040 = vunpack.c.l.b16 %v904
        %v1041 = vunpack.c.l.b16 %v905
        %v1042 = vunpack.c.l.b16 %v906
        %v1043 = vunpack.c.l.b16 %v907
        %v1044 = vunpack.c.l.b16 %v908
        %v1045 = vunpack.c.l.b16 %v909
        %v1046 = vunpack.c.l.b16 %v910
        %v1047 = vunpack.c.l.b16 %v911
        %v1048 = vunpack.c.l.b16 %v912
        %v1049 = vunpack.c.l.b16 %v913
        %v1050 = vpack.c.b16 %v1035, %v1034
        %v1051 = vpack.c.b16 %v1037, %v1036
        %v1052 = vpack.c.b16 %v1039, %v1038
        %v1053 = vpack.c.b16 %v1041, %v1040
        %v1054 = vpack.c.b16 %v1043, %v1042
        %v1055 = vpack.c.b16 %v1045, %v1044
        %v1056 = vpack.c.b16 %v1047, %v1046
        %v1057 = vpack.c.b16 %v1049, %v1048
        %1066 = vmatprep.subr.bf16.mxu0 0
        %1067 = vmatpush1.bf16.msra.mxu0 %v914
        %1068 = vmatprep.subr.bf16.mxu0 0
        %1069 = vmatpush1.bf16.msra.mxu0 %v915
        %1070 = vmatprep.subr.bf16.mxu0 0
        %1071 = vmatpush1.bf16.msra.mxu0 %v916
        %1072 = vmatprep.subr.bf16.mxu0 0
        %1073 = vmatpush1.bf16.msra.mxu0 %v917
        %1074 = vmatprep.subr.bf16.mxu0 0
        %1075 = vmatpush1.bf16.msra.mxu0 %v918
        %1076 = vmatprep.subr.bf16.mxu0 0
        %1077 = vmatpush1.bf16.msra.mxu0 %v919
        %1078 = vmatprep.subr.bf16.mxu0 0
        %1079 = vmatpush1.bf16.msra.mxu0 %v920
        %1080 = vmatprep.subr.bf16.mxu0 0
        %1081 = vmatpush1.bf16.msra.mxu0 %v921
        %1082 = vmatprep.subr.bf16.mxu0 0
        %1083 = vmatpush1.bf16.msra.mxu0 0
        %1084 = vmatprep.subr.bf16.mxu0 0
        %1085 = vmatpush1.bf16.msra.mxu0 0
        %1086 = vmatprep.subr.bf16.mxu0 0
        %1087 = vmatpush1.bf16.msra.mxu0 0
        %1088 = vmatprep.subr.bf16.mxu0 0
        %1089 = vmatpush1.bf16.msra.mxu0 0
        %1090 = vmatprep.subr.bf16.mxu0 0
        %1091 = vmatpush1.bf16.msra.mxu0 0
        %1092 = vmatprep.subr.bf16.mxu0 0
        %1093 = vmatpush1.bf16.msra.mxu0 0
        %1094 = vmatprep.subr.bf16.mxu0 0
        %1095 = vmatpush1.bf16.msra.mxu0 0
        %1096 = vmatprep.subr.bf16.mxu0 0
        %1097 = vmatpush1.bf16.msra.mxu0 0
        %1098 = vmatprep.mubr.bf16.mxu0 0
        %1099 = vmatmul.mubr.bf16.gmra.mrb[0].mxu0 %v1050
        %v1100 = vpop.f32.mrb[0].mxu0
        %v1101 = vadd.f32 %v941, %v1100
        %v1102 = vpop.f32.mrb[0].mxu0
        %v1103 = vpop.f32.mrb[0].mxu0
        %v1104 = vadd.f32 %v946, %v1103
        %v1105 = vpop.f32.mrb[0].mxu0
        %1106 = vmatprep.mubr.bf16.mxu0 0
        %1107 = vmatmul.mubr.bf16.gmra.mrb[0].mxu0 %v1051
        %v1108 = vpop.f32.mrb[0].mxu0
        %v1109 = vadd.f32 %v951, %v1108
        %v1110 = vpop.f32.mrb[0].mxu0
        %v1111 = vpop.f32.mrb[0].mxu0
        %v1112 = vadd.f32 %v956, %v1111
        %v1113 = vpop.f32.mrb[0].mxu0
        %1114 = vmatprep.mubr.bf16.mxu0 0
        %1115 = vmatmul.mubr.bf16.gmra.mrb[0].mxu0 %v1052
        %v1116 = vpop.f32.mrb[0].mxu0
        %v1117 = vadd.f32 %v961, %v1116
        %v1118 = vpop.f32.mrb[0].mxu0
        %v1119 = vpop.f32.mrb[0].mxu0
        %v1120 = vadd.f32 %v966, %v1119
        %v1121 = vpop.f32.mrb[0].mxu0
        %1122 = vmatprep.mubr.bf16.mxu0 0
        %1123 = vmatmul.mubr.bf16.gmra.mrb[0].mxu0 %v1053
        %v1124 = vpop.f32.mrb[0].mxu0
        %v1125 = vadd.f32 %v971, %v1124
        %v1126 = vpop.f32.mrb[0].mxu0
        %v1127 = vpop.f32.mrb[0].mxu0
        %v1128 = vadd.f32 %v976, %v1127
        %v1129 = vpop.f32.mrb[0].mxu0
        %1130 = vmatprep.mubr.bf16.mxu0 0
        %1131 = vmatmul.mubr.bf16.gmra.mrb[0].mxu0 %v1054
        %v1132 = vpop.f32.mrb[0].mxu0
        %v1133 = vadd.f32 %v981, %v1132
        %v1134 = vpop.f32.mrb[0].mxu0
        %v1135 = vpop.f32.mrb[0].mxu0
        %v1136 = vadd.f32 %v986, %v1135
        %v1137 = vpop.f32.mrb[0].mxu0
        %1138 = vmatprep.mubr.bf16.mxu0 0
        %1139 = vmatmul.mubr.bf16.gmra.mrb[0].mxu0 %v1055
        %v1140 = vpop.f32.mrb[0].mxu0
        %v1141 = vadd.f32 %v991, %v1140
        %v1142 = vpop.f32.mrb[0].mxu0
        %v1143 = vpop.f32.mrb[0].mxu0
        %v1144 = vadd.f32 %v996, %v1143
        %v1145 = vpop.f32.mrb[0].mxu0
        %1146 = vmatprep.mubr.bf16.mxu0 0
        %1147 = vmatmul.mubr.bf16.gmra.mrb[0].mxu0 %v1056
        %v1148 = vpop.f32.mrb[0].mxu0
        %v1149 = vadd.f32 %v1001, %v1148
        %v1150 = vpop.f32.mrb[0].mxu0
        %v1151 = vpop.f32.mrb[0].mxu0
        %v1152 = vadd.f32 %v1006, %v1151
        %v1153 = vpop.f32.mrb[0].mxu0
        %1154 = vmatprep.mubr.bf16.mxu0 0
        %1155 = vmatmul.mubr.bf16.gmra.mrb[0].mxu0 %v1057
        %v1156 = vpop.f32.mrb[0].mxu0
        %v1157 = vadd.f32 %v1011, %v1156
        %v1158 = vpop.f32.mrb[0].mxu0
        %v1159 = vpop.f32.mrb[0].mxu0
        %v1160 = vadd.f32 %v1016, %v1159
        %v1161 = vpop.f32.mrb[0].mxu0
        %1162 = vdwg.mxu0
        %v1163 = vpack.c.bf16 %v1104, %v1101
        %v1164 = vpack.c.bf16 %v1112, %v1109
        %v1165 = vpack.c.bf16 %v1120, %v1117
        %v1166 = vpack.c.bf16 %v1128, %v1125
        %v1167 = vpack.c.bf16 %v1136, %v1133
        %v1168 = vpack.c.bf16 %v1144, %v1141
        %v1169 = vpack.c.bf16 %v1152, %v1149
        %v1170 = vpack.c.bf16 %v1160, %v1157
        %1171 = vst.msk [vmem:[#allocation2] sm:$0xff] %vm889, %v1163
        %1172 = vst.msk [vmem:[#allocation2 + $0x8] sm:$0xff] %vm889, %v1164
        %1173 = vst.msk [vmem:[#allocation2 + $0x10] sm:$0xff] %vm889, %v1165
        %1174 = vst.msk [vmem:[#allocation2 + $0x18] sm:$0xff] %vm889, %v1166
        %1175 = vst.msk [vmem:[#allocation2 + $0x20] sm:$0xff] %vm889, %v1167
        %1176 = vst.msk [vmem:[#allocation2 + $0x28] sm:$0xff] %vm889, %v1168
        %1177 = vst.msk [vmem:[#allocation2 + $0x30] sm:$0xff] %vm889, %v1169
        %1178 = vst.msk [vmem:[#allocation2 + $0x38] sm:$0xff] %vm889, %v1170
        %s1179 = scalar_lea.vmem %s5, 64
        %v1180 = vld [vmem:[%s1179] sm:$0xf]
        %v1181 = vld [vmem:[%s1179 + $0x4] sm:$0xf]
        %v1182 = vld [vmem:[%s1179 + $0x8] sm:$0xf]
        %v1183 = vld [vmem:[%s1179 + $0xc] sm:$0xf]
        %v1184 = vld [vmem:[%s1179 + $0x10] sm:$0xf]
        %v1185 = vld [vmem:[%s1179 + $0x14] sm:$0xf]
        %v1186 = vld [vmem:[%s1179 + $0x18] sm:$0xf]
        %v1187 = vld [vmem:[%s1179 + $0x1c] sm:$0xf]
        %v1188 = vld [vmem:[%s1179 + $0x20] sm:$0xf]
        %v1189 = vld [vmem:[%s1179 + $0x24] sm:$0xf]
        %v1190 = vld [vmem:[%s1179 + $0x28] sm:$0xf]
        %v1191 = vld [vmem:[%s1179 + $0x2c] sm:$0xf]
        %v1192 = vld [vmem:[%s1179 + $0x30] sm:$0xf]
        %v1193 = vld [vmem:[%s1179 + $0x34] sm:$0xf]
        %v1194 = vld [vmem:[%s1179 + $0x38] sm:$0xf]
        %v1195 = vld [vmem:[%s1179 + $0x3c] sm:$0xf]
        %v1196 = vld [vmem:[#allocation2] sm:$0xff]
        %v1197 = vld [vmem:[#allocation2 + $0x8] sm:$0xff]
        %v1198 = vld [vmem:[#allocation2 + $0x10] sm:$0xff]
        %v1199 = vld [vmem:[#allocation2 + $0x18] sm:$0xff]
        %v1200 = vld [vmem:[#allocation2 + $0x20] sm:$0xff]
        %v1201 = vld [vmem:[#allocation2 + $0x28] sm:$0xff]
        %v1202 = vld [vmem:[#allocation2 + $0x30] sm:$0xff]
        %v1203 = vld [vmem:[#allocation2 + $0x38] sm:$0xff]
        %s1204 = scalar_lea.vmem %s6, 128
        %v1205 = vld [vmem:[%s1204] sm:$0xff]
        %v1206 = vld [vmem:[%s1204 + $0x8] sm:$0xff]
        %v1207 = vld [vmem:[%s1204 + $0x10] sm:$0xff]
        %v1208 = vld [vmem:[%s1204 + $0x18] sm:$0xff]
        %v1209 = vld [vmem:[%s1204 + $0x20] sm:$0xff]
        %v1210 = vld [vmem:[%s1204 + $0x28] sm:$0xff]
        %v1211 = vld [vmem:[%s1204 + $0x30] sm:$0xff]
        %v1212 = vld [vmem:[%s1204 + $0x38] sm:$0xff]
        %v1213 = vld [vmem:[%s1204 + $0x40] sm:$0xff]
        %v1214 = vld [vmem:[%s1204 + $0x48] sm:$0xff]
        %v1215 = vld [vmem:[%s1204 + $0x50] sm:$0xff]
        %v1216 = vld [vmem:[%s1204 + $0x58] sm:$0xff]
        %v1217 = vld [vmem:[%s1204 + $0x60] sm:$0xff]
        %v1218 = vld [vmem:[%s1204 + $0x68] sm:$0xff]
        %v1219 = vld [vmem:[%s1204 + $0x70] sm:$0xff]
        %v1220 = vld [vmem:[%s1204 + $0x78] sm:$0xff]
        %1222 = vset.pattern.permute.xlu0 0
        %1223 = vperm.xlu0 %1222, %v1205
        %v1224 = vpop.permute.xlu0 %1223
        %1227 = vset.pattern.permute.xlu0 0
        %1228 = vperm.xlu0 %1227, %v1206
        %v1229 = vpop.permute.xlu0 %1228
        %1232 = vset.pattern.permute.xlu0 0
        %1233 = vperm.xlu0 %1232, %v1207
        %v1234 = vpop.permute.xlu0 %1233
        %1237 = vset.pattern.permute.xlu0 0
        %1238 = vperm.xlu0 %1237, %v1208
        %v1239 = vpop.permute.xlu0 %1238
        %1242 = vset.pattern.permute.xlu0 0
        %1243 = vperm.xlu0 %1242, %v1209
        %v1244 = vpop.permute.xlu0 %1243
        %1247 = vset.pattern.permute.xlu0 0
        %1248 = vperm.xlu0 %1247, %v1210
        %v1249 = vpop.permute.xlu0 %1248
        %1252 = vset.pattern.permute.xlu0 0
        %1253 = vperm.xlu0 %1252, %v1211
        %v1254 = vpop.permute.xlu0 %1253
        %1257 = vset.pattern.permute.xlu0 0
        %1258 = vperm.xlu0 %1257, %v1212
        %v1259 = vpop.permute.xlu0 %1258
        %1262 = vset.pattern.permute.xlu0 0
        %1263 = vperm.xlu0 %1262, %v1213
        %v1264 = vpop.permute.xlu0 %1263
        %1267 = vset.pattern.permute.xlu0 0
        %1268 = vperm.xlu0 %1267, %v1214
        %v1269 = vpop.permute.xlu0 %1268
        %1272 = vset.pattern.permute.xlu0 0
        %1273 = vperm.xlu0 %1272, %v1215
        %v1274 = vpop.permute.xlu0 %1273
        %1277 = vset.pattern.permute.xlu0 0
        %1278 = vperm.xlu0 %1277, %v1216
        %v1279 = vpop.permute.xlu0 %1278
        %1282 = vset.pattern.permute.xlu0 0
        %1283 = vperm.xlu0 %1282, %v1217
        %v1284 = vpop.permute.xlu0 %1283
        %1287 = vset.pattern.permute.xlu0 0
        %1288 = vperm.xlu0 %1287, %v1218
        %v1289 = vpop.permute.xlu0 %1288
        %1292 = vset.pattern.permute.xlu0 0
        %1293 = vperm.xlu0 %1292, %v1219
        %v1294 = vpop.permute.xlu0 %1293
        %1297 = vset.pattern.permute.xlu0 0
        %1298 = vperm.xlu0 %1297, %v1220
        %v1299 = vpop.permute.xlu0 %1298
        %v1317 = vunpack.c.l.b16 %v1180
        %v1318 = vunpack.c.l.b16 %v1181
        %v1319 = vunpack.c.l.b16 %v1182
        %v1320 = vunpack.c.l.b16 %v1183
        %v1321 = vunpack.c.l.b16 %v1184
        %v1322 = vunpack.c.l.b16 %v1185
        %v1323 = vunpack.c.l.b16 %v1186
        %v1324 = vunpack.c.l.b16 %v1187
        %v1325 = vunpack.c.l.b16 %v1188
        %v1326 = vunpack.c.l.b16 %v1189
        %v1327 = vunpack.c.l.b16 %v1190
        %v1328 = vunpack.c.l.b16 %v1191
        %v1329 = vunpack.c.l.b16 %v1192
        %v1330 = vunpack.c.l.b16 %v1193
        %v1331 = vunpack.c.l.b16 %v1194
        %v1332 = vunpack.c.l.b16 %v1195
        %v1333 = vpack.c.b16 %v1318, %v1317
        %v1334 = vpack.c.b16 %v1320, %v1319
        %v1335 = vpack.c.b16 %v1322, %v1321
        %v1336 = vpack.c.b16 %v1324, %v1323
        %v1337 = vpack.c.b16 %v1326, %v1325
        %v1338 = vpack.c.b16 %v1328, %v1327
        %v1339 = vpack.c.b16 %v1330, %v1329
        %v1340 = vpack.c.b16 %v1332, %v1331
        %1349 = vmatprep.subr.bf16.mxu0 0
        %1350 = vmatpush1.bf16.msra.mxu0 %v1196
        %1351 = vmatprep.subr.bf16.mxu0 0
        %1352 = vmatpush1.bf16.msra.mxu0 %v1197
        %1353 = vmatprep.subr.bf16.mxu0 0
        %1354 = vmatpush1.bf16.msra.mxu0 %v1198
        %1355 = vmatprep.subr.bf16.mxu0 0
        %1356 = vmatpush1.bf16.msra.mxu0 %v1199
        %1357 = vmatprep.subr.bf16.mxu0 0
        %1358 = vmatpush1.bf16.msra.mxu0 %v1200
        %1359 = vmatprep.subr.bf16.mxu0 0
        %1360 = vmatpush1.bf16.msra.mxu0 %v1201
        %1361 = vmatprep.subr.bf16.mxu0 0
        %1362 = vmatpush1.bf16.msra.mxu0 %v1202
        %1363 = vmatprep.subr.bf16.mxu0 0
        %1364 = vmatpush1.bf16.msra.mxu0 %v1203
        %1365 = vmatprep.subr.bf16.mxu0 0
        %1366 = vmatpush1.bf16.msra.mxu0 0
        %1367 = vmatprep.subr.bf16.mxu0 0
        %1368 = vmatpush1.bf16.msra.mxu0 0
        %1369 = vmatprep.subr.bf16.mxu0 0
        %1370 = vmatpush1.bf16.msra.mxu0 0
        %1371 = vmatprep.subr.bf16.mxu0 0
        %1372 = vmatpush1.bf16.msra.mxu0 0
        %1373 = vmatprep.subr.bf16.mxu0 0
        %1374 = vmatpush1.bf16.msra.mxu0 0
        %1375 = vmatprep.subr.bf16.mxu0 0
        %1376 = vmatpush1.bf16.msra.mxu0 0
        %1377 = vmatprep.subr.bf16.mxu0 0
        %1378 = vmatpush1.bf16.msra.mxu0 0
        %1379 = vmatprep.subr.bf16.mxu0 0
        %1380 = vmatpush1.bf16.msra.mxu0 0
        %1381 = vmatprep.mubr.bf16.mxu0 0
        %1382 = vmatmul.mubr.bf16.gmra.mrb[0].mxu0 %v1333
        %v1383 = vpop.f32.mrb[0].mxu0
        %v1384 = vadd.f32 %v1224, %v1383
        %v1385 = vpop.f32.mrb[0].mxu0
        %v1386 = vpop.f32.mrb[0].mxu0
        %v1387 = vadd.f32 %v1229, %v1386
        %v1388 = vpop.f32.mrb[0].mxu0
        %1389 = vmatprep.mubr.bf16.mxu0 0
        %1390 = vmatmul.mubr.bf16.gmra.mrb[0].mxu0 %v1334
        %v1391 = vpop.f32.mrb[0].mxu0
        %v1392 = vadd.f32 %v1234, %v1391
        %v1393 = vpop.f32.mrb[0].mxu0
        %v1394 = vpop.f32.mrb[0].mxu0
        %v1395 = vadd.f32 %v1239, %v1394
        %v1396 = vpop.f32.mrb[0].mxu0
        %1397 = vmatprep.mubr.bf16.mxu0 0
        %1398 = vmatmul.mubr.bf16.gmra.mrb[0].mxu0 %v1335
        %v1399 = vpop.f32.mrb[0].mxu0
        %v1400 = vadd.f32 %v1244, %v1399
        %v1401 = vpop.f32.mrb[0].mxu0
        %v1402 = vpop.f32.mrb[0].mxu0
        %v1403 = vadd.f32 %v1249, %v1402
        %v1404 = vpop.f32.mrb[0].mxu0
        %1405 = vmatprep.mubr.bf16.mxu0 0
        %1406 = vmatmul.mubr.bf16.gmra.mrb[0].mxu0 %v1336
        %v1407 = vpop.f32.mrb[0].mxu0
        %v1408 = vadd.f32 %v1254, %v1407
        %v1409 = vpop.f32.mrb[0].mxu0
        %v1410 = vpop.f32.mrb[0].mxu0
        %v1411 = vadd.f32 %v1259, %v1410
        %v1412 = vpop.f32.mrb[0].mxu0
        %1413 = vmatprep.mubr.bf16.mxu0 0
        %1414 = vmatmul.mubr.bf16.gmra.mrb[0].mxu0 %v1337
        %v1415 = vpop.f32.mrb[0].mxu0
        %v1416 = vadd.f32 %v1264, %v1415
        %v1417 = vpop.f32.mrb[0].mxu0
        %v1418 = vpop.f32.mrb[0].mxu0
        %v1419 = vadd.f32 %v1269, %v1418
        %v1420 = vpop.f32.mrb[0].mxu0
        %1421 = vmatprep.mubr.bf16.mxu0 0
        %1422 = vmatmul.mubr.bf16.gmra.mrb[0].mxu0 %v1338
        %v1423 = vpop.f32.mrb[0].mxu0
        %v1424 = vadd.f32 %v1274, %v1423
        %v1425 = vpop.f32.mrb[0].mxu0
        %v1426 = vpop.f32.mrb[0].mxu0
        %v1427 = vadd.f32 %v1279, %v1426
        %v1428 = vpop.f32.mrb[0].mxu0
        %1429 = vmatprep.mubr.bf16.mxu0 0
        %1430 = vmatmul.mubr.bf16.gmra.mrb[0].mxu0 %v1339
        %v1431 = vpop.f32.mrb[0].mxu0
        %v1432 = vadd.f32 %v1284, %v1431
        %v1433 = vpop.f32.mrb[0].mxu0
        %v1434 = vpop.f32.mrb[0].mxu0
        %v1435 = vadd.f32 %v1289, %v1434
        %v1436 = vpop.f32.mrb[0].mxu0
        %1437 = vmatprep.mubr.bf16.mxu0 0
        %1438 = vmatmul.mubr.bf16.gmra.mrb[0].mxu0 %v1340
        %v1439 = vpop.f32.mrb[0].mxu0
        %v1440 = vadd.f32 %v1294, %v1439
        %v1441 = vpop.f32.mrb[0].mxu0
        %v1442 = vpop.f32.mrb[0].mxu0
        %v1443 = vadd.f32 %v1299, %v1442
        %v1444 = vpop.f32.mrb[0].mxu0
        %1445 = vdwg.mxu0
        %v1446 = vpack.c.bf16 %v1387, %v1384
        %v1447 = vpack.c.bf16 %v1395, %v1392
        %v1448 = vpack.c.bf16 %v1403, %v1400
        %v1449 = vpack.c.bf16 %v1411, %v1408
        %v1450 = vpack.c.bf16 %v1419, %v1416
        %v1451 = vpack.c.bf16 %v1427, %v1424
        %v1452 = vpack.c.bf16 %v1435, %v1432
        %v1453 = vpack.c.bf16 %v1443, %v1440
        %1454 = vst.msk [vmem:[#allocation2] sm:$0xff] %vm889, %v1446
        %1455 = vst.msk [vmem:[#allocation2 + $0x8] sm:$0xff] %vm889, %v1447
        %1456 = vst.msk [vmem:[#allocation2 + $0x10] sm:$0xff] %vm889, %v1448
        %1457 = vst.msk [vmem:[#allocation2 + $0x18] sm:$0xff] %vm889, %v1449
        %1458 = vst.msk [vmem:[#allocation2 + $0x20] sm:$0xff] %vm889, %v1450
        %1459 = vst.msk [vmem:[#allocation2 + $0x28] sm:$0xff] %vm889, %v1451
        %1460 = vst.msk [vmem:[#allocation2 + $0x30] sm:$0xff] %vm889, %v1452
        %1461 = vst.msk [vmem:[#allocation2 + $0x38] sm:$0xff] %vm889, %v1453
        %s1462 = scalar_lea.vmem %s5, 128
        %v1463 = vld [vmem:[%s1462] sm:$0xf]
        %v1464 = vld [vmem:[%s1462 + $0x4] sm:$0xf]
        %v1465 = vld [vmem:[%s1462 + $0x8] sm:$0xf]
        %v1466 = vld [vmem:[%s1462 + $0xc] sm:$0xf]
        %v1467 = vld [vmem:[%s1462 + $0x10] sm:$0xf]
        %v1468 = vld [vmem:[%s1462 + $0x14] sm:$0xf]
        %v1469 = vld [vmem:[%s1462 + $0x18] sm:$0xf]
        %v1470 = vld [vmem:[%s1462 + $0x1c] sm:$0xf]
        %v1471 = vld [vmem:[%s1462 + $0x20] sm:$0xf]
        %v1472 = vld [vmem:[%s1462 + $0x24] sm:$0xf]
        %v1473 = vld [vmem:[%s1462 + $0x28] sm:$0xf]
        %v1474 = vld [vmem:[%s1462 + $0x2c] sm:$0xf]
        %v1475 = vld [vmem:[%s1462 + $0x30] sm:$0xf]
        %v1476 = vld [vmem:[%s1462 + $0x34] sm:$0xf]
        %v1477 = vld [vmem:[%s1462 + $0x38] sm:$0xf]
        %v1478 = vld [vmem:[%s1462 + $0x3c] sm:$0xf]
        %v1479 = vld [vmem:[#allocation2] sm:$0xff]
        %v1480 = vld [vmem:[#allocation2 + $0x8] sm:$0xff]
        %v1481 = vld [vmem:[#allocation2 + $0x10] sm:$0xff]
        %v1482 = vld [vmem:[#allocation2 + $0x18] sm:$0xff]
        %v1483 = vld [vmem:[#allocation2 + $0x20] sm:$0xff]
        %v1484 = vld [vmem:[#allocation2 + $0x28] sm:$0xff]
        %v1485 = vld [vmem:[#allocation2 + $0x30] sm:$0xff]
        %v1486 = vld [vmem:[#allocation2 + $0x38] sm:$0xff]
        %s1487 = scalar_lea.vmem %s6, 256
        %v1488 = vld [vmem:[%s1487] sm:$0xff]
        %v1489 = vld [vmem:[%s1487 + $0x8] sm:$0xff]
        %v1490 = vld [vmem:[%s1487 + $0x10] sm:$0xff]
        %v1491 = vld [vmem:[%s1487 + $0x18] sm:$0xff]
        %v1492 = vld [vmem:[%s1487 + $0x20] sm:$0xff]
        %v1493 = vld [vmem:[%s1487 + $0x28] sm:$0xff]
        %v1494 = vld [vmem:[%s1487 + $0x30] sm:$0xff]
        %v1495 = vld [vmem:[%s1487 + $0x38] sm:$0xff]
        %v1496 = vld [vmem:[%s1487 + $0x40] sm:$0xff]
        %v1497 = vld [vmem:[%s1487 + $0x48] sm:$0xff]
        %v1498 = vld [vmem:[%s1487 + $0x50] sm:$0xff]
        %v1499 = vld [vmem:[%s1487 + $0x58] sm:$0xff]
        %v1500 = vld [vmem:[%s1487 + $0x60] sm:$0xff]
        %v1501 = vld [vmem:[%s1487 + $0x68] sm:$0xff]
        %v1502 = vld [vmem:[%s1487 + $0x70] sm:$0xff]
        %v1503 = vld [vmem:[%s1487 + $0x78] sm:$0xff]
        %1505 = vset.pattern.permute.xlu0 0
        %1506 = vperm.xlu0 %1505, %v1488
        %v1507 = vpop.permute.xlu0 %1506
        %1510 = vset.pattern.permute.xlu0 0
        %1511 = vperm.xlu0 %1510, %v1489
        %v1512 = vpop.permute.xlu0 %1511
        %1515 = vset.pattern.permute.xlu0 0
        %1516 = vperm.xlu0 %1515, %v1490
        %v1517 = vpop.permute.xlu0 %1516
        %1520 = vset.pattern.permute.xlu0 0
        %1521 = vperm.xlu0 %1520, %v1491
        %v1522 = vpop.permute.xlu0 %1521
        %1525 = vset.pattern.permute.xlu0 0
        %1526 = vperm.xlu0 %1525, %v1492
        %v1527 = vpop.permute.xlu0 %1526
        %1530 = vset.pattern.permute.xlu0 0
        %1531 = vperm.xlu0 %1530, %v1493
        %v1532 = vpop.permute.xlu0 %1531
        %1535 = vset.pattern.permute.xlu0 0
        %1536 = vperm.xlu0 %1535, %v1494
        %v1537 = vpop.permute.xlu0 %1536
        %1540 = vset.pattern.permute.xlu0 0
        %1541 = vperm.xlu0 %1540, %v1495
        %v1542 = vpop.permute.xlu0 %1541
        %1545 = vset.pattern.permute.xlu0 0
        %1546 = vperm.xlu0 %1545, %v1496
        %v1547 = vpop.permute.xlu0 %1546
        %1550 = vset.pattern.permute.xlu0 0
        %1551 = vperm.xlu0 %1550, %v1497
        %v1552 = vpop.permute.xlu0 %1551
        %1555 = vset.pattern.permute.xlu0 0
        %1556 = vperm.xlu0 %1555, %v1498
        %v1557 = vpop.permute.xlu0 %1556
        %1560 = vset.pattern.permute.xlu0 0
        %1561 = vperm.xlu0 %1560, %v1499
        %v1562 = vpop.permute.xlu0 %1561
        %1565 = vset.pattern.permute.xlu0 0
        %1566 = vperm.xlu0 %1565, %v1500
        %v1567 = vpop.permute.xlu0 %1566
        %1570 = vset.pattern.permute.xlu0 0
        %1571 = vperm.xlu0 %1570, %v1501
        %v1572 = vpop.permute.xlu0 %1571
        %1575 = vset.pattern.permute.xlu0 0
        %1576 = vperm.xlu0 %1575, %v1502
        %v1577 = vpop.permute.xlu0 %1576
        %1580 = vset.pattern.permute.xlu0 0
        %1581 = vperm.xlu0 %1580, %v1503
        %v1582 = vpop.permute.xlu0 %1581
        %v1600 = vunpack.c.l.b16 %v1463
        %v1601 = vunpack.c.l.b16 %v1464
        %v1602 = vunpack.c.l.b16 %v1465
        %v1603 = vunpack.c.l.b16 %v1466
        %v1604 = vunpack.c.l.b16 %v1467
        %v1605 = vunpack.c.l.b16 %v1468
        %v1606 = vunpack.c.l.b16 %v1469
        %v1607 = vunpack.c.l.b16 %v1470
        %v1608 = vunpack.c.l.b16 %v1471
        %v1609 = vunpack.c.l.b16 %v1472
        %v1610 = vunpack.c.l.b16 %v1473
        %v1611 = vunpack.c.l.b16 %v1474
        %v1612 = vunpack.c.l.b16 %v1475
        %v1613 = vunpack.c.l.b16 %v1476
        %v1614 = vunpack.c.l.b16 %v1477
        %v1615 = vunpack.c.l.b16 %v1478
        %v1616 = vpack.c.b16 %v1601, %v1600
        %v1617 = vpack.c.b16 %v1603, %v1602
        %v1618 = vpack.c.b16 %v1605, %v1604
        %v1619 = vpack.c.b16 %v1607, %v1606
        %v1620 = vpack.c.b16 %v1609, %v1608
        %v1621 = vpack.c.b16 %v1611, %v1610
        %v1622 = vpack.c.b16 %v1613, %v1612
        %v1623 = vpack.c.b16 %v1615, %v1614
        %1632 = vmatprep.subr.bf16.mxu0 0
        %1633 = vmatpush1.bf16.msra.mxu0 %v1479
        %1634 = vmatprep.subr.bf16.mxu0 0
        %1635 = vmatpush1.bf16.msra.mxu0 %v1480
        %1636 = vmatprep.subr.bf16.mxu0 0
        %1637 = vmatpush1.bf16.msra.mxu0 %v1481
        %1638 = vmatprep.subr.bf16.mxu0 0
        %1639 = vmatpush1.bf16.msra.mxu0 %v1482
        %1640 = vmatprep.subr.bf16.mxu0 0
        %1641 = vmatpush1.bf16.msra.mxu0 %v1483
        %1642 = vmatprep.subr.bf16.mxu0 0
        %1643 = vmatpush1.bf16.msra.mxu0 %v1484
        %1644 = vmatprep.subr.bf16.mxu0 0
        %1645 = vmatpush1.bf16.msra.mxu0 %v1485
        %1646 = vmatprep.subr.bf16.mxu0 0
        %1647 = vmatpush1.bf16.msra.mxu0 %v1486
        %1648 = vmatprep.subr.bf16.mxu0 0
        %1649 = vmatpush1.bf16.msra.mxu0 0
        %1650 = vmatprep.subr.bf16.mxu0 0
        %1651 = vmatpush1.bf16.msra.mxu0 0
        %1652 = vmatprep.subr.bf16.mxu0 0
        %1653 = vmatpush1.bf16.msra.mxu0 0
        %1654 = vmatprep.subr.bf16.mxu0 0
        %1655 = vmatpush1.bf16.msra.mxu0 0
        %1656 = vmatprep.subr.bf16.mxu0 0
        %1657 = vmatpush1.bf16.msra.mxu0 0
        %1658 = vmatprep.subr.bf16.mxu0 0
        %1659 = vmatpush1.bf16.msra.mxu0 0
        %1660 = vmatprep.subr.bf16.mxu0 0
        %1661 = vmatpush1.bf16.msra.mxu0 0
        %1662 = vmatprep.subr.bf16.mxu0 0
        %1663 = vmatpush1.bf16.msra.mxu0 0
        %1664 = vmatprep.mubr.bf16.mxu0 0
        %1665 = vmatmul.mubr.bf16.gmra.mrb[0].mxu0 %v1616
        %v1666 = vpop.f32.mrb[0].mxu0
        %v1667 = vadd.f32 %v1507, %v1666
        %v1668 = vpop.f32.mrb[0].mxu0
        %v1669 = vpop.f32.mrb[0].mxu0
        %v1670 = vadd.f32 %v1512, %v1669
        %v1671 = vpop.f32.mrb[0].mxu0
        %1672 = vmatprep.mubr.bf16.mxu0 0
        %1673 = vmatmul.mubr.bf16.gmra.mrb[0].mxu0 %v1617
        %v1674 = vpop.f32.mrb[0].mxu0
        %v1675 = vadd.f32 %v1517, %v1674
        %v1676 = vpop.f32.mrb[0].mxu0
        %v1677 = vpop.f32.mrb[0].mxu0
        %v1678 = vadd.f32 %v1522, %v1677
        %v1679 = vpop.f32.mrb[0].mxu0
        %1680 = vmatprep.mubr.bf16.mxu0 0
        %1681 = vmatmul.mubr.bf16.gmra.mrb[0].mxu0 %v1618
        %v1682 = vpop.f32.mrb[0].mxu0
        %v1683 = vadd.f32 %v1527, %v1682
        %v1684 = vpop.f32.mrb[0].mxu0
        %v1685 = vpop.f32.mrb[0].mxu0
        %v1686 = vadd.f32 %v1532, %v1685
        %v1687 = vpop.f32.mrb[0].mxu0
        %1688 = vmatprep.mubr.bf16.mxu0 0
        %1689 = vmatmul.mubr.bf16.gmra.mrb[0].mxu0 %v1619
        %v1690 = vpop.f32.mrb[0].mxu0
        %v1691 = vadd.f32 %v1537, %v1690
        %v1692 = vpop.f32.mrb[0].mxu0
        %v1693 = vpop.f32.mrb[0].mxu0
        %v1694 = vadd.f32 %v1542, %v1693
        %v1695 = vpop.f32.mrb[0].mxu0
        %1696 = vmatprep.mubr.bf16.mxu0 0
        %1697 = vmatmul.mubr.bf16.gmra.mrb[0].mxu0 %v1620
        %v1698 = vpop.f32.mrb[0].mxu0
        %v1699 = vadd.f32 %v1547, %v1698
        %v1700 = vpop.f32.mrb[0].mxu0
        %v1701 = vpop.f32.mrb[0].mxu0
        %v1702 = vadd.f32 %v1552, %v1701
        %v1703 = vpop.f32.mrb[0].mxu0
        %1704 = vmatprep.mubr.bf16.mxu0 0
        %1705 = vmatmul.mubr.bf16.gmra.mrb[0].mxu0 %v1621
        %v1706 = vpop.f32.mrb[0].mxu0
        %v1707 = vadd.f32 %v1557, %v1706
        %v1708 = vpop.f32.mrb[0].mxu0
        %v1709 = vpop.f32.mrb[0].mxu0
        %v1710 = vadd.f32 %v1562, %v1709
        %v1711 = vpop.f32.mrb[0].mxu0
        %1712 = vmatprep.mubr.bf16.mxu0 0
        %1713 = vmatmul.mubr.bf16.gmra.mrb[0].mxu0 %v1622
        %v1714 = vpop.f32.mrb[0].mxu0
        %v1715 = vadd.f32 %v1567, %v1714
        %v1716 = vpop.f32.mrb[0].mxu0
        %v1717 = vpop.f32.mrb[0].mxu0
        %v1718 = vadd.f32 %v1572, %v1717
        %v1719 = vpop.f32.mrb[0].mxu0
        %1720 = vmatprep.mubr.bf16.mxu0 0
        %1721 = vmatmul.mubr.bf16.gmra.mrb[0].mxu0 %v1623
        %v1722 = vpop.f32.mrb[0].mxu0
        %v1723 = vadd.f32 %v1577, %v1722
        %v1724 = vpop.f32.mrb[0].mxu0
        %v1725 = vpop.f32.mrb[0].mxu0
        %v1726 = vadd.f32 %v1582, %v1725
        %v1727 = vpop.f32.mrb[0].mxu0
        %1728 = vdwg.mxu0
        %v1729 = vpack.c.bf16 %v1670, %v1667
        %v1730 = vpack.c.bf16 %v1678, %v1675
        %v1731 = vpack.c.bf16 %v1686, %v1683
        %v1732 = vpack.c.bf16 %v1694, %v1691
        %v1733 = vpack.c.bf16 %v1702, %v1699
        %v1734 = vpack.c.bf16 %v1710, %v1707
        %v1735 = vpack.c.bf16 %v1718, %v1715
        %v1736 = vpack.c.bf16 %v1726, %v1723
        %1737 = vst.msk [vmem:[#allocation2] sm:$0xff] %vm889, %v1729
        %1738 = vst.msk [vmem:[#allocation2 + $0x8] sm:$0xff] %vm889, %v1730
        %1739 = vst.msk [vmem:[#allocation2 + $0x10] sm:$0xff] %vm889, %v1731
        %1740 = vst.msk [vmem:[#allocation2 + $0x18] sm:$0xff] %vm889, %v1732
        %1741 = vst.msk [vmem:[#allocation2 + $0x20] sm:$0xff] %vm889, %v1733
        %1742 = vst.msk [vmem:[#allocation2 + $0x28] sm:$0xff] %vm889, %v1734
        %1743 = vst.msk [vmem:[#allocation2 + $0x30] sm:$0xff] %vm889, %v1735
        %1744 = vst.msk [vmem:[#allocation2 + $0x38] sm:$0xff] %vm889, %v1736
        %s1745 = scalar_lea.vmem %s5, 192
        %v1746 = vld [vmem:[%s1745] sm:$0xf]
        %v1747 = vld [vmem:[%s1745 + $0x4] sm:$0xf]
        %v1748 = vld [vmem:[%s1745 + $0x8] sm:$0xf]
        %v1749 = vld [vmem:[%s1745 + $0xc] sm:$0xf]
        %v1750 = vld [vmem:[%s1745 + $0x10] sm:$0xf]
        %v1751 = vld [vmem:[%s1745 + $0x14] sm:$0xf]
        %v1752 = vld [vmem:[%s1745 + $0x18] sm:$0xf]
        %v1753 = vld [vmem:[%s1745 + $0x1c] sm:$0xf]
        %v1754 = vld [vmem:[%s1745 + $0x20] sm:$0xf]
        %v1755 = vld [vmem:[%s1745 + $0x24] sm:$0xf]
        %v1756 = vld [vmem:[%s1745 + $0x28] sm:$0xf]
        %v1757 = vld [vmem:[%s1745 + $0x2c] sm:$0xf]
        %v1758 = vld [vmem:[%s1745 + $0x30] sm:$0xf]
        %v1759 = vld [vmem:[%s1745 + $0x34] sm:$0xf]
        %v1760 = vld [vmem:[%s1745 + $0x38] sm:$0xf]
        %v1761 = vld [vmem:[%s1745 + $0x3c] sm:$0xf]
        %v1762 = vld [vmem:[#allocation2] sm:$0xff]
        %v1763 = vld [vmem:[#allocation2 + $0x8] sm:$0xff]
        %v1764 = vld [vmem:[#allocation2 + $0x10] sm:$0xff]
        %v1765 = vld [vmem:[#allocation2 + $0x18] sm:$0xff]
        %v1766 = vld [vmem:[#allocation2 + $0x20] sm:$0xff]
        %v1767 = vld [vmem:[#allocation2 + $0x28] sm:$0xff]
        %v1768 = vld [vmem:[#allocation2 + $0x30] sm:$0xff]
        %v1769 = vld [vmem:[#allocation2 + $0x38] sm:$0xff]
        %s1770 = scalar_lea.vmem %s6, 384
        %v1771 = vld [vmem:[%s1770] sm:$0xff]
        %v1772 = vld [vmem:[%s1770 + $0x8] sm:$0xff]
        %v1773 = vld [vmem:[%s1770 + $0x10] sm:$0xff]
        %v1774 = vld [vmem:[%s1770 + $0x18] sm:$0xff]
        %v1775 = vld [vmem:[%s1770 + $0x20] sm:$0xff]
        %v1776 = vld [vmem:[%s1770 + $0x28] sm:$0xff]
        %v1777 = vld [vmem:[%s1770 + $0x30] sm:$0xff]
        %v1778 = vld [vmem:[%s1770 + $0x38] sm:$0xff]
        %v1779 = vld [vmem:[%s1770 + $0x40] sm:$0xff]
        %v1780 = vld [vmem:[%s1770 + $0x48] sm:$0xff]
        %v1781 = vld [vmem:[%s1770 + $0x50] sm:$0xff]
        %v1782 = vld [vmem:[%s1770 + $0x58] sm:$0xff]
        %v1783 = vld [vmem:[%s1770 + $0x60] sm:$0xff]
        %v1784 = vld [vmem:[%s1770 + $0x68] sm:$0xff]
        %v1785 = vld [vmem:[%s1770 + $0x70] sm:$0xff]
        %v1786 = vld [vmem:[%s1770 + $0x78] sm:$0xff]
        %1788 = vset.pattern.permute.xlu0 0
        %1789 = vperm.xlu0 %1788, %v1771
        %v1790 = vpop.permute.xlu0 %1789
        %1793 = vset.pattern.permute.xlu0 0
        %1794 = vperm.xlu0 %1793, %v1772
        %v1795 = vpop.permute.xlu0 %1794
        %1798 = vset.pattern.permute.xlu0 0
        %1799 = vperm.xlu0 %1798, %v1773
        %v1800 = vpop.permute.xlu0 %1799
        %1803 = vset.pattern.permute.xlu0 0
        %1804 = vperm.xlu0 %1803, %v1774
        %v1805 = vpop.permute.xlu0 %1804
        %1808 = vset.pattern.permute.xlu0 0
        %1809 = vperm.xlu0 %1808, %v1775
        %v1810 = vpop.permute.xlu0 %1809
        %1813 = vset.pattern.permute.xlu0 0
        %1814 = vperm.xlu0 %1813, %v1776
        %v1815 = vpop.permute.xlu0 %1814
        %1818 = vset.pattern.permute.xlu0 0
        %1819 = vperm.xlu0 %1818, %v1777
        %v1820 = vpop.permute.xlu0 %1819
        %1823 = vset.pattern.permute.xlu0 0
        %1824 = vperm.xlu0 %1823, %v1778
        %v1825 = vpop.permute.xlu0 %1824
        %1828 = vset.pattern.permute.xlu0 0
        %1829 = vperm.xlu0 %1828, %v1779
        %v1830 = vpop.permute.xlu0 %1829
        %1833 = vset.pattern.permute.xlu0 0
        %1834 = vperm.xlu0 %1833, %v1780
        %v1835 = vpop.permute.xlu0 %1834
        %1838 = vset.pattern.permute.xlu0 0
        %1839 = vperm.xlu0 %1838, %v1781
        %v1840 = vpop.permute.xlu0 %1839
        %1843 = vset.pattern.permute.xlu0 0
        %1844 = vperm.xlu0 %1843, %v1782
        %v1845 = vpop.permute.xlu0 %1844
        %1848 = vset.pattern.permute.xlu0 0
        %1849 = vperm.xlu0 %1848, %v1783
        %v1850 = vpop.permute.xlu0 %1849
        %1853 = vset.pattern.permute.xlu0 0
        %1854 = vperm.xlu0 %1853, %v1784
        %v1855 = vpop.permute.xlu0 %1854
        %1858 = vset.pattern.permute.xlu0 0
        %1859 = vperm.xlu0 %1858, %v1785
        %v1860 = vpop.permute.xlu0 %1859
        %1863 = vset.pattern.permute.xlu0 0
        %1864 = vperm.xlu0 %1863, %v1786
        %v1865 = vpop.permute.xlu0 %1864
        %v1883 = vunpack.c.l.b16 %v1746
        %v1884 = vunpack.c.l.b16 %v1747
        %v1885 = vunpack.c.l.b16 %v1748
        %v1886 = vunpack.c.l.b16 %v1749
        %v1887 = vunpack.c.l.b16 %v1750
        %v1888 = vunpack.c.l.b16 %v1751
        %v1889 = vunpack.c.l.b16 %v1752
        %v1890 = vunpack.c.l.b16 %v1753
        %v1891 = vunpack.c.l.b16 %v1754
        %v1892 = vunpack.c.l.b16 %v1755
        %v1893 = vunpack.c.l.b16 %v1756
        %v1894 = vunpack.c.l.b16 %v1757
        %v1895 = vunpack.c.l.b16 %v1758
        %v1896 = vunpack.c.l.b16 %v1759
        %v1897 = vunpack.c.l.b16 %v1760
        %v1898 = vunpack.c.l.b16 %v1761
        %v1899 = vpack.c.b16 %v1884, %v1883
        %v1900 = vpack.c.b16 %v1886, %v1885
        %v1901 = vpack.c.b16 %v1888, %v1887
        %v1902 = vpack.c.b16 %v1890, %v1889
        %v1903 = vpack.c.b16 %v1892, %v1891
        %v1904 = vpack.c.b16 %v1894, %v1893
        %v1905 = vpack.c.b16 %v1896, %v1895
        %v1906 = vpack.c.b16 %v1898, %v1897
        %1915 = vmatprep.subr.bf16.mxu0 0
        %1916 = vmatpush1.bf16.msra.mxu0 %v1762
        %1917 = vmatprep.subr.bf16.mxu0 0
        %1918 = vmatpush1.bf16.msra.mxu0 %v1763
        %1919 = vmatprep.subr.bf16.mxu0 0
        %1920 = vmatpush1.bf16.msra.mxu0 %v1764
        %1921 = vmatprep.subr.bf16.mxu0 0
        %1922 = vmatpush1.bf16.msra.mxu0 %v1765
        %1923 = vmatprep.subr.bf16.mxu0 0
        %1924 = vmatpush1.bf16.msra.mxu0 %v1766
        %1925 = vmatprep.subr.bf16.mxu0 0
        %1926 = vmatpush1.bf16.msra.mxu0 %v1767
        %1927 = vmatprep.subr.bf16.mxu0 0
        %1928 = vmatpush1.bf16.msra.mxu0 %v1768
        %1929 = vmatprep.subr.bf16.mxu0 0
        %1930 = vmatpush1.bf16.msra.mxu0 %v1769
        %1931 = vmatprep.subr.bf16.mxu0 0
        %1932 = vmatpush1.bf16.msra.mxu0 0
        %1933 = vmatprep.subr.bf16.mxu0 0
        %1934 = vmatpush1.bf16.msra.mxu0 0
        %1935 = vmatprep.subr.bf16.mxu0 0
        %1936 = vmatpush1.bf16.msra.mxu0 0
        %1937 = vmatprep.subr.bf16.mxu0 0
        %1938 = vmatpush1.bf16.msra.mxu0 0
        %1939 = vmatprep.subr.bf16.mxu0 0
        %1940 = vmatpush1.bf16.msra.mxu0 0
        %1941 = vmatprep.subr.bf16.mxu0 0
        %1942 = vmatpush1.bf16.msra.mxu0 0
        %1943 = vmatprep.subr.bf16.mxu0 0
        %1944 = vmatpush1.bf16.msra.mxu0 0
        %1945 = vmatprep.subr.bf16.mxu0 0
        %1946 = vmatpush1.bf16.msra.mxu0 0
        %1947 = vmatprep.mubr.bf16.mxu0 0
        %1948 = vmatmul.mubr.bf16.gmra.mrb[0].mxu0 %v1899
        %v1949 = vpop.f32.mrb[0].mxu0
        %v1950 = vadd.f32 %v1790, %v1949
        %v1951 = vpop.f32.mrb[0].mxu0
        %v1952 = vpop.f32.mrb[0].mxu0
        %v1953 = vadd.f32 %v1795, %v1952
        %v1954 = vpop.f32.mrb[0].mxu0
        %1955 = vmatprep.mubr.bf16.mxu0 0
        %1956 = vmatmul.mubr.bf16.gmra.mrb[0].mxu0 %v1900
        %v1957 = vpop.f32.mrb[0].mxu0
        %v1958 = vadd.f32 %v1800, %v1957
        %v1959 = vpop.f32.mrb[0].mxu0
        %v1960 = vpop.f32.mrb[0].mxu0
        %v1961 = vadd.f32 %v1805, %v1960
        %v1962 = vpop.f32.mrb[0].mxu0
        %1963 = vmatprep.mubr.bf16.mxu0 0
        %1964 = vmatmul.mubr.bf16.gmra.mrb[0].mxu0 %v1901
        %v1965 = vpop.f32.mrb[0].mxu0
        %v1966 = vadd.f32 %v1810, %v1965
        %v1967 = vpop.f32.mrb[0].mxu0
        %v1968 = vpop.f32.mrb[0].mxu0
        %v1969 = vadd.f32 %v1815, %v1968
        %v1970 = vpop.f32.mrb[0].mxu0
        %1971 = vmatprep.mubr.bf16.mxu0 0
        %1972 = vmatmul.mubr.bf16.gmra.mrb[0].mxu0 %v1902
        %v1973 = vpop.f32.mrb[0].mxu0
        %v1974 = vadd.f32 %v1820, %v1973
        %v1975 = vpop.f32.mrb[0].mxu0
        %v1976 = vpop.f32.mrb[0].mxu0
        %v1977 = vadd.f32 %v1825, %v1976
        %v1978 = vpop.f32.mrb[0].mxu0
        %1979 = vmatprep.mubr.bf16.mxu0 0
        %1980 = vmatmul.mubr.bf16.gmra.mrb[0].mxu0 %v1903
        %v1981 = vpop.f32.mrb[0].mxu0
        %v1982 = vadd.f32 %v1830, %v1981
        %v1983 = vpop.f32.mrb[0].mxu0
        %v1984 = vpop.f32.mrb[0].mxu0
        %v1985 = vadd.f32 %v1835, %v1984
        %v1986 = vpop.f32.mrb[0].mxu0
        %1987 = vmatprep.mubr.bf16.mxu0 0
        %1988 = vmatmul.mubr.bf16.gmra.mrb[0].mxu0 %v1904
        %v1989 = vpop.f32.mrb[0].mxu0
        %v1990 = vadd.f32 %v1840, %v1989
        %v1991 = vpop.f32.mrb[0].mxu0
        %v1992 = vpop.f32.mrb[0].mxu0
        %v1993 = vadd.f32 %v1845, %v1992
        %v1994 = vpop.f32.mrb[0].mxu0
        %1995 = vmatprep.mubr.bf16.mxu0 0
        %1996 = vmatmul.mubr.bf16.gmra.mrb[0].mxu0 %v1905
        %v1997 = vpop.f32.mrb[0].mxu0
        %v1998 = vadd.f32 %v1850, %v1997
        %v1999 = vpop.f32.mrb[0].mxu0
        %v2000 = vpop.f32.mrb[0].mxu0
        %v2001 = vadd.f32 %v1855, %v2000
        %v2002 = vpop.f32.mrb[0].mxu0
        %2003 = vmatprep.mubr.bf16.mxu0 0
        %2004 = vmatmul.mubr.bf16.gmra.mrb[0].mxu0 %v1906
        %v2005 = vpop.f32.mrb[0].mxu0
        %v2006 = vadd.f32 %v1860, %v2005
        %v2007 = vpop.f32.mrb[0].mxu0
        %v2008 = vpop.f32.mrb[0].mxu0
        %v2009 = vadd.f32 %v1865, %v2008
        %v2010 = vpop.f32.mrb[0].mxu0
        %2011 = vdwg.mxu0
        %v2012 = vpack.c.bf16 %v1953, %v1950
        %v2013 = vpack.c.bf16 %v1961, %v1958
        %v2014 = vpack.c.bf16 %v1969, %v1966
        %v2015 = vpack.c.bf16 %v1977, %v1974
        %v2016 = vpack.c.bf16 %v1985, %v1982
        %v2017 = vpack.c.bf16 %v1993, %v1990
        %v2018 = vpack.c.bf16 %v2001, %v1998
        %v2019 = vpack.c.bf16 %v2009, %v2006
        %2020 = vst.msk [vmem:[#allocation2] sm:$0xff] %vm889, %v2012
        %2021 = vst.msk [vmem:[#allocation2 + $0x8] sm:$0xff] %vm889, %v2013
        %2022 = vst.msk [vmem:[#allocation2 + $0x10] sm:$0xff] %vm889, %v2014
        %2023 = vst.msk [vmem:[#allocation2 + $0x18] sm:$0xff] %vm889, %v2015
        %2024 = vst.msk [vmem:[#allocation2 + $0x20] sm:$0xff] %vm889, %v2016
        %2025 = vst.msk [vmem:[#allocation2 + $0x28] sm:$0xff] %vm889, %v2017
        %2026 = vst.msk [vmem:[#allocation2 + $0x30] sm:$0xff] %vm889, %v2018
        %2027 = vst.msk [vmem:[#allocation2 + $0x38] sm:$0xff] %vm889, %v2019
        %v2028 = vld [vmem:[%s7] sm:$0x1]
        %v2029 = vld [vmem:[#allocation2] sm:$0xff]
        %v2030 = vld [vmem:[#allocation2 + $0x8] sm:$0xff]
        %v2031 = vld [vmem:[#allocation2 + $0x10] sm:$0xff]
        %v2032 = vld [vmem:[#allocation2 + $0x18] sm:$0xff]
        %v2033 = vld [vmem:[#allocation2 + $0x20] sm:$0xff]
        %v2034 = vld [vmem:[#allocation2 + $0x28] sm:$0xff]
        %v2035 = vld [vmem:[#allocation2 + $0x30] sm:$0xff]
        %v2036 = vld [vmem:[#allocation2 + $0x38] sm:$0xff]
        %v2037 = vld [vmem:[#allocation3] sm:$0x1]
        %2039 = vset.pattern.permute.xlu0 0
        %2040 = vperm.xlu0 %2039, %v2037
        %v2041 = vpop.permute.xlu0 %2040
        %v2043 = vlaneseq
        %v2044 = vshrl.u32 %v2043, 7
        %v2045 = vsub.s32 0, %v2044
        %v2046 = vrot.slane %v2041, %v2045
        %2047 = vmatprep.subr.bf16.mxu0 0
        %2048 = vmatpush1.bf16.msra.mxu0 %v2029
        %2049 = vmatprep.subr.bf16.mxu0 0
        %2050 = vmatpush1.bf16.msra.mxu0 %v2030
        %2051 = vmatprep.subr.bf16.mxu0 0
        %2052 = vmatpush1.bf16.msra.mxu0 %v2031
        %2053 = vmatprep.subr.bf16.mxu0 0
        %2054 = vmatpush1.bf16.msra.mxu0 %v2032
        %2055 = vmatprep.subr.bf16.mxu0 0
        %2056 = vmatpush1.bf16.msra.mxu0 %v2033
        %2057 = vmatprep.subr.bf16.mxu0 0
        %2058 = vmatpush1.bf16.msra.mxu0 %v2034
        %2059 = vmatprep.subr.bf16.mxu0 0
        %2060 = vmatpush1.bf16.msra.mxu0 %v2035
        %2061 = vmatprep.subr.bf16.mxu0 0
        %2062 = vmatpush1.bf16.msra.mxu0 %v2036
        %2063 = vmatprep.subr.bf16.mxu0 0
        %2064 = vmatpush1.bf16.msra.mxu0 0
        %2065 = vmatprep.subr.bf16.mxu0 0
        %2066 = vmatpush1.bf16.msra.mxu0 0
        %2067 = vmatprep.subr.bf16.mxu0 0
        %2068 = vmatpush1.bf16.msra.mxu0 0
        %2069 = vmatprep.subr.bf16.mxu0 0
        %2070 = vmatpush1.bf16.msra.mxu0 0
        %2071 = vmatprep.subr.bf16.mxu0 0
        %2072 = vmatpush1.bf16.msra.mxu0 0
        %2073 = vmatprep.subr.bf16.mxu0 0
        %2074 = vmatpush1.bf16.msra.mxu0 0
        %2075 = vmatprep.subr.bf16.mxu0 0
        %2076 = vmatpush1.bf16.msra.mxu0 0
        %2077 = vmatprep.subr.bf16.mxu0 0
        %2078 = vmatpush1.bf16.msra.mxu0 0
        %2079 = vmatprep.mubr.bf16.mxu0 0
        %2080 = vmatmul.mubr.bf16.gmra.mrb[0].mxu0 %v2028
        %v2081 = vpop.f32.mrb[0].mxu0
        %v2082 = vadd.f32 %v2046, %v2081
        %v2083 = vpop.f32.mrb[0].mxu0
        %v2084 = vpop.f32.mrb[0].mxu0
        %v2085 = vpop.f32.mrb[0].mxu0
        %2086 = vdwg.mxu0
        %vm2087 = vcmask 516096
        %2088 = vst.msk [vmem:[%s361] sm:$0x1] %vm2087, %v2082
        %s2089 = sand.u32 %s248, 1
        %s2090 = scalar_lea.sflag [#allocation5], %s2089
        %s2091 = sand.u32 %s248, 1
        %s2092 = scalar_lea.vmem [#allocation4], %s2091
        // Predicated region
        $region57: #{tpu_custom_call.1} parent=55 // pred_check
          %p2093 = pneg %p258
        $region58: #{tpu_custom_call.1} parent=55 // pred_check_branch
          %2095 = sbr.rel (%p2093) target = $region60
        $region59: #{tpu_custom_call.1} parent=55 // pred_region
          %s2097 = ssub.s32 16, 16
          %2098 = vsyncadd %s2090, %s2097
          %s2099 = sadd.s32 %s30, %s29
          %s2100 = smul.addr %s2099, 16
          %s2101 = scalar_lea.hbm %s9, %s2100
          %s2103 = sshll.u32 %s2092, 4
          %s2104 = int_to_ptr.vmem [resolvable:$true] %s2103
          %2106 = dma.vmem_to_hbm [thread:$0]  %s2104, 16, %s2101, %s2090
        $region60: #{tpu_custom_call.1} parent=55 // pred_fallthru
          _
      $region56: #{tpu_custom_call.1} parent=5 // pred_fallthru
        _
      %p2107 = scmp.le.s32.totalorder 2, %s20
      // Predicated region
      $region61: #{tpu_custom_call.1} parent=5 // pred_check
        %p2108 = pneg %p2107
      $region62: #{tpu_custom_call.1} parent=5 // pred_check_branch
        %2110 = sbr.rel (%p2108) target = $region64
      $region63: #{tpu_custom_call.1} parent=5 // pred_region
        %s2111 = ssub.s32 %s20, 2
        // Predicated region
        $region65: #{tpu_custom_call.1} parent=63 // pred_check
          %p2112 = pneg %p264
        $region66: #{tpu_custom_call.1} parent=63 // pred_check_branch
          %2114 = sbr.rel (%p2112) target = $region68
        $region67: #{tpu_custom_call.1} parent=63 // pred_region
          %s2115 = sand.u32 %s249, 1
          %s2116 = scalar_lea.sflag [#allocation5], %s2115
          %s2117 = sand.u32 %s249, 1
          %s2118 = scalar_lea.vmem [#allocation4], %s2117
          %2119 = dma.done %s2116, 16
        $region68: #{tpu_custom_call.1} parent=63 // pred_fallthru
          _
      $region64: #{tpu_custom_call.1} parent=5 // pred_fallthru
        _
    $region6: #{tpu_custom_call.1} parent=1 // loop_footer
      %s24 = sadd.s32 1, %s20
    $region7: #{tpu_custom_call.1} parent=1 // loop_footer_branch
      %19 = sbr.rel target = $region3
    $region8: #{tpu_custom_call.1} parent=1 // loop_exit
      _
    %2120 = vsyncpa [#allocation5], 1
    %s2121 = scalar_lea.sflag [#allocation5], 1
    %2122 = vsyncpa %s2121, 1

// kernel: tpu_custom_call.1
$region0: #{tpu_custom_call.1}
  #allocation0 [shape = 'u32[]', space=smem, size = 0x4, offset = 0x4, fixed_abs, tag = 'smem constant byte address 0x4 - core index']
  #allocation1 [shape = 'u32[144,128]{1,0:T(1,128)}', space=vmem, size = 0x12000, scoped, tag = 'internal scratch']
  #allocation2 [shape = 'bf16[128,64]{1,0:T(16,128)(2,1)}', space=vmem, size = 0x8000, scoped, tag = 'scratch operand']
  #allocation3 [shape = 'f32[1,1]{1,0:T(1,128)S(1)}', space=vmem, size = 0x200, scoped, tag = 'scoped memory for tpu_custom_call.1']
  %s0 = inlined_call_operand.vmem [shape: f32[2,2,64], index: 0, kind: input, shape index: {}]
  %s1 = inlined_call_operand.vmem [shape: f32[2,128,1], index: 1, kind: input, shape index: {}]
  %s2 = inlined_call_operand.vmem [shape: f32[8,1], index: 2, kind: input, shape index: {}]
  %s3 = inlined_call_operand.vmem [shape: f32[8,1], index: 3, kind: input, shape index: {}]
  %s4 = inlined_call_operand.vmem [shape: bf16[128,16], index: 4, kind: input, shape index: {}]
  %s5 = inlined_call_operand.vmem [shape: bf16[4,128,128], index: 5, kind: input, shape index: {}]
  %s6 = inlined_call_operand.vmem [shape: f32[4,128,1], index: 6, kind: input, shape index: {}]
  %s7 = inlined_call_operand.vmem [shape: bf16[1,128], index: 7, kind: input, shape index: {}]
  %s8 = inlined_call_operand.<no memory space> [shape: f32[1,1], index: 8, kind: input, shape index: {}]
  %s9 = inlined_call_operand.hbm [shape: f32[2,1,64], index: 9, kind: output, shape index: {}]
  %s10 = sld [smem:[#allocation0]]
  $region69: #{tpu_custom_call.1} parent=0
    _
  %s12 = ssub.s32 1, %s10
  %s13 = scalar_select 0, %s12, %s10
  %v14 = vstv %s8
  %15 = vst [vmem:[#allocation3] sm:$0x1] %v14
  $region1: #{tpu_custom_call.1} parent=0
    #allocation4 [shape = 'u8[1024]{0}', space=vmem, size = 0x400, scoped, tag = 'output window, operand 0']
    #allocation5 [shape = 's32[2]{0}', space=sflag, size = 0x8, scoped, tag = 'scoped memory for tpu_custom_call.1']
    %16 = vsyncpa [#allocation5], 0
    %s17 = scalar_lea.sflag [#allocation5], 1
    %18 = vsyncpa %s17, 0
    loop: start=0, step=1, limit=4
    $region2: #{tpu_custom_call.1} parent=1 // loop_pre_header
      _
    $region3: #{tpu_custom_call.1} parent=1 // loop_header
      %s20 = sphi 0, %s24
      %p21 = scmp.ge.s32.totalorder %s20, 4
      %s27 = sphi 0, %s39
      %s28 = sphi 0, %s35
      %s29 = sphi 0, %s27
      %s30 = sphi 0, %s28
      %s31 = sphi 0, %s29
      %s32 = sphi 0, %s30
      %s44 = sphi 0, %s46
      %s47 = sphi 0, %s44
      %s48 = sphi 0, %s47
      %s64 = sphi 0, %s48
      %s70 = sphi 0, %s72
      %s73 = sphi 0, %s70
      %s74 = sphi 0, %s73
      %s90 = sphi 0, %s74
      %s94 = sphi 0, %s94
      %s96 = sphi 0, %s94
      %s97 = sphi 0, %s96
      %s111 = sphi 0, %s97
      %s115 = sphi 0, %s115
      %s117 = sphi 0, %s115
      %s118 = sphi 0, %s117
      %s132 = sphi 0, %s118
      %s136 = sphi 0, %s136
      %s138 = sphi 0, %s136
      %s139 = sphi 0, %s138
      %s153 = sphi 0, %s139
      %s157 = sphi 0, %s157
      %s159 = sphi 0, %s157
      %s160 = sphi 0, %s159
      %s174 = sphi 0, %s160
      %s178 = sphi 0, %s178
      %s180 = sphi 0, %s178
      %s181 = sphi 0, %s180
      %s195 = sphi 0, %s181
      %s199 = sphi 0, %s199
      %s201 = sphi 0, %s199
      %s202 = sphi 0, %s201
      %s216 = sphi 0, %s202
      %s220 = sphi 0, %s220
      %s222 = sphi 0, %s220
      %s223 = sphi 0, %s222
      %s237 = sphi 0, %s223
      %s245 = sphi 0, %s247
      %s248 = sphi 0, %s245
      %s249 = sphi 0, %s248
      %s265 = sphi 0, %s249
    $region4: #{tpu_custom_call.1} parent=1 // loop_header_branch
      %23 = sbr.rel (%p21) target = $region8
    $region5: #{tpu_custom_call.1} parent=1 // loop_body
      %s25 = ssub.s32 %s20, 1
      %s26 = ssub.s32 %s20, 2
      %s33 = sadd.s32 1, %s28
      %p34 = scmp.ge.s32.totalorder %s33, 1
      %s35 = scalar_select %p34, 0, %s33
      %s36 = sadd.s32 1, %s27
      %s37 = scalar_select %p34, %s36, %s27
      %p38 = scmp.ge.s32.totalorder %s37, 2
      %s39 = scalar_select %p38, 0, %s37
      %s40 = ssub.s32 %s27, %s39
      %s41 = ssub.s32 %s28, %s35
      %s42 = sor.u32 %s40, %s41
      %p43 = scmp.eq.s32.totalorder %s42, 0
      %s45 = sadd.s32 %s44, 1
      %s46 = scalar_select %p43, %s44, %s45
      %p49 = pneg %p43
      %p50 = scmp.eq.s32.totalorder %s20, 1
      %p51 = por %p49, %p50
      %p52 = scmp.ne.s32.totalorder %s44, %s47
      %p53 = scmp.eq.s32.totalorder %s20, 0
      %p54 = por %p52, %p53
      %p55 = scmp.ne.s32.totalorder %s44, %s47
      %p56 = scmp.eq.s32.totalorder %s25, 1
      %p57 = por %p55, %p56
      %p58 = scmp.ne.s32.totalorder %s47, %s48
      %p59 = scmp.eq.s32.totalorder %s25, 0
      %p60 = por %p58, %p59
      %p61 = scmp.ne.s32.totalorder %s47, %s48
      %p62 = scmp.eq.s32.totalorder %s26, 1
      %p63 = por %p61, %p62
      %p65 = scmp.ne.s32.totalorder %s48, %s64
      %p66 = scmp.eq.s32.totalorder %s26, 0
      %p67 = por %p65, %p66
      %s68 = ssub.s32 %s27, %s39
      %p69 = scmp.eq.s32.totalorder %s68, 0
      %s71 = sadd.s32 %s70, 1
      %s72 = scalar_select %p69, %s70, %s71
      %p75 = pneg %p69
      %p76 = scmp.eq.s32.totalorder %s20, 1
      %p77 = por %p75, %p76
      %p78 = scmp.ne.s32.totalorder %s70, %s73
      %p79 = scmp.eq.s32.totalorder %s20, 0
      %p80 = por %p78, %p79
      %p81 = scmp.ne.s32.totalorder %s70, %s73
      %p82 = scmp.eq.s32.totalorder %s25, 1
      %p83 = por %p81, %p82
      %p84 = scmp.ne.s32.totalorder %s73, %s74
      %p85 = scmp.eq.s32.totalorder %s25, 0
      %p86 = por %p84, %p85
      %p87 = scmp.ne.s32.totalorder %s73, %s74
      %p88 = scmp.eq.s32.totalorder %s26, 1
      %p89 = por %p87, %p88
      %p91 = scmp.ne.s32.totalorder %s74, %s90
      %p92 = scmp.eq.s32.totalorder %s26, 0
      %p93 = por %p91, %p92
      %s95 = sadd.s32 %s94, 1
      %p98 = scmp.eq.s32.totalorder %s20, 1
      %p99 = scmp.ne.s32.totalorder %s94, %s96
      %p100 = scmp.eq.s32.totalorder %s20, 0
      %p101 = por %p99, %p100
      %p102 = scmp.ne.s32.totalorder %s94, %s96
      %p103 = scmp.eq.s32.totalorder %s25, 1
      %p104 = por %p102, %p103
      %p105 = scmp.ne.s32.totalorder %s96, %s97
      %p106 = scmp.eq.s32.totalorder %s25, 0
      %p107 = por %p105, %p106
      %p108 = scmp.ne.s32.totalorder %s96, %s97
      %p109 = scmp.eq.s32.totalorder %s26, 1
      %p110 = por %p108, %p109
      %p112 = scmp.ne.s32.totalorder %s97, %s111
      %p113 = scmp.eq.s32.totalorder %s26, 0
      %p114 = por %p112, %p113
      %s116 = sadd.s32 %s115, 1
      %p119 = scmp.eq.s32.totalorder %s20, 1
      %p120 = scmp.ne.s32.totalorder %s115, %s117
      %p121 = scmp.eq.s32.totalorder %s20, 0
      %p122 = por %p120, %p121
      %p123 = scmp.ne.s32.totalorder %s115, %s117
      %p124 = scmp.eq.s32.totalorder %s25, 1
      %p125 = por %p123, %p124
      %p126 = scmp.ne.s32.totalorder %s117, %s118
      %p127 = scmp.eq.s32.totalorder %s25, 0
      %p128 = por %p126, %p127
      %p129 = scmp.ne.s32.totalorder %s117, %s118
      %p130 = scmp.eq.s32.totalorder %s26, 1
      %p131 = por %p129, %p130
      %p133 = scmp.ne.s32.totalorder %s118, %s132
      %p134 = scmp.eq.s32.totalorder %s26, 0
      %p135 = por %p133, %p134
      %s137 = sadd.s32 %s136, 1
      %p140 = scmp.eq.s32.totalorder %s20, 1
      %p141 = scmp.ne.s32.totalorder %s136, %s138
      %p142 = scmp.eq.s32.totalorder %s20, 0
      %p143 = por %p141, %p142
      %p144 = scmp.ne.s32.totalorder %s136, %s138
      %p145 = scmp.eq.s32.totalorder %s25, 1
      %p146 = por %p144, %p145
      %p147 = scmp.ne.s32.totalorder %s138, %s139
      %p148 = scmp.eq.s32.totalorder %s25, 0
      %p149 = por %p147, %p148
      %p150 = scmp.ne.s32.totalorder %s138, %s139
      %p151 = scmp.eq.s32.totalorder %s26, 1
      %p152 = por %p150, %p151
      %p154 = scmp.ne.s32.totalorder %s139, %s153
      %p155 = scmp.eq.s32.totalorder %s26, 0
      %p156 = por %p154, %p155
      %s158 = sadd.s32 %s157, 1
      %p161 = scmp.eq.s32.totalorder %s20, 1
      %p162 = scmp.ne.s32.totalorder %s157, %s159
      %p163 = scmp.eq.s32.totalorder %s20, 0
      %p164 = por %p162, %p163
      %p165 = scmp.ne.s32.totalorder %s157, %s159
      %p166 = scmp.eq.s32.totalorder %s25, 1
      %p167 = por %p165, %p166
      %p168 = scmp.ne.s32.totalorder %s159, %s160
      %p169 = scmp.eq.s32.totalorder %s25, 0
      %p170 = por %p168, %p169
      %p171 = scmp.ne.s32.totalorder %s159, %s160
      %p172 = scmp.eq.s32.totalorder %s26, 1
      %p173 = por %p171, %p172
      %p175 = scmp.ne.s32.totalorder %s160, %s174
      %p176 = scmp.eq.s32.totalorder %s26, 0
      %p177 = por %p175, %p176
      %s179 = sadd.s32 %s178, 1
      %p182 = scmp.eq.s32.totalorder %s20, 1
      %p183 = scmp.ne.s32.totalorder %s178, %s180
      %p184 = scmp.eq.s32.totalorder %s20, 0
      %p185 = por %p183, %p184
      %p186 = scmp.ne.s32.totalorder %s178, %s180
      %p187 = scmp.eq.s32.totalorder %s25, 1
      %p188 = por %p186, %p187
      %p189 = scmp.ne.s32.totalorder %s180, %s181
      %p190 = scmp.eq.s32.totalorder %s25, 0
      %p191 = por %p189, %p190
      %p192 = scmp.ne.s32.totalorder %s180, %s181
      %p193 = scmp.eq.s32.totalorder %s26, 1
      %p194 = por %p192, %p193
      %p196 = scmp.ne.s32.totalorder %s181, %s195
      %p197 = scmp.eq.s32.totalorder %s26, 0
      %p198 = por %p196, %p197
      %s200 = sadd.s32 %s199, 1
      %p203 = scmp.eq.s32.totalorder %s20, 1
      %p204 = scmp.ne.s32.totalorder %s199, %s201
      %p205 = scmp.eq.s32.totalorder %s20, 0
      %p206 = por %p204, %p205
      %p207 = scmp.ne.s32.totalorder %s199, %s201
      %p208 = scmp.eq.s32.totalorder %s25, 1
      %p209 = por %p207, %p208
      %p210 = scmp.ne.s32.totalorder %s201, %s202
      %p211 = scmp.eq.s32.totalorder %s25, 0
      %p212 = por %p210, %p211
      %p213 = scmp.ne.s32.totalorder %s201, %s202
      %p214 = scmp.eq.s32.totalorder %s26, 1
      %p215 = por %p213, %p214
      %p217 = scmp.ne.s32.totalorder %s202, %s216
      %p218 = scmp.eq.s32.totalorder %s26, 0
      %p219 = por %p217, %p218
      %s221 = sadd.s32 %s220, 1
      %p224 = scmp.eq.s32.totalorder %s20, 1
      %p225 = scmp.ne.s32.totalorder %s220, %s222
      %p226 = scmp.eq.s32.totalorder %s20, 0
      %p227 = por %p225, %p226
      %p228 = scmp.ne.s32.totalorder %s220, %s222
      %p229 = scmp.eq.s32.totalorder %s25, 1
      %p230 = por %p228, %p229
      %p231 = scmp.ne.s32.totalorder %s222, %s223
      %p232 = scmp.eq.s32.totalorder %s25, 0
      %p233 = por %p231, %p232
      %p234 = scmp.ne.s32.totalorder %s222, %s223
      %p235 = scmp.eq.s32.totalorder %s26, 1
      %p236 = por %p234, %p235
      %p238 = scmp.ne.s32.totalorder %s223, %s237
      %p239 = scmp.eq.s32.totalorder %s26, 0
      %p240 = por %p238, %p239
      %s241 = ssub.s32 %s27, %s39
      %s242 = ssub.s32 %s28, %s35
      %s243 = sor.u32 %s241, %s242
      %p244 = scmp.eq.s32.totalorder %s243, 0
      %s246 = sadd.s32 %s245, 1
      %s247 = scalar_select %p244, %s245, %s246
      %p250 = pneg %p244
      %p251 = scmp.eq.s32.totalorder %s20, 1
      %p252 = por %p250, %p251
      %p253 = scmp.ne.s32.totalorder %s245, %s248
      %p254 = scmp.eq.s32.totalorder %s20, 0
      %p255 = por %p253, %p254
      %p256 = scmp.ne.s32.totalorder %s245, %s248
      %p257 = scmp.eq.s32.totalorder %s25, 1
      %p258 = por %p256, %p257
      %p259 = scmp.ne.s32.totalorder %s248, %s249
      %p260 = scmp.eq.s32.totalorder %s25, 0
      %p261 = por %p259, %p260
      %p262 = scmp.ne.s32.totalorder %s248, %s249
      %p263 = scmp.eq.s32.totalorder %s26, 1
      %p264 = por %p262, %p263
      %p266 = scmp.ne.s32.totalorder %s249, %s265
      %p267 = scmp.eq.s32.totalorder %s26, 0
      %p268 = por %p266, %p267
      %p269 = scmp.le.s32.totalorder 1, %s20
      %p270 = scmp.lt.s32.totalorder %s20, 3
      %p271 = pnand %p269, %p270
      %p272 = pneg %p271
      // Predicated region
      $region9: #{tpu_custom_call.1} parent=5 // pred_check
        _
      $region10: #{tpu_custom_call.1} parent=5 // pred_check_branch
        %274 = sbr.rel (%p271) target = $region12
      $region11: #{tpu_custom_call.1} parent=5 // pred_region
        %s275 = ssub.s32 %s20, 1
        // Predicated region
        $region13: #{tpu_custom_call.1} parent=11 // pred_check
          %p276 = pneg %p107
        $region14: #{tpu_custom_call.1} parent=11 // pred_check_branch
          %278 = sbr.rel (%p276) target = $region16
        $region15: #{tpu_custom_call.1} parent=11 // pred_region
          _
        $region16: #{tpu_custom_call.1} parent=11 // pred_fallthru
          _
        // Predicated region
        $region17: #{tpu_custom_call.1} parent=11 // pred_check
          %p279 = pneg %p128
        $region18: #{tpu_custom_call.1} parent=11 // pred_check_branch
          %281 = sbr.rel (%p279) target = $region20
        $region19: #{tpu_custom_call.1} parent=11 // pred_region
          _
        $region20: #{tpu_custom_call.1} parent=11 // pred_fallthru
          _
        // Predicated region
        $region21: #{tpu_custom_call.1} parent=11 // pred_check
          %p282 = pneg %p149
        $region22: #{tpu_custom_call.1} parent=11 // pred_check_branch
          %284 = sbr.rel (%p282) target = $region24
        $region23: #{tpu_custom_call.1} parent=11 // pred_region
          _
        $region24: #{tpu_custom_call.1} parent=11 // pred_fallthru
          _
        // Predicated region
        $region25: #{tpu_custom_call.1} parent=11 // pred_check
          %p285 = pneg %p170
        $region26: #{tpu_custom_call.1} parent=11 // pred_check_branch
          %287 = sbr.rel (%p285) target = $region28
        $region27: #{tpu_custom_call.1} parent=11 // pred_region
          _
        $region28: #{tpu_custom_call.1} parent=11 // pred_fallthru
          _
        // Predicated region
        $region29: #{tpu_custom_call.1} parent=11 // pred_check
          %p288 = pneg %p191
        $region30: #{tpu_custom_call.1} parent=11 // pred_check_branch
          %290 = sbr.rel (%p288) target = $region32
        $region31: #{tpu_custom_call.1} parent=11 // pred_region
          _
        $region32: #{tpu_custom_call.1} parent=11 // pred_fallthru
          _
        // Predicated region
        $region33: #{tpu_custom_call.1} parent=11 // pred_check
          %p291 = pneg %p212
        $region34: #{tpu_custom_call.1} parent=11 // pred_check_branch
          %293 = sbr.rel (%p291) target = $region36
        $region35: #{tpu_custom_call.1} parent=11 // pred_region
          _
        $region36: #{tpu_custom_call.1} parent=11 // pred_fallthru
          _
        // Predicated region
        $region37: #{tpu_custom_call.1} parent=11 // pred_check
          %p294 = pneg %p233
        $region38: #{tpu_custom_call.1} parent=11 // pred_check_branch
          %296 = sbr.rel (%p294) target = $region40
        $region39: #{tpu_custom_call.1} parent=11 // pred_region
          _
        $region40: #{tpu_custom_call.1} parent=11 // pred_fallthru
          _
      $region12: #{tpu_custom_call.1} parent=5 // pred_fallthru
        _
      %p297 = scmp.lt.s32.totalorder %s20, 2
      // Predicated region
      $region41: #{tpu_custom_call.1} parent=5 // pred_check
        %p298 = pneg %p297
      $region42: #{tpu_custom_call.1} parent=5 // pred_check_branch
        %300 = sbr.rel (%p298) target = $region44
      $region43: #{tpu_custom_call.1} parent=5 // pred_region
        // Predicated region
        $region45: #{tpu_custom_call.1} parent=43 // pred_check
          %p301 = pneg %p54
        $region46: #{tpu_custom_call.1} parent=43 // pred_check_branch
          %303 = sbr.rel (%p301) target = $region48
        $region47: #{tpu_custom_call.1} parent=43 // pred_region
          %p304 = scmp.lt.s32.totalorder %s27, 1
          %s305 = scalar_select %p304, %s27, 1
          %p306 = scmp.lt.s32.totalorder %s28, 0
          %s307 = scalar_select %p306, %s28, 0
          %s308 = sadd.s32 %s307, %s305
          %s309 = smul.addr %s308, 2
          %s310 = scalar_lea.vmem %s0, %s309
        $region48: #{tpu_custom_call.1} parent=43 // pred_fallthru
          _
        // Predicated region
        $region49: #{tpu_custom_call.1} parent=43 // pred_check
          %p311 = pneg %p80
        $region50: #{tpu_custom_call.1} parent=43 // pred_check_branch
          %313 = sbr.rel (%p311) target = $region52
        $region51: #{tpu_custom_call.1} parent=43 // pred_region
          %p314 = scmp.lt.s32.totalorder %s27, 1
          %s315 = scalar_select %p314, %s27, 1
          %s316 = smul.addr %s315, 16
          %s317 = smul.addr %s316, 8
          %s318 = scalar_lea.vmem %s1, %s317
        $region52: #{tpu_custom_call.1} parent=43 // pred_fallthru
          _
      $region44: #{tpu_custom_call.1} parent=5 // pred_fallthru
        _
      %p319 = scmp.le.s32.totalorder 1, %s20
      %p320 = scmp.lt.s32.totalorder %s20, 3
      %p321 = pnand %p319, %p320
      %p322 = pneg %p321
      // Predicated region
      $region53: #{tpu_custom_call.1} parent=5 // pred_check
        _
      $region54: #{tpu_custom_call.1} parent=5 // pred_check_branch
        %324 = sbr.rel (%p321) target = $region56
      $region55: #{tpu_custom_call.1} parent=5 // pred_region
        %s325 = ssub.s32 %s20, 1
        %p326 = scmp.lt.s32.totalorder %s29, 1
        %s327 = scalar_select %p326, %s29, 1
        %p328 = scmp.lt.s32.totalorder %s30, 0
        %s329 = scalar_select %p328, %s30, 0
        %s330 = sadd.s32 %s329, %s327
        %s331 = smul.addr %s330, 2
        %s332 = scalar_lea.vmem %s0, %s331
        %p333 = pneg %p60
        %p334 = pneg %p57
        %p335 = scmp.lt.s32.totalorder %s29, 1
        %s336 = scalar_select %p335, %s29, 1
        %s337 = smul.addr %s336, 16
        %s338 = smul.addr %s337, 8
        %s339 = scalar_lea.vmem %s1, %s338
        %p340 = pneg %p86
        %p341 = pneg %p83
        %p342 = pneg %p107
        %p343 = pneg %p104
        %p344 = pneg %p128
        %p345 = pneg %p125
        %p346 = pneg %p149
        %p347 = pneg %p146
        %p348 = pneg %p170
        %p349 = pneg %p167
        %p350 = pneg %p191
        %p351 = pneg %p188
        %p352 = pneg %p212
        %p353 = pneg %p209
        %p354 = pneg %p233
        %p355 = pneg %p230
        %p356 = pneg %p261
        %p357 = pneg %p258
        %s358 = sand.u32 %s248, 1
        %s359 = scalar_lea.sflag [#allocation5], %s358
        %s360 = sand.u32 %s248, 1
        %s361 = scalar_lea.vmem [#allocation4], %s360
        %p362 = scmp.lt.s32.totalorder %s29, 1
        %s363 = scalar_select %p362, %s29, 1
        %p364 = scmp.lt.s32.totalorder %s30, 0
        %s365 = scalar_select %p364, %s30, 0
        %s366 = sadd.s32 %s365, %s363
        %s367 = smul.addr %s366, 2
        %s368 = scalar_lea.vmem %s0, %s367
        %p369 = scmp.lt.s32.totalorder %s29, 1
        %s370 = scalar_select %p369, %s29, 1
        %s371 = smul.addr %s370, 16
        %s372 = smul.addr %s371, 8
        %s373 = scalar_lea.vmem %s1, %s372
        %v375 = vld [vmem:[%s368] sm:$0x3]
        %v376 = vld [vmem:[%s2] sm:$0xff]
        %378 = vset.pattern.permute.xlu0 0
        %379 = vperm.xlu0 %378, %v376
        %v380 = vpop.permute.xlu0 %379
        %v382 = vlaneseq
        %v383 = vshrl.u32 %v382, 7
        %v384 = vsub.s32 0, %v383
        %v385 = vrot.slane %v375, %v384
        %v386 = vmul.f32 %v380, %v385
        %v387 = vld [vmem:[%s3] sm:$0xff]
        %389 = vset.pattern.permute.xlu0 0
        %390 = vperm.xlu0 %389, %v387
        %v391 = vpop.permute.xlu0 %390
        %v393 = vlaneseq
        %v394 = vshrl.u32 %v393, 7
        %v395 = vsub.s32 1, %v394
        %v396 = vrot.slane %v375, %v395
        %v397 = vmul.f32 %v391, %v396
        %v398 = vadd.f32 %v386, %v397
        %v399 = vand.u32 2147483647, %v398
        %vm400 = vcmp.le.f32.partialorder %v399, 0.7853982
        %vm401 = vcmp.lt.s32.totalorder %v398, 0
        %v402 = vand.u32 %v398, 2139095040
        %v403 = vshrl.u32 %v402, 23
        %v404 = vsub.s32 %v403, 127
        %v405 = vand.u32 2147483647, %v398
        %v406 = vand.u32 %v405, 8388607
        %v407 = vor.u32 %v406, 8388608
        %v408 = vsub.s32 0, %v407
        %v409 = vadd.s32 %v404, 1
        %vm410 = vcmp.gt.s32.totalorder %v409, 0
        %v411 = vsel %vm410, %v409, 0
        %v412 = vshrl.u32 %v411, 5
        %v413 = vand.u32 %v411, 31
        %v414 = vsub.s32 32, %v413
        %v415 = vshrl.u32 683565275, %v414
        %v416 = vshll.u32 683565275, %v413
        %v417 = vshrl.u32 2475754826, %v414
        %v418 = vor.u32 %v416, %v417
        %v419 = vshll.u32 2475754826, %v413
        %v420 = vshrl.u32 2131351028, %v414
        %v421 = vor.u32 %v419, %v420
        %v422 = vshll.u32 2131351028, %v413
        %v423 = vshrl.u32 2102212464, %v414
        %v424 = vor.u32 %v422, %v423
        %v425 = vshll.u32 2102212464, %v413
        %v426 = vshrl.u32 920167782, %v414
        %v427 = vor.u32 %v425, %v426
        %v428 = vshll.u32 920167782, %v413
        %v429 = vshrl.u32 1326507024, %v414
        %v430 = vor.u32 %v428, %v429
        %vm431 = vcmp.lt.s32.totalorder %v412, 1
        %vm432 = vcmp.lt.s32.totalorder %v412, 2
        %vm433 = vcmp.lt.s32.totalorder %v412, 3
        %vm434 = vcmp.lt.s32.totalorder %v412, 4
        %v435 = vsel %vm431, %v415, %v418
        %v436 = vsel %vm434, %v424, 2102212464
        %v437 = vsel %vm433, %v421, %v436
        %v438 = vsel %vm432, %v435, %v437
        %v439 = vsel %vm431, %v418, %v421
        %v440 = vsel %vm434, %v427, 920167782
        %v441 = vsel %vm433, %v424, %v440
        %v442 = vsel %vm432, %v439, %v441
        %v443 = vsel %vm431, %v421, %v424
        %v444 = vsel %vm434, %v430, 1326507024
        %v445 = vsel %vm433, %v427, %v444
        %v446 = vsel %vm432, %v443, %v445
        %v447 = vshll.u32 %v407, 8
        %v448 = vmul.u32.u64.compose %v447, %v446
        %v449 = vextract.low.u32 %v448
        %v450 = vextract.high.u32 %v448
        %v451 = vmul.u32.u64.compose %v447, %v442
        %v452 = vextract.low.u32 %v451
        %v453 = vextract.high.u32 %v451
        %v454 = vmul.u32 %v447, %v438
        %v455 = vadd.s32 %v450, %v452
        %vm456 = vc.u32 %v450, %v452
        %v457 = vadd.s32 %v453, 1
        %v458 = vsel %vm456, %v457, %v453
        %v459 = vadd.s32 %v454, %v458
        %v460 = vadd.s32 %v459, 536870912
        %v461 = vshrl.u32 %v460, 30
        %v462 = vshll.u32 %v461, 30
        %v463 = vsub.s32 %v459, %v462
        %vm464 = vcmp.lt.s32.totalorder %v463, 0
        %v465 = vsub.s32 0, %v463
        %v466 = vsel %vm464, %v465, %v463
        %v467 = vclz %v466
        %v468 = vsub.s32 %v467, 2
        %vm469 = vcmp.gt.s32.totalorder 0, %v468
        %v470 = vsel %vm469, 0, %v468
        %v471 = vsub.s32 32, %v470
        %v472 = vshll.u32 %v463, %v470
        %v473 = vshrl.u32 %v455, %v471
        %v474 = vor.u32 %v472, %v473
        %v475 = vsub.s32 4294967266, %v470
        %v476 = vadd.s32 %v475, 127
        %v477 = vshll.u32 %v476, 23
        %v478 = vor.u32 4788187, %v477
        %v479 = vand.u32 2147483647, %v478
        %v481 = vcvt.s32.f32 %v474
        %v482 = vmul.f32 %v481, %v479
        %v483 = vxor.u32 %v482, 2147483648
        %v484 = vsel %vm401, %v483, %v482
        %v485 = vsub.s32 4, %v461
        %v486 = vsel %vm401, %v485, %v461
        %v487 = vsel %vm400, %v398, %v484
        %v488 = vsel %vm400, 0, %v486
        %v489 = vcosq.f32.pop %v487
        %v490 = vsinq.f32.pop %v487
        %vm491 = vweird.f32 %v398
        %v492 = vadd.s32 %v488, 3
        %v493 = vand.u32 %v492, 3
        %vm494 = vcmp.lt.s32.totalorder %v493, 2
        %vm495 = vcmp.eq.s32.totalorder %v493, 0
        %v496 = vxor.u32 %v490, 2147483648
        %v497 = vsel %vm495, %v489, %v496
        %vm498 = vcmp.eq.s32.totalorder %v493, 2
        %v499 = vxor.u32 %v489, 2147483648
        %v500 = vsel %vm498, %v499, %v490
        %v501 = vsel %vm494, %v497, %v500
        %v502 = vsel %vm491, nan, %v501
        %v503 = vand.u32 2147483647, %v398
        %vm504 = vcmp.le.f32.partialorder %v503, 0.7853982
        %vm505 = vcmp.lt.s32.totalorder %v398, 0
        %v506 = vand.u32 %v398, 2139095040
        %v507 = vshrl.u32 %v506, 23
        %v508 = vsub.s32 %v507, 127
        %v509 = vand.u32 2147483647, %v398
        %v510 = vand.u32 %v509, 8388607
        %v511 = vor.u32 %v510, 8388608
        %v512 = vsub.s32 0, %v511
        %v513 = vadd.s32 %v508, 1
        %vm514 = vcmp.gt.s32.totalorder %v513, 0
        %v515 = vsel %vm514, %v513, 0
        %v516 = vshrl.u32 %v515, 5
        %v517 = vand.u32 %v515, 31
        %v518 = vsub.s32 32, %v517
        %v519 = vshrl.u32 683565275, %v518
        %v520 = vshll.u32 683565275, %v517
        %v521 = vshrl.u32 2475754826, %v518
        %v522 = vor.u32 %v520, %v521
        %v523 = vshll.u32 2475754826, %v517
        %v524 = vshrl.u32 2131351028, %v518
        %v525 = vor.u32 %v523, %v524
        %v526 = vshll.u32 2131351028, %v517
        %v527 = vshrl.u32 2102212464, %v518
        %v528 = vor.u32 %v526, %v527
        %v529 = vshll.u32 2102212464, %v517
        %v530 = vshrl.u32 920167782, %v518
        %v531 = vor.u32 %v529, %v530
        %v532 = vshll.u32 920167782, %v517
        %v533 = vshrl.u32 1326507024, %v518
        %v534 = vor.u32 %v532, %v533
        %vm535 = vcmp.lt.s32.totalorder %v516, 1
        %vm536 = vcmp.lt.s32.totalorder %v516, 2
        %vm537 = vcmp.lt.s32.totalorder %v516, 3
        %vm538 = vcmp.lt.s32.totalorder %v516, 4
        %v539 = vsel %vm535, %v519, %v522
        %v540 = vsel %vm538, %v528, 2102212464
        %v541 = vsel %vm537, %v525, %v540
        %v542 = vsel %vm536, %v539, %v541
        %v543 = vsel %vm535, %v522, %v525
        %v544 = vsel %vm538, %v531, 920167782
        %v545 = vsel %vm537, %v528, %v544
        %v546 = vsel %vm536, %v543, %v545
        %v547 = vsel %vm535, %v525, %v528
        %v548 = vsel %vm538, %v534, 1326507024
        %v549 = vsel %vm537, %v531, %v548
        %v550 = vsel %vm536, %v547, %v549
        %v551 = vshll.u32 %v511, 8
        %v552 = vmul.u32.u64.compose %v551, %v550
        %v553 = vextract.low.u32 %v552
        %v554 = vextract.high.u32 %v552
        %v555 = vmul.u32.u64.compose %v551, %v546
        %v556 = vextract.low.u32 %v555
        %v557 = vextract.high.u32 %v555
        %v558 = vmul.u32 %v551, %v542
        %v559 = vadd.s32 %v554, %v556
        %vm560 = vc.u32 %v554, %v556
        %v561 = vadd.s32 %v557, 1
        %v562 = vsel %vm560, %v561, %v557
        %v563 = vadd.s32 %v558, %v562
        %v564 = vadd.s32 %v563, 536870912
        %v565 = vshrl.u32 %v564, 30
        %v566 = vshll.u32 %v565, 30
        %v567 = vsub.s32 %v563, %v566
        %vm568 = vcmp.lt.s32.totalorder %v567, 0
        %v569 = vsub.s32 0, %v567
        %v570 = vsel %vm568, %v569, %v567
        %v571 = vclz %v570
        %v572 = vsub.s32 %v571, 2
        %vm573 = vcmp.gt.s32.totalorder 0, %v572
        %v574 = vsel %vm573, 0, %v572
        %v575 = vsub.s32 32, %v574
        %v576 = vshll.u32 %v567, %v574
        %v577 = vshrl.u32 %v559, %v575
        %v578 = vor.u32 %v576, %v577
        %v579 = vsub.s32 4294967266, %v574
        %v580 = vadd.s32 %v579, 127
        %v581 = vshll.u32 %v580, 23
        %v582 = vor.u32 4788187, %v581
        %v583 = vand.u32 2147483647, %v582
        %v585 = vcvt.s32.f32 %v578
        %v586 = vmul.f32 %v585, %v583
        %v587 = vxor.u32 %v586, 2147483648
        %v588 = vsel %vm505, %v587, %v586
        %v589 = vsub.s32 4, %v565
        %v590 = vsel %vm505, %v589, %v565
        %v591 = vsel %vm504, %v398, %v588
        %v592 = vsel %vm504, 0, %v590
        %v593 = vcosq.f32.pop %v591
        %v594 = vsinq.f32.pop %v591
        %vm595 = vweird.f32 %v398
        %v596 = vand.u32 %v592, 3
        %vm597 = vcmp.lt.s32.totalorder %v596, 2
        %vm598 = vcmp.eq.s32.totalorder %v596, 0
        %v599 = vxor.u32 %v594, 2147483648
        %v600 = vsel %vm598, %v593, %v599
        %vm601 = vcmp.eq.s32.totalorder %v596, 2
        %v602 = vxor.u32 %v593, 2147483648
        %v603 = vsel %vm601, %v602, %v594
        %v604 = vsel %vm597, %v600, %v603
        %v605 = vsel %vm595, nan, %v604
        %v606 = vpack.c.bf16 %v605, %v502
        %v607 = vld [vmem:[%s4] sm:$0xf]
        %v608 = vld [vmem:[%s4 + $0x4] sm:$0xf]
        %v609 = vld [vmem:[%s4 + $0x8] sm:$0xf]
        %v610 = vld [vmem:[%s4 + $0xc] sm:$0xf]
        %v611 = vld [vmem:[%s4 + $0x10] sm:$0xf]
        %v612 = vld [vmem:[%s4 + $0x14] sm:$0xf]
        %v613 = vld [vmem:[%s4 + $0x18] sm:$0xf]
        %v614 = vld [vmem:[%s4 + $0x1c] sm:$0xf]
        %v615 = vld [vmem:[%s4 + $0x20] sm:$0xf]
        %v616 = vld [vmem:[%s4 + $0x24] sm:$0xf]
        %v617 = vld [vmem:[%s4 + $0x28] sm:$0xf]
        %v618 = vld [vmem:[%s4 + $0x2c] sm:$0xf]
        %v619 = vld [vmem:[%s4 + $0x30] sm:$0xf]
        %v620 = vld [vmem:[%s4 + $0x34] sm:$0xf]
        %v621 = vld [vmem:[%s4 + $0x38] sm:$0xf]
        %v622 = vld [vmem:[%s4 + $0x3c] sm:$0xf]
        %v623 = vld [vmem:[%s373] sm:$0xff]
        %v624 = vld [vmem:[%s373 + $0x8] sm:$0xff]
        %v625 = vld [vmem:[%s373 + $0x10] sm:$0xff]
        %v626 = vld [vmem:[%s373 + $0x18] sm:$0xff]
        %v627 = vld [vmem:[%s373 + $0x20] sm:$0xff]
        %v628 = vld [vmem:[%s373 + $0x28] sm:$0xff]
        %v629 = vld [vmem:[%s373 + $0x30] sm:$0xff]
        %v630 = vld [vmem:[%s373 + $0x38] sm:$0xff]
        %v631 = vld [vmem:[%s373 + $0x40] sm:$0xff]
        %v632 = vld [vmem:[%s373 + $0x48] sm:$0xff]
        %v633 = vld [vmem:[%s373 + $0x50] sm:$0xff]
        %v634 = vld [vmem:[%s373 + $0x58] sm:$0xff]
        %v635 = vld [vmem:[%s373 + $0x60] sm:$0xff]
        %v636 = vld [vmem:[%s373 + $0x68] sm:$0xff]
        %v637 = vld [vmem:[%s373 + $0x70] sm:$0xff]
        %v638 = vld [vmem:[%s373 + $0x78] sm:$0xff]
        %640 = vset.pattern.permute.xlu0 0
        %641 = vperm.xlu0 %640, %v623
        %v642 = vpop.permute.xlu0 %641
        %645 = vset.pattern.permute.xlu0 0
        %646 = vperm.xlu0 %645, %v624
        %v647 = vpop.permute.xlu0 %646
        %650 = vset.pattern.permute.xlu0 0
        %651 = vperm.xlu0 %650, %v625
        %v652 = vpop.permute.xlu0 %651
        %655 = vset.pattern.permute.xlu0 0
        %656 = vperm.xlu0 %655, %v626
        %v657 = vpop.permute.xlu0 %656
        %660 = vset.pattern.permute.xlu0 0
        %661 = vperm.xlu0 %660, %v627
        %v662 = vpop.permute.xlu0 %661
        %665 = vset.pattern.permute.xlu0 0
        %666 = vperm.xlu0 %665, %v628
        %v667 = vpop.permute.xlu0 %666
        %670 = vset.pattern.permute.xlu0 0
        %671 = vperm.xlu0 %670, %v629
        %v672 = vpop.permute.xlu0 %671
        %675 = vset.pattern.permute.xlu0 0
        %676 = vperm.xlu0 %675, %v630
        %v677 = vpop.permute.xlu0 %676
        %680 = vset.pattern.permute.xlu0 0
        %681 = vperm.xlu0 %680, %v631
        %v682 = vpop.permute.xlu0 %681
        %685 = vset.pattern.permute.xlu0 0
        %686 = vperm.xlu0 %685, %v632
        %v687 = vpop.permute.xlu0 %686
        %690 = vset.pattern.permute.xlu0 0
        %691 = vperm.xlu0 %690, %v633
        %v692 = vpop.permute.xlu0 %691
        %695 = vset.pattern.permute.xlu0 0
        %696 = vperm.xlu0 %695, %v634
        %v697 = vpop.permute.xlu0 %696
        %700 = vset.pattern.permute.xlu0 0
        %701 = vperm.xlu0 %700, %v635
        %v702 = vpop.permute.xlu0 %701
        %705 = vset.pattern.permute.xlu0 0
        %706 = vperm.xlu0 %705, %v636
        %v707 = vpop.permute.xlu0 %706
        %710 = vset.pattern.permute.xlu0 0
        %711 = vperm.xlu0 %710, %v637
        %v712 = vpop.permute.xlu0 %711
        %715 = vset.pattern.permute.xlu0 0
        %716 = vperm.xlu0 %715, %v638
        %v717 = vpop.permute.xlu0 %716
        %v735 = vunpack.c.l.b16 %v607
        %v736 = vunpack.c.l.b16 %v608
        %v737 = vunpack.c.l.b16 %v609
        %v738 = vunpack.c.l.b16 %v610
        %v739 = vunpack.c.l.b16 %v611
        %v740 = vunpack.c.l.b16 %v612
        %v741 = vunpack.c.l.b16 %v613
        %v742 = vunpack.c.l.b16 %v614
        %v743 = vunpack.c.l.b16 %v615
        %v744 = vunpack.c.l.b16 %v616
        %v745 = vunpack.c.l.b16 %v617
        %v746 = vunpack.c.l.b16 %v618
        %v747 = vunpack.c.l.b16 %v619
        %v748 = vunpack.c.l.b16 %v620
        %v749 = vunpack.c.l.b16 %v621
        %v750 = vunpack.c.l.b16 %v622
        %v751 = vpack.c.b16 %v736, %v735
        %v752 = vpack.c.b16 %v738, %v737
        %v753 = vpack.c.b16 %v740, %v739
        %v754 = vpack.c.b16 %v742, %v741
        %v755 = vpack.c.b16 %v744, %v743
        %v756 = vpack.c.b16 %v746, %v745
        %v757 = vpack.c.b16 %v748, %v747
        %v758 = vpack.c.b16 %v750, %v749
        %vm759 = vcmask 130048
        %v761 = vsel %vm759, %v751, 0
        %v764 = vsel %vm759, %v752, 0
        %v767 = vsel %vm759, %v753, 0
        %v770 = vsel %vm759, %v754, 0
        %v773 = vsel %vm759, %v755, 0
        %v776 = vsel %vm759, %v756, 0
        %v779 = vsel %vm759, %v757, 0
        %v782 = vsel %vm759, %v758, 0
        %784 = vmatprep.subr.bf16.mxu0 0
        %785 = vmatpush1.bf16.msra.mxu0 %v606
        %786 = vmatprep.subr.bf16.mxu0 0
        %787 = vmatpush1.bf16.msra.mxu0 0
        %788 = vmatprep.subr.bf16.mxu0 0
        %789 = vmatpush1.bf16.msra.mxu0 0
        %790 = vmatprep.subr.bf16.mxu0 0
        %791 = vmatpush1.bf16.msra.mxu0 0
        %792 = vmatprep.subr.bf16.mxu0 0
        %793 = vmatpush1.bf16.msra.mxu0 0
        %794 = vmatprep.subr.bf16.mxu0 0
        %795 = vmatpush1.bf16.msra.mxu0 0
        %796 = vmatprep.subr.bf16.mxu0 0
        %797 = vmatpush1.bf16.msra.mxu0 0
        %798 = vmatprep.subr.bf16.mxu0 0
        %799 = vmatpush1.bf16.msra.mxu0 0
        %800 = vmatprep.subr.bf16.mxu0 0
        %801 = vmatpush1.bf16.msra.mxu0 0
        %802 = vmatprep.subr.bf16.mxu0 0
        %803 = vmatpush1.bf16.msra.mxu0 0
        %804 = vmatprep.subr.bf16.mxu0 0
        %805 = vmatpush1.bf16.msra.mxu0 0
        %806 = vmatprep.subr.bf16.mxu0 0
        %807 = vmatpush1.bf16.msra.mxu0 0
        %808 = vmatprep.subr.bf16.mxu0 0
        %809 = vmatpush1.bf16.msra.mxu0 0
        %810 = vmatprep.subr.bf16.mxu0 0
        %811 = vmatpush1.bf16.msra.mxu0 0
        %812 = vmatprep.subr.bf16.mxu0 0
        %813 = vmatpush1.bf16.msra.mxu0 0
        %814 = vmatprep.subr.bf16.mxu0 0
        %815 = vmatpush1.bf16.msra.mxu0 0
        %816 = vmatprep.mubr.bf16.mxu0 0
        %817 = vmatmul.mubr.bf16.gmra.mrb[0].mxu0 %v761
        %v818 = vpop.f32.mrb[0].mxu0
        %v819 = vadd.f32 %v642, %v818
        %v820 = vpop.f32.mrb[0].mxu0
        %v821 = vpop.f32.mrb[0].mxu0
        %v822 = vadd.f32 %v647, %v821
        %v823 = vpop.f32.mrb[0].mxu0
        %824 = vmatprep.mubr.bf16.mxu0 0
        %825 = vmatmul.mubr.bf16.gmra.mrb[0].mxu0 %v764
        %v826 = vpop.f32.mrb[0].mxu0
        %v827 = vadd.f32 %v652, %v826
        %v828 = vpop.f32.mrb[0].mxu0
        %v829 = vpop.f32.mrb[0].mxu0
        %v830 = vadd.f32 %v657, %v829
        %v831 = vpop.f32.mrb[0].mxu0
        %832 = vmatprep.mubr.bf16.mxu0 0
        %833 = vmatmul.mubr.bf16.gmra.mrb[0].mxu0 %v767
        %v834 = vpop.f32.mrb[0].mxu0
        %v835 = vadd.f32 %v662, %v834
        %v836 = vpop.f32.mrb[0].mxu0
        %v837 = vpop.f32.mrb[0].mxu0
        %v838 = vadd.f32 %v667, %v837
        %v839 = vpop.f32.mrb[0].mxu0
        %840 = vmatprep.mubr.bf16.mxu0 0
        %841 = vmatmul.mubr.bf16.gmra.mrb[0].mxu0 %v770
        %v842 = vpop.f32.mrb[0].mxu0
        %v843 = vadd.f32 %v672, %v842
        %v844 = vpop.f32.mrb[0].mxu0
        %v845 = vpop.f32.mrb[0].mxu0
        %v846 = vadd.f32 %v677, %v845
        %v847 = vpop.f32.mrb[0].mxu0
        %848 = vmatprep.mubr.bf16.mxu0 0
        %849 = vmatmul.mubr.bf16.gmra.mrb[0].mxu0 %v773
        %v850 = vpop.f32.mrb[0].mxu0
        %v851 = vadd.f32 %v682, %v850
        %v852 = vpop.f32.mrb[0].mxu0
        %v853 = vpop.f32.mrb[0].mxu0
        %v854 = vadd.f32 %v687, %v853
        %v855 = vpop.f32.mrb[0].mxu0
        %856 = vmatprep.mubr.bf16.mxu0 0
        %857 = vmatmul.mubr.bf16.gmra.mrb[0].mxu0 %v776
        %v858 = vpop.f32.mrb[0].mxu0
        %v859 = vadd.f32 %v692, %v858
        %v860 = vpop.f32.mrb[0].mxu0
        %v861 = vpop.f32.mrb[0].mxu0
        %v862 = vadd.f32 %v697, %v861
        %v863 = vpop.f32.mrb[0].mxu0
        %864 = vmatprep.mubr.bf16.mxu0 0
        %865 = vmatmul.mubr.bf16.gmra.mrb[0].mxu0 %v779
        %v866 = vpop.f32.mrb[0].mxu0
        %v867 = vadd.f32 %v702, %v866
        %v868 = vpop.f32.mrb[0].mxu0
        %v869 = vpop.f32.mrb[0].mxu0
        %v870 = vadd.f32 %v707, %v869
        %v871 = vpop.f32.mrb[0].mxu0
        %872 = vmatprep.mubr.bf16.mxu0 0
        %873 = vmatmul.mubr.bf16.gmra.mrb[0].mxu0 %v782
        %v874 = vpop.f32.mrb[0].mxu0
        %v875 = vadd.f32 %v712, %v874
        %v876 = vpop.f32.mrb[0].mxu0
        %v877 = vpop.f32.mrb[0].mxu0
        %v878 = vadd.f32 %v717, %v877
        %v879 = vpop.f32.mrb[0].mxu0
        %880 = vdwg.mxu0
        %v881 = vpack.c.bf16 %v822, %v819
        %v882 = vpack.c.bf16 %v830, %v827
        %v883 = vpack.c.bf16 %v838, %v835
        %v884 = vpack.c.bf16 %v846, %v843
        %v885 = vpack.c.bf16 %v854, %v851
        %v886 = vpack.c.bf16 %v862, %v859
        %v887 = vpack.c.bf16 %v870, %v867
        %v888 = vpack.c.bf16 %v878, %v875
        %vm889 = vcmask 523264
        %890 = vst.msk [vmem:[#allocation2] sm:$0xff] %vm889, %v881
        %891 = vst.msk [vmem:[#allocation2 + $0x8] sm:$0xff] %vm889, %v882
        %892 = vst.msk [vmem:[#allocation2 + $0x10] sm:$0xff] %vm889, %v883
        %893 = vst.msk [vmem:[#allocation2 + $0x18] sm:$0xff] %vm889, %v884
        %894 = vst.msk [vmem:[#allocation2 + $0x20] sm:$0xff] %vm889, %v885
        %895 = vst.msk [vmem:[#allocation2 + $0x28] sm:$0xff] %vm889, %v886
        %896 = vst.msk [vmem:[#allocation2 + $0x30] sm:$0xff] %vm889, %v887
        %897 = vst.msk [vmem:[#allocation2 + $0x38] sm:$0xff] %vm889, %v888
        %v898 = vld [vmem:[%s5] sm:$0xf]
        %v899 = vld [vmem:[%s5 + $0x4] sm:$0xf]
        %v900 = vld [vmem:[%s5 + $0x8] sm:$0xf]
        %v901 = vld [vmem:[%s5 + $0xc] sm:$0xf]
        %v902 = vld [vmem:[%s5 + $0x10] sm:$0xf]
        %v903 = vld [vmem:[%s5 + $0x14] sm:$0xf]
        %v904 = vld [vmem:[%s5 + $0x18] sm:$0xf]
        %v905 = vld [vmem:[%s5 + $0x1c] sm:$0xf]
        %v906 = vld [vmem:[%s5 + $0x20] sm:$0xf]
        %v907 = vld [vmem:[%s5 + $0x24] sm:$0xf]
        %v908 = vld [vmem:[%s5 + $0x28] sm:$0xf]
        %v909 = vld [vmem:[%s5 + $0x2c] sm:$0xf]
        %v910 = vld [vmem:[%s5 + $0x30] sm:$0xf]
        %v911 = vld [vmem:[%s5 + $0x34] sm:$0xf]
        %v912 = vld [vmem:[%s5 + $0x38] sm:$0xf]
        %v913 = vld [vmem:[%s5 + $0x3c] sm:$0xf]
        %v914 = vld [vmem:[#allocation2] sm:$0xff]
        %v915 = vld [vmem:[#allocation2 + $0x8] sm:$0xff]
        %v916 = vld [vmem:[#allocation2 + $0x10] sm:$0xff]
        %v917 = vld [vmem:[#allocation2 + $0x18] sm:$0xff]
        %v918 = vld [vmem:[#allocation2 + $0x20] sm:$0xff]
        %v919 = vld [vmem:[#allocation2 + $0x28] sm:$0xff]
        %v920 = vld [vmem:[#allocation2 + $0x30] sm:$0xff]
        %v921 = vld [vmem:[#allocation2 + $0x38] sm:$0xff]
        %v922 = vld [vmem:[%s6] sm:$0xff]
        %v923 = vld [vmem:[%s6 + $0x8] sm:$0xff]
        %v924 = vld [vmem:[%s6 + $0x10] sm:$0xff]
        %v925 = vld [vmem:[%s6 + $0x18] sm:$0xff]
        %v926 = vld [vmem:[%s6 + $0x20] sm:$0xff]
        %v927 = vld [vmem:[%s6 + $0x28] sm:$0xff]
        %v928 = vld [vmem:[%s6 + $0x30] sm:$0xff]
        %v929 = vld [vmem:[%s6 + $0x38] sm:$0xff]
        %v930 = vld [vmem:[%s6 + $0x40] sm:$0xff]
        %v931 = vld [vmem:[%s6 + $0x48] sm:$0xff]
        %v932 = vld [vmem:[%s6 + $0x50] sm:$0xff]
        %v933 = vld [vmem:[%s6 + $0x58] sm:$0xff]
        %v934 = vld [vmem:[%s6 + $0x60] sm:$0xff]
        %v935 = vld [vmem:[%s6 + $0x68] sm:$0xff]
        %v936 = vld [vmem:[%s6 + $0x70] sm:$0xff]
        %v937 = vld [vmem:[%s6 + $0x78] sm:$0xff]
        %939 = vset.pattern.permute.xlu0 0
        %940 = vperm.xlu0 %939, %v922
        %v941 = vpop.permute.xlu0 %940
        %944 = vset.pattern.permute.xlu0 0
        %945 = vperm.xlu0 %944, %v923
        %v946 = vpop.permute.xlu0 %945
        %949 = vset.pattern.permute.xlu0 0
        %950 = vperm.xlu0 %949, %v924
        %v951 = vpop.permute.xlu0 %950
        %954 = vset.pattern.permute.xlu0 0
        %955 = vperm.xlu0 %954, %v925
        %v956 = vpop.permute.xlu0 %955
        %959 = vset.pattern.permute.xlu0 0
        %960 = vperm.xlu0 %959, %v926
        %v961 = vpop.permute.xlu0 %960
        %964 = vset.pattern.permute.xlu0 0
        %965 = vperm.xlu0 %964, %v927
        %v966 = vpop.permute.xlu0 %965
        %969 = vset.pattern.permute.xlu0 0
        %970 = vperm.xlu0 %969, %v928
        %v971 = vpop.permute.xlu0 %970
        %974 = vset.pattern.permute.xlu0 0
        %975 = vperm.xlu0 %974, %v929
        %v976 = vpop.permute.xlu0 %975
        %979 = vset.pattern.permute.xlu0 0
        %980 = vperm.xlu0 %979, %v930
        %v981 = vpop.permute.xlu0 %980
        %984 = vset.pattern.permute.xlu0 0
        %985 = vperm.xlu0 %984, %v931
        %v986 = vpop.permute.xlu0 %985
        %989 = vset.pattern.permute.xlu0 0
        %990 = vperm.xlu0 %989, %v932
        %v991 = vpop.permute.xlu0 %990
        %994 = vset.pattern.permute.xlu0 0
        %995 = vperm.xlu0 %994, %v933
        %v996 = vpop.permute.xlu0 %995
        %999 = vset.pattern.permute.xlu0 0
        %1000 = vperm.xlu0 %999, %v934
        %v1001 = vpop.permute.xlu0 %1000
        %1004 = vset.pattern.permute.xlu0 0
        %1005 = vperm.xlu0 %1004, %v935
        %v1006 = vpop.permute.xlu0 %1005
        %1009 = vset.pattern.permute.xlu0 0
        %1010 = vperm.xlu0 %1009, %v936
        %v1011 = vpop.permute.xlu0 %1010
        %1014 = vset.pattern.permute.xlu0 0
        %1015 = vperm.xlu0 %1014, %v937
        %v1016 = vpop.permute.xlu0 %1015
        %v1034 = vunpack.c.l.b16 %v898
        %v1035 = vunpack.c.l.b16 %v899
        %v1036 = vunpack.c.l.b16 %v900
        %v1037 = vunpack.c.l.b16 %v901
        %v1038 = vunpack.c.l.b16 %v902
        %v1039 = vunpack.c.l.b16 %v903
        %v1040 = vunpack.c.l.b16 %v904
        %v1041 = vunpack.c.l.b16 %v905
        %v1042 = vunpack.c.l.b16 %v906
        %v1043 = vunpack.c.l.b16 %v907
        %v1044 = vunpack.c.l.b16 %v908
        %v1045 = vunpack.c.l.b16 %v909
        %v1046 = vunpack.c.l.b16 %v910
        %v1047 = vunpack.c.l.b16 %v911
        %v1048 = vunpack.c.l.b16 %v912
        %v1049 = vunpack.c.l.b16 %v913
        %v1050 = vpack.c.b16 %v1035, %v1034
        %v1051 = vpack.c.b16 %v1037, %v1036
        %v1052 = vpack.c.b16 %v1039, %v1038
        %v1053 = vpack.c.b16 %v1041, %v1040
        %v1054 = vpack.c.b16 %v1043, %v1042
        %v1055 = vpack.c.b16 %v1045, %v1044
        %v1056 = vpack.c.b16 %v1047, %v1046
        %v1057 = vpack.c.b16 %v1049, %v1048
        %1066 = vmatprep.subr.bf16.mxu0 0
        %1067 = vmatpush1.bf16.msra.mxu0 %v914
        %1068 = vmatprep.subr.bf16.mxu0 0
        %1069 = vmatpush1.bf16.msra.mxu0 %v915
        %1070 = vmatprep.subr.bf16.mxu0 0
        %1071 = vmatpush1.bf16.msra.mxu0 %v916
        %1072 = vmatprep.subr.bf16.mxu0 0
        %1073 = vmatpush1.bf16.msra.mxu0 %v917
        %1074 = vmatprep.subr.bf16.mxu0 0
        %1075 = vmatpush1.bf16.msra.mxu0 %v918
        %1076 = vmatprep.subr.bf16.mxu0 0
        %1077 = vmatpush1.bf16.msra.mxu0 %v919
        %1078 = vmatprep.subr.bf16.mxu0 0
        %1079 = vmatpush1.bf16.msra.mxu0 %v920
        %1080 = vmatprep.subr.bf16.mxu0 0
        %1081 = vmatpush1.bf16.msra.mxu0 %v921
        %1082 = vmatprep.subr.bf16.mxu0 0
        %1083 = vmatpush1.bf16.msra.mxu0 0
        %1084 = vmatprep.subr.bf16.mxu0 0
        %1085 = vmatpush1.bf16.msra.mxu0 0
        %1086 = vmatprep.subr.bf16.mxu0 0
        %1087 = vmatpush1.bf16.msra.mxu0 0
        %1088 = vmatprep.subr.bf16.mxu0 0
        %1089 = vmatpush1.bf16.msra.mxu0 0
        %1090 = vmatprep.subr.bf16.mxu0 0
        %1091 = vmatpush1.bf16.msra.mxu0 0
        %1092 = vmatprep.subr.bf16.mxu0 0
        %1093 = vmatpush1.bf16.msra.mxu0 0
        %1094 = vmatprep.subr.bf16.mxu0 0
        %1095 = vmatpush1.bf16.msra.mxu0 0
        %1096 = vmatprep.subr.bf16.mxu0 0
        %1097 = vmatpush1.bf16.msra.mxu0 0
        %1098 = vmatprep.mubr.bf16.mxu0 0
        %1099 = vmatmul.mubr.bf16.gmra.mrb[0].mxu0 %v1050
        %v1100 = vpop.f32.mrb[0].mxu0
        %v1101 = vadd.f32 %v941, %v1100
        %v1102 = vpop.f32.mrb[0].mxu0
        %v1103 = vpop.f32.mrb[0].mxu0
        %v1104 = vadd.f32 %v946, %v1103
        %v1105 = vpop.f32.mrb[0].mxu0
        %1106 = vmatprep.mubr.bf16.mxu0 0
        %1107 = vmatmul.mubr.bf16.gmra.mrb[0].mxu0 %v1051
        %v1108 = vpop.f32.mrb[0].mxu0
        %v1109 = vadd.f32 %v951, %v1108
        %v1110 = vpop.f32.mrb[0].mxu0
        %v1111 = vpop.f32.mrb[0].mxu0
        %v1112 = vadd.f32 %v956, %v1111
        %v1113 = vpop.f32.mrb[0].mxu0
        %1114 = vmatprep.mubr.bf16.mxu0 0
        %1115 = vmatmul.mubr.bf16.gmra.mrb[0].mxu0 %v1052
        %v1116 = vpop.f32.mrb[0].mxu0
        %v1117 = vadd.f32 %v961, %v1116
        %v1118 = vpop.f32.mrb[0].mxu0
        %v1119 = vpop.f32.mrb[0].mxu0
        %v1120 = vadd.f32 %v966, %v1119
        %v1121 = vpop.f32.mrb[0].mxu0
        %1122 = vmatprep.mubr.bf16.mxu0 0
        %1123 = vmatmul.mubr.bf16.gmra.mrb[0].mxu0 %v1053
        %v1124 = vpop.f32.mrb[0].mxu0
        %v1125 = vadd.f32 %v971, %v1124
        %v1126 = vpop.f32.mrb[0].mxu0
        %v1127 = vpop.f32.mrb[0].mxu0
        %v1128 = vadd.f32 %v976, %v1127
        %v1129 = vpop.f32.mrb[0].mxu0
        %1130 = vmatprep.mubr.bf16.mxu0 0
        %1131 = vmatmul.mubr.bf16.gmra.mrb[0].mxu0 %v1054
        %v1132 = vpop.f32.mrb[0].mxu0
        %v1133 = vadd.f32 %v981, %v1132
        %v1134 = vpop.f32.mrb[0].mxu0
        %v1135 = vpop.f32.mrb[0].mxu0
        %v1136 = vadd.f32 %v986, %v1135
        %v1137 = vpop.f32.mrb[0].mxu0
        %1138 = vmatprep.mubr.bf16.mxu0 0
        %1139 = vmatmul.mubr.bf16.gmra.mrb[0].mxu0 %v1055
        %v1140 = vpop.f32.mrb[0].mxu0
        %v1141 = vadd.f32 %v991, %v1140
        %v1142 = vpop.f32.mrb[0].mxu0
        %v1143 = vpop.f32.mrb[0].mxu0
        %v1144 = vadd.f32 %v996, %v1143
        %v1145 = vpop.f32.mrb[0].mxu0
        %1146 = vmatprep.mubr.bf16.mxu0 0
        %1147 = vmatmul.mubr.bf16.gmra.mrb[0].mxu0 %v1056
        %v1148 = vpop.f32.mrb[0].mxu0
        %v1149 = vadd.f32 %v1001, %v1148
        %v1150 = vpop.f32.mrb[0].mxu0
        %v1151 = vpop.f32.mrb[0].mxu0
        %v1152 = vadd.f32 %v1006, %v1151
        %v1153 = vpop.f32.mrb[0].mxu0
        %1154 = vmatprep.mubr.bf16.mxu0 0
        %1155 = vmatmul.mubr.bf16.gmra.mrb[0].mxu0 %v1057
        %v1156 = vpop.f32.mrb[0].mxu0
        %v1157 = vadd.f32 %v1011, %v1156
        %v1158 = vpop.f32.mrb[0].mxu0
        %v1159 = vpop.f32.mrb[0].mxu0
        %v1160 = vadd.f32 %v1016, %v1159
        %v1161 = vpop.f32.mrb[0].mxu0
        %1162 = vdwg.mxu0
        %v1163 = vpack.c.bf16 %v1104, %v1101
        %v1164 = vpack.c.bf16 %v1112, %v1109
        %v1165 = vpack.c.bf16 %v1120, %v1117
        %v1166 = vpack.c.bf16 %v1128, %v1125
        %v1167 = vpack.c.bf16 %v1136, %v1133
        %v1168 = vpack.c.bf16 %v1144, %v1141
        %v1169 = vpack.c.bf16 %v1152, %v1149
        %v1170 = vpack.c.bf16 %v1160, %v1157
        %1171 = vst.msk [vmem:[#allocation2] sm:$0xff] %vm889, %v1163
        %1172 = vst.msk [vmem:[#allocation2 + $0x8] sm:$0xff] %vm889, %v1164
        %1173 = vst.msk [vmem:[#allocation2 + $0x10] sm:$0xff] %vm889, %v1165
        %1174 = vst.msk [vmem:[#allocation2 + $0x18] sm:$0xff] %vm889, %v1166
        %1175 = vst.msk [vmem:[#allocation2 + $0x20] sm:$0xff] %vm889, %v1167
        %1176 = vst.msk [vmem:[#allocation2 + $0x28] sm:$0xff] %vm889, %v1168
        %1177 = vst.msk [vmem:[#allocation2 + $0x30] sm:$0xff] %vm889, %v1169
        %1178 = vst.msk [vmem:[#allocation2 + $0x38] sm:$0xff] %vm889, %v1170
        %s1179 = scalar_lea.vmem %s5, 64
        %v1180 = vld [vmem:[%s1179] sm:$0xf]
        %v1181 = vld [vmem:[%s1179 + $0x4] sm:$0xf]
        %v1182 = vld [vmem:[%s1179 + $0x8] sm:$0xf]
        %v1183 = vld [vmem:[%s1179 + $0xc] sm:$0xf]
        %v1184 = vld [vmem:[%s1179 + $0x10] sm:$0xf]
        %v1185 = vld [vmem:[%s1179 + $0x14] sm:$0xf]
        %v1186 = vld [vmem:[%s1179 + $0x18] sm:$0xf]
        %v1187 = vld [vmem:[%s1179 + $0x1c] sm:$0xf]
        %v1188 = vld [vmem:[%s1179 + $0x20] sm:$0xf]
        %v1189 = vld [vmem:[%s1179 + $0x24] sm:$0xf]
        %v1190 = vld [vmem:[%s1179 + $0x28] sm:$0xf]
        %v1191 = vld [vmem:[%s1179 + $0x2c] sm:$0xf]
        %v1192 = vld [vmem:[%s1179 + $0x30] sm:$0xf]
        %v1193 = vld [vmem:[%s1179 + $0x34] sm:$0xf]
        %v1194 = vld [vmem:[%s1179 + $0x38] sm:$0xf]
        %v1195 = vld [vmem:[%s1179 + $0x3c] sm:$0xf]
        %v1196 = vld [vmem:[#allocation2] sm:$0xff]
        %v1197 = vld [vmem:[#allocation2 + $0x8] sm:$0xff]
        %v1198 = vld [vmem:[#allocation2 + $0x10] sm:$0xff]
        %v1199 = vld [vmem:[#allocation2 + $0x18] sm:$0xff]
        %v1200 = vld [vmem:[#allocation2 + $0x20] sm:$0xff]
        %v1201 = vld [vmem:[#allocation2 + $0x28] sm:$0xff]
        %v1202 = vld [vmem:[#allocation2 + $0x30] sm:$0xff]
        %v1203 = vld [vmem:[#allocation2 + $0x38] sm:$0xff]
        %s1204 = scalar_lea.vmem %s6, 128
        %v1205 = vld [vmem:[%s1204] sm:$0xff]
        %v1206 = vld [vmem:[%s1204 + $0x8] sm:$0xff]
        %v1207 = vld [vmem:[%s1204 + $0x10] sm:$0xff]
        %v1208 = vld [vmem:[%s1204 + $0x18] sm:$0xff]
        %v1209 = vld [vmem:[%s1204 + $0x20] sm:$0xff]
        %v1210 = vld [vmem:[%s1204 + $0x28] sm:$0xff]
        %v1211 = vld [vmem:[%s1204 + $0x30] sm:$0xff]
        %v1212 = vld [vmem:[%s1204 + $0x38] sm:$0xff]
        %v1213 = vld [vmem:[%s1204 + $0x40] sm:$0xff]
        %v1214 = vld [vmem:[%s1204 + $0x48] sm:$0xff]
        %v1215 = vld [vmem:[%s1204 + $0x50] sm:$0xff]
        %v1216 = vld [vmem:[%s1204 + $0x58] sm:$0xff]
        %v1217 = vld [vmem:[%s1204 + $0x60] sm:$0xff]
        %v1218 = vld [vmem:[%s1204 + $0x68] sm:$0xff]
        %v1219 = vld [vmem:[%s1204 + $0x70] sm:$0xff]
        %v1220 = vld [vmem:[%s1204 + $0x78] sm:$0xff]
        %1222 = vset.pattern.permute.xlu0 0
        %1223 = vperm.xlu0 %1222, %v1205
        %v1224 = vpop.permute.xlu0 %1223
        %1227 = vset.pattern.permute.xlu0 0
        %1228 = vperm.xlu0 %1227, %v1206
        %v1229 = vpop.permute.xlu0 %1228
        %1232 = vset.pattern.permute.xlu0 0
        %1233 = vperm.xlu0 %1232, %v1207
        %v1234 = vpop.permute.xlu0 %1233
        %1237 = vset.pattern.permute.xlu0 0
        %1238 = vperm.xlu0 %1237, %v1208
        %v1239 = vpop.permute.xlu0 %1238
        %1242 = vset.pattern.permute.xlu0 0
        %1243 = vperm.xlu0 %1242, %v1209
        %v1244 = vpop.permute.xlu0 %1243
        %1247 = vset.pattern.permute.xlu0 0
        %1248 = vperm.xlu0 %1247, %v1210
        %v1249 = vpop.permute.xlu0 %1248
        %1252 = vset.pattern.permute.xlu0 0
        %1253 = vperm.xlu0 %1252, %v1211
        %v1254 = vpop.permute.xlu0 %1253
        %1257 = vset.pattern.permute.xlu0 0
        %1258 = vperm.xlu0 %1257, %v1212
        %v1259 = vpop.permute.xlu0 %1258
        %1262 = vset.pattern.permute.xlu0 0
        %1263 = vperm.xlu0 %1262, %v1213
        %v1264 = vpop.permute.xlu0 %1263
        %1267 = vset.pattern.permute.xlu0 0
        %1268 = vperm.xlu0 %1267, %v1214
        %v1269 = vpop.permute.xlu0 %1268
        %1272 = vset.pattern.permute.xlu0 0
        %1273 = vperm.xlu0 %1272, %v1215
        %v1274 = vpop.permute.xlu0 %1273
        %1277 = vset.pattern.permute.xlu0 0
        %1278 = vperm.xlu0 %1277, %v1216
        %v1279 = vpop.permute.xlu0 %1278
        %1282 = vset.pattern.permute.xlu0 0
        %1283 = vperm.xlu0 %1282, %v1217
        %v1284 = vpop.permute.xlu0 %1283
        %1287 = vset.pattern.permute.xlu0 0
        %1288 = vperm.xlu0 %1287, %v1218
        %v1289 = vpop.permute.xlu0 %1288
        %1292 = vset.pattern.permute.xlu0 0
        %1293 = vperm.xlu0 %1292, %v1219
        %v1294 = vpop.permute.xlu0 %1293
        %1297 = vset.pattern.permute.xlu0 0
        %1298 = vperm.xlu0 %1297, %v1220
        %v1299 = vpop.permute.xlu0 %1298
        %v1317 = vunpack.c.l.b16 %v1180
        %v1318 = vunpack.c.l.b16 %v1181
        %v1319 = vunpack.c.l.b16 %v1182
        %v1320 = vunpack.c.l.b16 %v1183
        %v1321 = vunpack.c.l.b16 %v1184
        %v1322 = vunpack.c.l.b16 %v1185
        %v1323 = vunpack.c.l.b16 %v1186
        %v1324 = vunpack.c.l.b16 %v1187
        %v1325 = vunpack.c.l.b16 %v1188
        %v1326 = vunpack.c.l.b16 %v1189
        %v1327 = vunpack.c.l.b16 %v1190
        %v1328 = vunpack.c.l.b16 %v1191
        %v1329 = vunpack.c.l.b16 %v1192
        %v1330 = vunpack.c.l.b16 %v1193
        %v1331 = vunpack.c.l.b16 %v1194
        %v1332 = vunpack.c.l.b16 %v1195
        %v1333 = vpack.c.b16 %v1318, %v1317
        %v1334 = vpack.c.b16 %v1320, %v1319
        %v1335 = vpack.c.b16 %v1322, %v1321
        %v1336 = vpack.c.b16 %v1324, %v1323
        %v1337 = vpack.c.b16 %v1326, %v1325
        %v1338 = vpack.c.b16 %v1328, %v1327
        %v1339 = vpack.c.b16 %v1330, %v1329
        %v1340 = vpack.c.b16 %v1332, %v1331
        %1349 = vmatprep.subr.bf16.mxu0 0
        %1350 = vmatpush1.bf16.msra.mxu0 %v1196
        %1351 = vmatprep.subr.bf16.mxu0 0
        %1352 = vmatpush1.bf16.msra.mxu0 %v1197
        %1353 = vmatprep.subr.bf16.mxu0 0
        %1354 = vmatpush1.bf16.msra.mxu0 %v1198
        %1355 = vmatprep.subr.bf16.mxu0 0
        %1356 = vmatpush1.bf16.msra.mxu0 %v1199
        %1357 = vmatprep.subr.bf16.mxu0 0
        %1358 = vmatpush1.bf16.msra.mxu0 %v1200
        %1359 = vmatprep.subr.bf16.mxu0 0
        %1360 = vmatpush1.bf16.msra.mxu0 %v1201
        %1361 = vmatprep.subr.bf16.mxu0 0
        %1362 = vmatpush1.bf16.msra.mxu0 %v1202
        %1363 = vmatprep.subr.bf16.mxu0 0
        %1364 = vmatpush1.bf16.msra.mxu0 %v1203
        %1365 = vmatprep.subr.bf16.mxu0 0
        %1366 = vmatpush1.bf16.msra.mxu0 0
        %1367 = vmatprep.subr.bf16.mxu0 0
        %1368 = vmatpush1.bf16.msra.mxu0 0
        %1369 = vmatprep.subr.bf16.mxu0 0
        %1370 = vmatpush1.bf16.msra.mxu0 0
        %1371 = vmatprep.subr.bf16.mxu0 0
        %1372 = vmatpush1.bf16.msra.mxu0 0
        %1373 = vmatprep.subr.bf16.mxu0 0
        %1374 = vmatpush1.bf16.msra.mxu0 0
        %1375 = vmatprep.subr.bf16.mxu0 0
        %1376 = vmatpush1.bf16.msra.mxu0 0
        %1377 = vmatprep.subr.bf16.mxu0 0
        %1378 = vmatpush1.bf16.msra.mxu0 0
        %1379 = vmatprep.subr.bf16.mxu0 0
        %1380 = vmatpush1.bf16.msra.mxu0 0
        %1381 = vmatprep.mubr.bf16.mxu0 0
        %1382 = vmatmul.mubr.bf16.gmra.mrb[0].mxu0 %v1333
        %v1383 = vpop.f32.mrb[0].mxu0
        %v1384 = vadd.f32 %v1224, %v1383
        %v1385 = vpop.f32.mrb[0].mxu0
        %v1386 = vpop.f32.mrb[0].mxu0
        %v1387 = vadd.f32 %v1229, %v1386
        %v1388 = vpop.f32.mrb[0].mxu0
        %1389 = vmatprep.mubr.bf16.mxu0 0
        %1390 = vmatmul.mubr.bf16.gmra.mrb[0].mxu0 %v1334
        %v1391 = vpop.f32.mrb[0].mxu0
        %v1392 = vadd.f32 %v1234, %v1391
        %v1393 = vpop.f32.mrb[0].mxu0
        %v1394 = vpop.f32.mrb[0].mxu0
        %v1395 = vadd.f32 %v1239, %v1394
        %v1396 = vpop.f32.mrb[0].mxu0
        %1397 = vmatprep.mubr.bf16.mxu0 0
        %1398 = vmatmul.mubr.bf16.gmra.mrb[0].mxu0 %v1335
        %v1399 = vpop.f32.mrb[0].mxu0
        %v1400 = vadd.f32 %v1244, %v1399
        %v1401 = vpop.f32.mrb[0].mxu0
        %v1402 = vpop.f32.mrb[0].mxu0
        %v1403 = vadd.f32 %v1249, %v1402
        %v1404 = vpop.f32.mrb[0].mxu0
        %1405 = vmatprep.mubr.bf16.mxu0 0
        %1406 = vmatmul.mubr.bf16.gmra.mrb[0].mxu0 %v1336
        %v1407 = vpop.f32.mrb[0].mxu0
        %v1408 = vadd.f32 %v1254, %v1407
        %v1409 = vpop.f32.mrb[0].mxu0
        %v1410 = vpop.f32.mrb[0].mxu0
        %v1411 = vadd.f32 %v1259, %v1410
        %v1412 = vpop.f32.mrb[0].mxu0
        %1413 = vmatprep.mubr.bf16.mxu0 0
        %1414 = vmatmul.mubr.bf16.gmra.mrb[0].mxu0 %v1337
        %v1415 = vpop.f32.mrb[0].mxu0
        %v1416 = vadd.f32 %v1264, %v1415
        %v1417 = vpop.f32.mrb[0].mxu0
        %v1418 = vpop.f32.mrb[0].mxu0
        %v1419 = vadd.f32 %v1269, %v1418
        %v1420 = vpop.f32.mrb[0].mxu0
        %1421 = vmatprep.mubr.bf16.mxu0 0
        %1422 = vmatmul.mubr.bf16.gmra.mrb[0].mxu0 %v1338
        %v1423 = vpop.f32.mrb[0].mxu0
        %v1424 = vadd.f32 %v1274, %v1423
        %v1425 = vpop.f32.mrb[0].mxu0
        %v1426 = vpop.f32.mrb[0].mxu0
        %v1427 = vadd.f32 %v1279, %v1426
        %v1428 = vpop.f32.mrb[0].mxu0
        %1429 = vmatprep.mubr.bf16.mxu0 0
        %1430 = vmatmul.mubr.bf16.gmra.mrb[0].mxu0 %v1339
        %v1431 = vpop.f32.mrb[0].mxu0
        %v1432 = vadd.f32 %v1284, %v1431
        %v1433 = vpop.f32.mrb[0].mxu0
        %v1434 = vpop.f32.mrb[0].mxu0
        %v1435 = vadd.f32 %v1289, %v1434
        %v1436 = vpop.f32.mrb[0].mxu0
        %1437 = vmatprep.mubr.bf16.mxu0 0
        %1438 = vmatmul.mubr.bf16.gmra.mrb[0].mxu0 %v1340
        %v1439 = vpop.f32.mrb[0].mxu0
        %v1440 = vadd.f32 %v1294, %v1439
        %v1441 = vpop.f32.mrb[0].mxu0
        %v1442 = vpop.f32.mrb[0].mxu0
        %v1443 = vadd.f32 %v1299, %v1442
        %v1444 = vpop.f32.mrb[0].mxu0
        %1445 = vdwg.mxu0
        %v1446 = vpack.c.bf16 %v1387, %v1384
        %v1447 = vpack.c.bf16 %v1395, %v1392
        %v1448 = vpack.c.bf16 %v1403, %v1400
        %v1449 = vpack.c.bf16 %v1411, %v1408
        %v1450 = vpack.c.bf16 %v1419, %v1416
        %v1451 = vpack.c.bf16 %v1427, %v1424
        %v1452 = vpack.c.bf16 %v1435, %v1432
        %v1453 = vpack.c.bf16 %v1443, %v1440
        %1454 = vst.msk [vmem:[#allocation2] sm:$0xff] %vm889, %v1446
        %1455 = vst.msk [vmem:[#allocation2 + $0x8] sm:$0xff] %vm889, %v1447
        %1456 = vst.msk [vmem:[#allocation2 + $0x10] sm:$0xff] %vm889, %v1448
        %1457 = vst.msk [vmem:[#allocation2 + $0x18] sm:$0xff] %vm889, %v1449
        %1458 = vst.msk [vmem:[#allocation2 + $0x20] sm:$0xff] %vm889, %v1450
        %1459 = vst.msk [vmem:[#allocation2 + $0x28] sm:$0xff] %vm889, %v1451
        %1460 = vst.msk [vmem:[#allocation2 + $0x30] sm:$0xff] %vm889, %v1452
        %1461 = vst.msk [vmem:[#allocation2 + $0x38] sm:$0xff] %vm889, %v1453
        %s1462 = scalar_lea.vmem %s5, 128
        %v1463 = vld [vmem:[%s1462] sm:$0xf]
        %v1464 = vld [vmem:[%s1462 + $0x4] sm:$0xf]
        %v1465 = vld [vmem:[%s1462 + $0x8] sm:$0xf]
        %v1466 = vld [vmem:[%s1462 + $0xc] sm:$0xf]
        %v1467 = vld [vmem:[%s1462 + $0x10] sm:$0xf]
        %v1468 = vld [vmem:[%s1462 + $0x14] sm:$0xf]
        %v1469 = vld [vmem:[%s1462 + $0x18] sm:$0xf]
        %v1470 = vld [vmem:[%s1462 + $0x1c] sm:$0xf]
        %v1471 = vld [vmem:[%s1462 + $0x20] sm:$0xf]
        %v1472 = vld [vmem:[%s1462 + $0x24] sm:$0xf]
        %v1473 = vld [vmem:[%s1462 + $0x28] sm:$0xf]
        %v1474 = vld [vmem:[%s1462 + $0x2c] sm:$0xf]
        %v1475 = vld [vmem:[%s1462 + $0x30] sm:$0xf]
        %v1476 = vld [vmem:[%s1462 + $0x34] sm:$0xf]
        %v1477 = vld [vmem:[%s1462 + $0x38] sm:$0xf]
        %v1478 = vld [vmem:[%s1462 + $0x3c] sm:$0xf]
        %v1479 = vld [vmem:[#allocation2] sm:$0xff]
        %v1480 = vld [vmem:[#allocation2 + $0x8] sm:$0xff]
        %v1481 = vld [vmem:[#allocation2 + $0x10] sm:$0xff]
        %v1482 = vld [vmem:[#allocation2 + $0x18] sm:$0xff]
        %v1483 = vld [vmem:[#allocation2 + $0x20] sm:$0xff]
        %v1484 = vld [vmem:[#allocation2 + $0x28] sm:$0xff]
        %v1485 = vld [vmem:[#allocation2 + $0x30] sm:$0xff]
        %v1486 = vld [vmem:[#allocation2 + $0x38] sm:$0xff]
        %s1487 = scalar_lea.vmem %s6, 256
        %v1488 = vld [vmem:[%s1487] sm:$0xff]
        %v1489 = vld [vmem:[%s1487 + $0x8] sm:$0xff]
        %v1490 = vld [vmem:[%s1487 + $0x10] sm:$0xff]
        %v1491 = vld [vmem:[%s1487 + $0x18] sm:$0xff]
        %v1492 = vld [vmem:[%s1487 + $0x20] sm:$0xff]
        %v1493 = vld [vmem:[%s1487 + $0x28] sm:$0xff]
        %v1494 = vld [vmem:[%s1487 + $0x30] sm:$0xff]
        %v1495 = vld [vmem:[%s1487 + $0x38] sm:$0xff]
        %v1496 = vld [vmem:[%s1487 + $0x40] sm:$0xff]
        %v1497 = vld [vmem:[%s1487 + $0x48] sm:$0xff]
        %v1498 = vld [vmem:[%s1487 + $0x50] sm:$0xff]
        %v1499 = vld [vmem:[%s1487 + $0x58] sm:$0xff]
        %v1500 = vld [vmem:[%s1487 + $0x60] sm:$0xff]
        %v1501 = vld [vmem:[%s1487 + $0x68] sm:$0xff]
        %v1502 = vld [vmem:[%s1487 + $0x70] sm:$0xff]
        %v1503 = vld [vmem:[%s1487 + $0x78] sm:$0xff]
        %1505 = vset.pattern.permute.xlu0 0
        %1506 = vperm.xlu0 %1505, %v1488
        %v1507 = vpop.permute.xlu0 %1506
        %1510 = vset.pattern.permute.xlu0 0
        %1511 = vperm.xlu0 %1510, %v1489
        %v1512 = vpop.permute.xlu0 %1511
        %1515 = vset.pattern.permute.xlu0 0
        %1516 = vperm.xlu0 %1515, %v1490
        %v1517 = vpop.permute.xlu0 %1516
        %1520 = vset.pattern.permute.xlu0 0
        %1521 = vperm.xlu0 %1520, %v1491
        %v1522 = vpop.permute.xlu0 %1521
        %1525 = vset.pattern.permute.xlu0 0
        %1526 = vperm.xlu0 %1525, %v1492
        %v1527 = vpop.permute.xlu0 %1526
        %1530 = vset.pattern.permute.xlu0 0
        %1531 = vperm.xlu0 %1530, %v1493
        %v1532 = vpop.permute.xlu0 %1531
        %1535 = vset.pattern.permute.xlu0 0
        %1536 = vperm.xlu0 %1535, %v1494
        %v1537 = vpop.permute.xlu0 %1536
        %1540 = vset.pattern.permute.xlu0 0
        %1541 = vperm.xlu0 %1540, %v1495
        %v1542 = vpop.permute.xlu0 %1541
        %1545 = vset.pattern.permute.xlu0 0
        %1546 = vperm.xlu0 %1545, %v1496
        %v1547 = vpop.permute.xlu0 %1546
        %1550 = vset.pattern.permute.xlu0 0
        %1551 = vperm.xlu0 %1550, %v1497
        %v1552 = vpop.permute.xlu0 %1551
        %1555 = vset.pattern.permute.xlu0 0
        %1556 = vperm.xlu0 %1555, %v1498
        %v1557 = vpop.permute.xlu0 %1556
        %1560 = vset.pattern.permute.xlu0 0
        %1561 = vperm.xlu0 %1560, %v1499
        %v1562 = vpop.permute.xlu0 %1561
        %1565 = vset.pattern.permute.xlu0 0
        %1566 = vperm.xlu0 %1565, %v1500
        %v1567 = vpop.permute.xlu0 %1566
        %1570 = vset.pattern.permute.xlu0 0
        %1571 = vperm.xlu0 %1570, %v1501
        %v1572 = vpop.permute.xlu0 %1571
        %1575 = vset.pattern.permute.xlu0 0
        %1576 = vperm.xlu0 %1575, %v1502
        %v1577 = vpop.permute.xlu0 %1576
        %1580 = vset.pattern.permute.xlu0 0
        %1581 = vperm.xlu0 %1580, %v1503
        %v1582 = vpop.permute.xlu0 %1581
        %v1600 = vunpack.c.l.b16 %v1463
        %v1601 = vunpack.c.l.b16 %v1464
        %v1602 = vunpack.c.l.b16 %v1465
        %v1603 = vunpack.c.l.b16 %v1466
        %v1604 = vunpack.c.l.b16 %v1467
        %v1605 = vunpack.c.l.b16 %v1468
        %v1606 = vunpack.c.l.b16 %v1469
        %v1607 = vunpack.c.l.b16 %v1470
        %v1608 = vunpack.c.l.b16 %v1471
        %v1609 = vunpack.c.l.b16 %v1472
        %v1610 = vunpack.c.l.b16 %v1473
        %v1611 = vunpack.c.l.b16 %v1474
        %v1612 = vunpack.c.l.b16 %v1475
        %v1613 = vunpack.c.l.b16 %v1476
        %v1614 = vunpack.c.l.b16 %v1477
        %v1615 = vunpack.c.l.b16 %v1478
        %v1616 = vpack.c.b16 %v1601, %v1600
        %v1617 = vpack.c.b16 %v1603, %v1602
        %v1618 = vpack.c.b16 %v1605, %v1604
        %v1619 = vpack.c.b16 %v1607, %v1606
        %v1620 = vpack.c.b16 %v1609, %v1608
        %v1621 = vpack.c.b16 %v1611, %v1610
        %v1622 = vpack.c.b16 %v1613, %v1612
        %v1623 = vpack.c.b16 %v1615, %v1614
        %1632 = vmatprep.subr.bf16.mxu0 0
        %1633 = vmatpush1.bf16.msra.mxu0 %v1479
        %1634 = vmatprep.subr.bf16.mxu0 0
        %1635 = vmatpush1.bf16.msra.mxu0 %v1480
        %1636 = vmatprep.subr.bf16.mxu0 0
        %1637 = vmatpush1.bf16.msra.mxu0 %v1481
        %1638 = vmatprep.subr.bf16.mxu0 0
        %1639 = vmatpush1.bf16.msra.mxu0 %v1482
        %1640 = vmatprep.subr.bf16.mxu0 0
        %1641 = vmatpush1.bf16.msra.mxu0 %v1483
        %1642 = vmatprep.subr.bf16.mxu0 0
        %1643 = vmatpush1.bf16.msra.mxu0 %v1484
        %1644 = vmatprep.subr.bf16.mxu0 0
        %1645 = vmatpush1.bf16.msra.mxu0 %v1485
        %1646 = vmatprep.subr.bf16.mxu0 0
        %1647 = vmatpush1.bf16.msra.mxu0 %v1486
        %1648 = vmatprep.subr.bf16.mxu0 0
        %1649 = vmatpush1.bf16.msra.mxu0 0
        %1650 = vmatprep.subr.bf16.mxu0 0
        %1651 = vmatpush1.bf16.msra.mxu0 0
        %1652 = vmatprep.subr.bf16.mxu0 0
        %1653 = vmatpush1.bf16.msra.mxu0 0
        %1654 = vmatprep.subr.bf16.mxu0 0
        %1655 = vmatpush1.bf16.msra.mxu0 0
        %1656 = vmatprep.subr.bf16.mxu0 0
        %1657 = vmatpush1.bf16.msra.mxu0 0
        %1658 = vmatprep.subr.bf16.mxu0 0
        %1659 = vmatpush1.bf16.msra.mxu0 0
        %1660 = vmatprep.subr.bf16.mxu0 0
        %1661 = vmatpush1.bf16.msra.mxu0 0
        %1662 = vmatprep.subr.bf16.mxu0 0
        %1663 = vmatpush1.bf16.msra.mxu0 0
        %1664 = vmatprep.mubr.bf16.mxu0 0
        %1665 = vmatmul.mubr.bf16.gmra.mrb[0].mxu0 %v1616
        %v1666 = vpop.f32.mrb[0].mxu0
        %v1667 = vadd.f32 %v1507, %v1666
        %v1668 = vpop.f32.mrb[0].mxu0
        %v1669 = vpop.f32.mrb[0].mxu0
        %v1670 = vadd.f32 %v1512, %v1669
        %v1671 = vpop.f32.mrb[0].mxu0
        %1672 = vmatprep.mubr.bf16.mxu0 0
        %1673 = vmatmul.mubr.bf16.gmra.mrb[0].mxu0 %v1617
        %v1674 = vpop.f32.mrb[0].mxu0
        %v1675 = vadd.f32 %v1517, %v1674
        %v1676 = vpop.f32.mrb[0].mxu0
        %v1677 = vpop.f32.mrb[0].mxu0
        %v1678 = vadd.f32 %v1522, %v1677
        %v1679 = vpop.f32.mrb[0].mxu0
        %1680 = vmatprep.mubr.bf16.mxu0 0
        %1681 = vmatmul.mubr.bf16.gmra.mrb[0].mxu0 %v1618
        %v1682 = vpop.f32.mrb[0].mxu0
        %v1683 = vadd.f32 %v1527, %v1682
        %v1684 = vpop.f32.mrb[0].mxu0
        %v1685 = vpop.f32.mrb[0].mxu0
        %v1686 = vadd.f32 %v1532, %v1685
        %v1687 = vpop.f32.mrb[0].mxu0
        %1688 = vmatprep.mubr.bf16.mxu0 0
        %1689 = vmatmul.mubr.bf16.gmra.mrb[0].mxu0 %v1619
        %v1690 = vpop.f32.mrb[0].mxu0
        %v1691 = vadd.f32 %v1537, %v1690
        %v1692 = vpop.f32.mrb[0].mxu0
        %v1693 = vpop.f32.mrb[0].mxu0
        %v1694 = vadd.f32 %v1542, %v1693
        %v1695 = vpop.f32.mrb[0].mxu0
        %1696 = vmatprep.mubr.bf16.mxu0 0
        %1697 = vmatmul.mubr.bf16.gmra.mrb[0].mxu0 %v1620
        %v1698 = vpop.f32.mrb[0].mxu0
        %v1699 = vadd.f32 %v1547, %v1698
        %v1700 = vpop.f32.mrb[0].mxu0
        %v1701 = vpop.f32.mrb[0].mxu0
        %v1702 = vadd.f32 %v1552, %v1701
        %v1703 = vpop.f32.mrb[0].mxu0
        %1704 = vmatprep.mubr.bf16.mxu0 0
        %1705 = vmatmul.mubr.bf16.gmra.mrb[0].mxu0 %v1621
        %v1706 = vpop.f32.mrb[0].mxu0
        %v1707 = vadd.f32 %v1557, %v1706
        %v1708 = vpop.f32.mrb[0].mxu0
        %v1709 = vpop.f32.mrb[0].mxu0
        %v1710 = vadd.f32 %v1562, %v1709
        %v1711 = vpop.f32.mrb[0].mxu0
        %1712 = vmatprep.mubr.bf16.mxu0 0
        %1713 = vmatmul.mubr.bf16.gmra.mrb[0].mxu0 %v1622
        %v1714 = vpop.f32.mrb[0].mxu0
        %v1715 = vadd.f32 %v1567, %v1714
        %v1716 = vpop.f32.mrb[0].mxu0
        %v1717 = vpop.f32.mrb[0].mxu0
        %v1718 = vadd.f32 %v1572, %v1717
        %v1719 = vpop.f32.mrb[0].mxu0
        %1720 = vmatprep.mubr.bf16.mxu0 0
        %1721 = vmatmul.mubr.bf16.gmra.mrb[0].mxu0 %v1623
        %v1722 = vpop.f32.mrb[0].mxu0
        %v1723 = vadd.f32 %v1577, %v1722
        %v1724 = vpop.f32.mrb[0].mxu0
        %v1725 = vpop.f32.mrb[0].mxu0
        %v1726 = vadd.f32 %v1582, %v1725
        %v1727 = vpop.f32.mrb[0].mxu0
        %1728 = vdwg.mxu0
        %v1729 = vpack.c.bf16 %v1670, %v1667
        %v1730 = vpack.c.bf16 %v1678, %v1675
        %v1731 = vpack.c.bf16 %v1686, %v1683
        %v1732 = vpack.c.bf16 %v1694, %v1691
        %v1733 = vpack.c.bf16 %v1702, %v1699
        %v1734 = vpack.c.bf16 %v1710, %v1707
        %v1735 = vpack.c.bf16 %v1718, %v1715
        %v1736 = vpack.c.bf16 %v1726, %v1723
        %1737 = vst.msk [vmem:[#allocation2] sm:$0xff] %vm889, %v1729
        %1738 = vst.msk [vmem:[#allocation2 + $0x8] sm:$0xff] %vm889, %v1730
        %1739 = vst.msk [vmem:[#allocation2 + $0x10] sm:$0xff] %vm889, %v1731
        %1740 = vst.msk [vmem:[#allocation2 + $0x18] sm:$0xff] %vm889, %v1732
        %1741 = vst.msk [vmem:[#allocation2 + $0x20] sm:$0xff] %vm889, %v1733
        %1742 = vst.msk [vmem:[#allocation2 + $0x28] sm:$0xff] %vm889, %v1734
        %1743 = vst.msk [vmem:[#allocation2 + $0x30] sm:$0xff] %vm889, %v1735
        %1744 = vst.msk [vmem:[#allocation2 + $0x38] sm:$0xff] %vm889, %v1736
        %s1745 = scalar_lea.vmem %s5, 192
        %v1746 = vld [vmem:[%s1745] sm:$0xf]
        %v1747 = vld [vmem:[%s1745 + $0x4] sm:$0xf]
        %v1748 = vld [vmem:[%s1745 + $0x8] sm:$0xf]
        %v1749 = vld [vmem:[%s1745 + $0xc] sm:$0xf]
        %v1750 = vld [vmem:[%s1745 + $0x10] sm:$0xf]
        %v1751 = vld [vmem:[%s1745 + $0x14] sm:$0xf]
        %v1752 = vld [vmem:[%s1745 + $0x18] sm:$0xf]
        %v1753 = vld [vmem:[%s1745 + $0x1c] sm:$0xf]
        %v1754 = vld [vmem:[%s1745 + $0x20] sm:$0xf]
        %v1755 = vld [vmem:[%s1745 + $0x24] sm:$0xf]
        %v1756 = vld [vmem:[%s1745 + $0x28] sm:$0xf]
        %v1757 = vld [vmem:[%s1745 + $0x2c] sm:$0xf]
        %v1758 = vld [vmem:[%s1745 + $0x30] sm:$0xf]
        %v1759 = vld [vmem:[%s1745 + $0x34] sm:$0xf]
        %v1760 = vld [vmem:[%s1745 + $0x38] sm:$0xf]
        %v1761 = vld [vmem:[%s1745 + $0x3c] sm:$0xf]
        %v1762 = vld [vmem:[#allocation2] sm:$0xff]
        %v1763 = vld [vmem:[#allocation2 + $0x8] sm:$0xff]
        %v1764 = vld [vmem:[#allocation2 + $0x10] sm:$0xff]
        %v1765 = vld [vmem:[#allocation2 + $0x18] sm:$0xff]
        %v1766 = vld [vmem:[#allocation2 + $0x20] sm:$0xff]
        %v1767 = vld [vmem:[#allocation2 + $0x28] sm:$0xff]
        %v1768 = vld [vmem:[#allocation2 + $0x30] sm:$0xff]
        %v1769 = vld [vmem:[#allocation2 + $0x38] sm:$0xff]
        %s1770 = scalar_lea.vmem %s6, 384
        %v1771 = vld [vmem:[%s1770] sm:$0xff]
        %v1772 = vld [vmem:[%s1770 + $0x8] sm:$0xff]
        %v1773 = vld [vmem:[%s1770 + $0x10] sm:$0xff]
        %v1774 = vld [vmem:[%s1770 + $0x18] sm:$0xff]
        %v1775 = vld [vmem:[%s1770 + $0x20] sm:$0xff]
        %v1776 = vld [vmem:[%s1770 + $0x28] sm:$0xff]
        %v1777 = vld [vmem:[%s1770 + $0x30] sm:$0xff]
        %v1778 = vld [vmem:[%s1770 + $0x38] sm:$0xff]
        %v1779 = vld [vmem:[%s1770 + $0x40] sm:$0xff]
        %v1780 = vld [vmem:[%s1770 + $0x48] sm:$0xff]
        %v1781 = vld [vmem:[%s1770 + $0x50] sm:$0xff]
        %v1782 = vld [vmem:[%s1770 + $0x58] sm:$0xff]
        %v1783 = vld [vmem:[%s1770 + $0x60] sm:$0xff]
        %v1784 = vld [vmem:[%s1770 + $0x68] sm:$0xff]
        %v1785 = vld [vmem:[%s1770 + $0x70] sm:$0xff]
        %v1786 = vld [vmem:[%s1770 + $0x78] sm:$0xff]
        %1788 = vset.pattern.permute.xlu0 0
        %1789 = vperm.xlu0 %1788, %v1771
        %v1790 = vpop.permute.xlu0 %1789
        %1793 = vset.pattern.permute.xlu0 0
        %1794 = vperm.xlu0 %1793, %v1772
        %v1795 = vpop.permute.xlu0 %1794
        %1798 = vset.pattern.permute.xlu0 0
        %1799 = vperm.xlu0 %1798, %v1773
        %v1800 = vpop.permute.xlu0 %1799
        %1803 = vset.pattern.permute.xlu0 0
        %1804 = vperm.xlu0 %1803, %v1774
        %v1805 = vpop.permute.xlu0 %1804
        %1808 = vset.pattern.permute.xlu0 0
        %1809 = vperm.xlu0 %1808, %v1775
        %v1810 = vpop.permute.xlu0 %1809
        %1813 = vset.pattern.permute.xlu0 0
        %1814 = vperm.xlu0 %1813, %v1776
        %v1815 = vpop.permute.xlu0 %1814
        %1818 = vset.pattern.permute.xlu0 0
        %1819 = vperm.xlu0 %1818, %v1777
        %v1820 = vpop.permute.xlu0 %1819
        %1823 = vset.pattern.permute.xlu0 0
        %1824 = vperm.xlu0 %1823, %v1778
        %v1825 = vpop.permute.xlu0 %1824
        %1828 = vset.pattern.permute.xlu0 0
        %1829 = vperm.xlu0 %1828, %v1779
        %v1830 = vpop.permute.xlu0 %1829
        %1833 = vset.pattern.permute.xlu0 0
        %1834 = vperm.xlu0 %1833, %v1780
        %v1835 = vpop.permute.xlu0 %1834
        %1838 = vset.pattern.permute.xlu0 0
        %1839 = vperm.xlu0 %1838, %v1781
        %v1840 = vpop.permute.xlu0 %1839
        %1843 = vset.pattern.permute.xlu0 0
        %1844 = vperm.xlu0 %1843, %v1782
        %v1845 = vpop.permute.xlu0 %1844
        %1848 = vset.pattern.permute.xlu0 0
        %1849 = vperm.xlu0 %1848, %v1783
        %v1850 = vpop.permute.xlu0 %1849
        %1853 = vset.pattern.permute.xlu0 0
        %1854 = vperm.xlu0 %1853, %v1784
        %v1855 = vpop.permute.xlu0 %1854
        %1858 = vset.pattern.permute.xlu0 0
        %1859 = vperm.xlu0 %1858, %v1785
        %v1860 = vpop.permute.xlu0 %1859
        %1863 = vset.pattern.permute.xlu0 0
        %1864 = vperm.xlu0 %1863, %v1786
        %v1865 = vpop.permute.xlu0 %1864
        %v1883 = vunpack.c.l.b16 %v1746
        %v1884 = vunpack.c.l.b16 %v1747
        %v1885 = vunpack.c.l.b16 %v1748
        %v1886 = vunpack.c.l.b16 %v1749
        %v1887 = vunpack.c.l.b16 %v1750
        %v1888 = vunpack.c.l.b16 %v1751
        %v1889 = vunpack.c.l.b16 %v1752
        %v1890 = vunpack.c.l.b16 %v1753
        %v1891 = vunpack.c.l.b16 %v1754
        %v1892 = vunpack.c.l.b16 %v1755
        %v1893 = vunpack.c.l.b16 %v1756
        %v1894 = vunpack.c.l.b16 %v1757
        %v1895 = vunpack.c.l.b16 %v1758
        %v1896 = vunpack.c.l.b16 %v1759
        %v1897 = vunpack.c.l.b16 %v1760
        %v1898 = vunpack.c.l.b16 %v1761
        %v1899 = vpack.c.b16 %v1884, %v1883
        %v1900 = vpack.c.b16 %v1886, %v1885
        %v1901 = vpack.c.b16 %v1888, %v1887
        %v1902 = vpack.c.b16 %v1890, %v1889
        %v1903 = vpack.c.b16 %v1892, %v1891
        %v1904 = vpack.c.b16 %v1894, %v1893
        %v1905 = vpack.c.b16 %v1896, %v1895
        %v1906 = vpack.c.b16 %v1898, %v1897
        %1915 = vmatprep.subr.bf16.mxu0 0
        %1916 = vmatpush1.bf16.msra.mxu0 %v1762
        %1917 = vmatprep.subr.bf16.mxu0 0
        %1918 = vmatpush1.bf16.msra.mxu0 %v1763
        %1919 = vmatprep.subr.bf16.mxu0 0
        %1920 = vmatpush1.bf16.msra.mxu0 %v1764
        %1921 = vmatprep.subr.bf16.mxu0 0
        %1922 = vmatpush1.bf16.msra.mxu0 %v1765
        %1923 = vmatprep.subr.bf16.mxu0 0
        %1924 = vmatpush1.bf16.msra.mxu0 %v1766
        %1925 = vmatprep.subr.bf16.mxu0 0
        %1926 = vmatpush1.bf16.msra.mxu0 %v1767
        %1927 = vmatprep.subr.bf16.mxu0 0
        %1928 = vmatpush1.bf16.msra.mxu0 %v1768
        %1929 = vmatprep.subr.bf16.mxu0 0
        %1930 = vmatpush1.bf16.msra.mxu0 %v1769
        %1931 = vmatprep.subr.bf16.mxu0 0
        %1932 = vmatpush1.bf16.msra.mxu0 0
        %1933 = vmatprep.subr.bf16.mxu0 0
        %1934 = vmatpush1.bf16.msra.mxu0 0
        %1935 = vmatprep.subr.bf16.mxu0 0
        %1936 = vmatpush1.bf16.msra.mxu0 0
        %1937 = vmatprep.subr.bf16.mxu0 0
        %1938 = vmatpush1.bf16.msra.mxu0 0
        %1939 = vmatprep.subr.bf16.mxu0 0
        %1940 = vmatpush1.bf16.msra.mxu0 0
        %1941 = vmatprep.subr.bf16.mxu0 0
        %1942 = vmatpush1.bf16.msra.mxu0 0
        %1943 = vmatprep.subr.bf16.mxu0 0
        %1944 = vmatpush1.bf16.msra.mxu0 0
        %1945 = vmatprep.subr.bf16.mxu0 0
        %1946 = vmatpush1.bf16.msra.mxu0 0
        %1947 = vmatprep.mubr.bf16.mxu0 0
        %1948 = vmatmul.mubr.bf16.gmra.mrb[0].mxu0 %v1899
        %v1949 = vpop.f32.mrb[0].mxu0
        %v1950 = vadd.f32 %v1790, %v1949
        %v1951 = vpop.f32.mrb[0].mxu0
        %v1952 = vpop.f32.mrb[0].mxu0
        %v1953 = vadd.f32 %v1795, %v1952
        %v1954 = vpop.f32.mrb[0].mxu0
        %1955 = vmatprep.mubr.bf16.mxu0 0
        %1956 = vmatmul.mubr.bf16.gmra.mrb[0].mxu0 %v1900
        %v1957 = vpop.f32.mrb[0].mxu0
        %v1958 = vadd.f32 %v1800, %v1957
        %v1959 = vpop.f32.mrb[0].mxu0
        %v1960 = vpop.f32.mrb[0].mxu0
        %v1961 = vadd.f32 %v1805, %v1960
        %v1962 = vpop.f32.mrb[0].mxu0
        %1963 = vmatprep.mubr.bf16.mxu0 0
        %1964 = vmatmul.mubr.bf16.gmra.mrb[0].mxu0 %v1901
        %v1965 = vpop.f32.mrb[0].mxu0
        %v1966 = vadd.f32 %v1810, %v1965
        %v1967 = vpop.f32.mrb[0].mxu0
        %v1968 = vpop.f32.mrb[0].mxu0
        %v1969 = vadd.f32 %v1815, %v1968
        %v1970 = vpop.f32.mrb[0].mxu0
        %1971 = vmatprep.mubr.bf16.mxu0 0
        %1972 = vmatmul.mubr.bf16.gmra.mrb[0].mxu0 %v1902
        %v1973 = vpop.f32.mrb[0].mxu0
        %v1974 = vadd.f32 %v1820, %v1973
        %v1975 = vpop.f32.mrb[0].mxu0
        %v1976 = vpop.f32.mrb[0].mxu0
        %v1977 = vadd.f32 %v1825, %v1976
        %v1978 = vpop.f32.mrb[0].mxu0
        %1979 = vmatprep.mubr.bf16.mxu0 0
        %1980 = vmatmul.mubr.bf16.gmra.mrb[0].mxu0 %v1903
        %v1981 = vpop.f32.mrb[0].mxu0
        %v1982 = vadd.f32 %v1830, %v1981
        %v1983 = vpop.f32.mrb[0].mxu0
        %v1984 = vpop.f32.mrb[0].mxu0
        %v1985 = vadd.f32 %v1835, %v1984
        %v1986 = vpop.f32.mrb[0].mxu0
        %1987 = vmatprep.mubr.bf16.mxu0 0
        %1988 = vmatmul.mubr.bf16.gmra.mrb[0].mxu0 %v1904
        %v1989 = vpop.f32.mrb[0].mxu0
        %v1990 = vadd.f32 %v1840, %v1989
        %v1991 = vpop.f32.mrb[0].mxu0
        %v1992 = vpop.f32.mrb[0].mxu0
        %v1993 = vadd.f32 %v1845, %v1992
        %v1994 = vpop.f32.mrb[0].mxu0
        %1995 = vmatprep.mubr.bf16.mxu0 0
        %1996 = vmatmul.mubr.bf16.gmra.mrb[0].mxu0 %v1905
        %v1997 = vpop.f32.mrb[0].mxu0
        %v1998 = vadd.f32 %v1850, %v1997
        %v1999 = vpop.f32.mrb[0].mxu0
        %v2000 = vpop.f32.mrb[0].mxu0
        %v2001 = vadd.f32 %v1855, %v2000
        %v2002 = vpop.f32.mrb[0].mxu0
        %2003 = vmatprep.mubr.bf16.mxu0 0
        %2004 = vmatmul.mubr.bf16.gmra.mrb[0].mxu0 %v1906
        %v2005 = vpop.f32.mrb[0].mxu0
        %v2006 = vadd.f32 %v1860, %v2005
        %v2007 = vpop.f32.mrb[0].mxu0
        %v2008 = vpop.f32.mrb[0].mxu0
        %v2009 = vadd.f32 %v1865, %v2008
        %v2010 = vpop.f32.mrb[0].mxu0
        %2011 = vdwg.mxu0
        %v2012 = vpack.c.bf16 %v1953, %v1950
        %v2013 = vpack.c.bf16 %v1961, %v1958
        %v2014 = vpack.c.bf16 %v1969, %v1966
        %v2015 = vpack.c.bf16 %v1977, %v1974
        %v2016 = vpack.c.bf16 %v1985, %v1982
        %v2017 = vpack.c.bf16 %v1993, %v1990
        %v2018 = vpack.c.bf16 %v2001, %v1998
        %v2019 = vpack.c.bf16 %v2009, %v2006
        %2020 = vst.msk [vmem:[#allocation2] sm:$0xff] %vm889, %v2012
        %2021 = vst.msk [vmem:[#allocation2 + $0x8] sm:$0xff] %vm889, %v2013
        %2022 = vst.msk [vmem:[#allocation2 + $0x10] sm:$0xff] %vm889, %v2014
        %2023 = vst.msk [vmem:[#allocation2 + $0x18] sm:$0xff] %vm889, %v2015
        %2024 = vst.msk [vmem:[#allocation2 + $0x20] sm:$0xff] %vm889, %v2016
        %2025 = vst.msk [vmem:[#allocation2 + $0x28] sm:$0xff] %vm889, %v2017
        %2026 = vst.msk [vmem:[#allocation2 + $0x30] sm:$0xff] %vm889, %v2018
        %2027 = vst.msk [vmem:[#allocation2 + $0x38] sm:$0xff] %vm889, %v2019
        %v2028 = vld [vmem:[%s7] sm:$0x1]
        %v2029 = vld [vmem:[#allocation2] sm:$0xff]
        %v2030 = vld [vmem:[#allocation2 + $0x8] sm:$0xff]
        %v2031 = vld [vmem:[#allocation2 + $0x10] sm:$0xff]
        %v2032 = vld [vmem:[#allocation2 + $0x18] sm:$0xff]
        %v2033 = vld [vmem:[#allocation2 + $0x20] sm:$0xff]
        %v2034 = vld [vmem:[#allocation2 + $0x28] sm:$0xff]
        %v2035 = vld [vmem:[#allocation2 + $0x30] sm:$0xff]
        %v2036 = vld [vmem:[#allocation2 + $0x38] sm:$0xff]
        %v2037 = vld [vmem:[#allocation3] sm:$0x1]
        %2039 = vset.pattern.permute.xlu0 0
        %2040 = vperm.xlu0 %2039, %v2037
        %v2041 = vpop.permute.xlu0 %2040
        %v2043 = vlaneseq
        %v2044 = vshrl.u32 %v2043, 7
        %v2045 = vsub.s32 0, %v2044
        %v2046 = vrot.slane %v2041, %v2045
        %2047 = vmatprep.subr.bf16.mxu0 0
        %2048 = vmatpush1.bf16.msra.mxu0 %v2029
        %2049 = vmatprep.subr.bf16.mxu0 0
        %2050 = vmatpush1.bf16.msra.mxu0 %v2030
        %2051 = vmatprep.subr.bf16.mxu0 0
        %2052 = vmatpush1.bf16.msra.mxu0 %v2031
        %2053 = vmatprep.subr.bf16.mxu0 0
        %2054 = vmatpush1.bf16.msra.mxu0 %v2032
        %2055 = vmatprep.subr.bf16.mxu0 0
        %2056 = vmatpush1.bf16.msra.mxu0 %v2033
        %2057 = vmatprep.subr.bf16.mxu0 0
        %2058 = vmatpush1.bf16.msra.mxu0 %v2034
        %2059 = vmatprep.subr.bf16.mxu0 0
        %2060 = vmatpush1.bf16.msra.mxu0 %v2035
        %2061 = vmatprep.subr.bf16.mxu0 0
        %2062 = vmatpush1.bf16.msra.mxu0 %v2036
        %2063 = vmatprep.subr.bf16.mxu0 0
        %2064 = vmatpush1.bf16.msra.mxu0 0
        %2065 = vmatprep.subr.bf16.mxu0 0
        %2066 = vmatpush1.bf16.msra.mxu0 0
        %2067 = vmatprep.subr.bf16.mxu0 0
        %2068 = vmatpush1.bf16.msra.mxu0 0
        %2069 = vmatprep.subr.bf16.mxu0 0
        %2070 = vmatpush1.bf16.msra.mxu0 0
        %2071 = vmatprep.subr.bf16.mxu0 0
        %2072 = vmatpush1.bf16.msra.mxu0 0
        %2073 = vmatprep.subr.bf16.mxu0 0
        %2074 = vmatpush1.bf16.msra.mxu0 0
        %2075 = vmatprep.subr.bf16.mxu0 0
        %2076 = vmatpush1.bf16.msra.mxu0 0
        %2077 = vmatprep.subr.bf16.mxu0 0
        %2078 = vmatpush1.bf16.msra.mxu0 0
        %2079 = vmatprep.mubr.bf16.mxu0 0
        %2080 = vmatmul.mubr.bf16.gmra.mrb[0].mxu0 %v2028
        %v2081 = vpop.f32.mrb[0].mxu0
        %v2082 = vadd.f32 %v2046, %v2081
        %v2083 = vpop.f32.mrb[0].mxu0
        %v2084 = vpop.f32.mrb[0].mxu0
        %v2085 = vpop.f32.mrb[0].mxu0
        %2086 = vdwg.mxu0
        %vm2087 = vcmask 516096
        %2088 = vst.msk [vmem:[%s361] sm:$0x1] %vm2087, %v2082
        %s2089 = sand.u32 %s248, 1
        %s2090 = scalar_lea.sflag [#allocation5], %s2089
        %s2091 = sand.u32 %s248, 1
        %s2092 = scalar_lea.vmem [#allocation4], %s2091
        // Predicated region
        $region57: #{tpu_custom_call.1} parent=55 // pred_check
          %p2093 = pneg %p258
        $region58: #{tpu_custom_call.1} parent=55 // pred_check_branch
          %2095 = sbr.rel (%p2093) target = $region60
        $region59: #{tpu_custom_call.1} parent=55 // pred_region
          %s2097 = ssub.s32 16, 16
          %2098 = vsyncadd %s2090, %s2097
          %s2099 = sadd.s32 %s30, %s29
          %s2100 = smul.addr %s2099, 16
          %s2101 = scalar_lea.hbm %s9, %s2100
          %s2103 = sshll.u32 %s2092, 4
          %s2104 = int_to_ptr.vmem [resolvable:$true] %s2103
          %2106 = dma.vmem_to_hbm [thread:$0]  %s2104, 16, %s2101, %s2090
        $region60: #{tpu_custom_call.1} parent=55 // pred_fallthru
          _
      $region56: #{tpu_custom_call.1} parent=5 // pred_fallthru
        _
      %p2107 = scmp.le.s32.totalorder 2, %s20
      // Predicated region
      $region61: #{tpu_custom_call.1} parent=5 // pred_check
        %p2108 = pneg %p2107
      $region62: #{tpu_custom_call.1} parent=5 // pred_check_branch
        %2110 = sbr.rel (%p2108) target = $region64
      $region63: #{tpu_custom_call.1} parent=5 // pred_region
        %s2111 = ssub.s32 %s20, 2
        // Predicated region
        $region65: #{tpu_custom_call.1} parent=63 // pred_check
          %p2112 = pneg %p264
        $region66: #{tpu_custom_call.1} parent=63 // pred_check_branch
          %2114 = sbr.rel (%p2112) target = $region68
        $region67: #{tpu_custom_call.1} parent=63 // pred_region
          %s2115 = sand.u32 %s249, 1
          %s2116 = scalar_lea.sflag [#allocation5], %s2115
          %s2117 = sand.u32 %s249, 1
          %s2118 = scalar_lea.vmem [#allocation4], %s2117
          %2119 = dma.done %s2116, 16
        $region68: #{tpu_custom_call.1} parent=63 // pred_fallthru
          _
      $region64: #{tpu_custom_call.1} parent=5 // pred_fallthru
        _
    $region6: #{tpu_custom_call.1} parent=1 // loop_footer
      %s24 = sadd.s32 1, %s20
    $region7: #{tpu_custom_call.1} parent=1 // loop_footer_branch
      %19 = sbr.rel target = $region3
    $region8: #{tpu_custom_call.1} parent=1 // loop_exit
      _
    %2120 = vsyncpa [#allocation5], 1
    %s2121 = scalar_lea.sflag [#allocation5], 1
    %2122 = vsyncpa %s2121, 1

</llo_original>
